<compile_context>
chip_gen: v7x
topology: tpu7x:2x2x1
jax: 0.10.0
libtpu: 0.0.40
codegen_flags: <defaults>
</compile_context>

<pallas_src>
import functools

import jax
import jax.numpy as jnp
from jax.experimental import pallas as pl
from jax.experimental.pallas import tpu as pltpu


def _upsampling_block_kernel(x_ref, w1_ref, b1_ref, w2_ref, b2_ref, o_ref, *, K, H, W):
    # x_ref : (1, H, W, Cin)       one NHWC image
    # w1_ref: (Cmid, K*K*Cin)      upconv1 weight (spatially flipped, im2col-flattened)
    # b1_ref: (Cmid, 1)
    # w2_ref: (Cout, K*K*Cmid)     upconv2 weight
    # b2_ref: (Cout, 1)
    # o_ref : (1, Cout, H2*W2)     lane-dense output slab (spatial on the lane axis)
    Cin = x_ref.shape[-1]
    Cmid = w1_ref.shape[0]
    P = K - 1
    H1, W1 = H + P, W + P            # upconv1 output size
    H2, W2 = H1 + P, W1 + P          # upconv2 output size

    def pad_hw(v, h, w, c):
        # zero-pad a (h, w, c) value by P on each spatial side, entirely in VMEM
        zr = jnp.zeros((P, w, c), jnp.float32)
        v = jnp.concatenate([zr, v, zr], axis=0)             # (h+2P, w, c)
        zc = jnp.zeros((h + 2 * P, P, c), jnp.float32)
        return jnp.concatenate([zc, v, zc], axis=1)          # (h+2P, w+2P, c)

    def conv_t(v_pad, w_r, b, ho, wo, c):
        # im2col -> single MXU matmul with spatial flattened onto the lane axis
        slabs = [v_pad[kh:kh + ho, kw:kw + wo, :]
                 for kh in range(K) for kw in range(K)]      # K*K x (ho, wo, c)
        patches = jnp.concatenate(slabs, axis=-1)            # (ho, wo, K*K*c)
        patches = patches.reshape(ho * wo, K * K * c).T      # (K*K*c, ho*wo)
        out = jnp.dot(w_r, patches,
                      preferred_element_type=jnp.float32)    # (Cnext, ho*wo)
        return out + b                                       # bias (Cnext, 1) broadcast

    x = x_ref[0].astype(jnp.float32)                         # (H, W, Cin)

    # ---- upconv1 ----
    y1 = conv_t(pad_hw(x, H, W, Cin),
                w1_ref[...], b1_ref[...], H1, W1, Cin)       # (Cmid, H1*W1)

    # ---- upconv2 (layer-1 output stays in VMEM) ----
    mid = y1.T.reshape(H1, W1, Cmid)                         # back to HWC for im2col
    y2 = conv_t(pad_hw(mid, H1, W1, Cmid),
                w2_ref[...], b2_ref[...], H2, W2, Cmid)      # (Cout, H2*W2)

    o_ref[...] = y2[None].astype(o_ref.dtype)                # lane-dense store


def _flip_flatten_weight(w):
    # PyTorch ConvTranspose2d weight (Cin, Cout, K, K) -> (Cout, K*K*Cin)
    # (spatial flip + channel swap + im2col flatten, tap-major / channel-minor)
    Cin, Cout, K, _ = w.shape
    w_eff = jnp.transpose(w, (2, 3, 0, 1))[::-1, ::-1]       # (K, K, Cin, Cout), flipped
    return w_eff.reshape(K * K * Cin, Cout).T                # (Cout, K*K*Cin)


@jax.jit
def upsampling_block_pallas(x_nchw, w1, b1, w2, b2):
    """Fused forward of UpsamplingBlock: upconv2(upconv1(x)). NCHW in, NCHW out."""
    N, Cin, H, W = x_nchw.shape
    Cmid, K = w1.shape[1], w1.shape[2]
    Cout = w2.shape[1]
    H1, W1 = H + K - 1, W + K - 1
    H2, W2 = H1 + K - 1, W1 + K - 1

    x_nhwc = jnp.transpose(x_nchw, (0, 2, 3, 1))
    w1_r = _flip_flatten_weight(w1)                          # (Cmid, K*K*Cin)
    w2_r = _flip_flatten_weight(w2)                          # (Cout, K*K*Cmid)
    b1_2d = b1.reshape(Cmid, 1)
    b2_2d = b2.reshape(Cout, 1)

    kernel = functools.partial(_upsampling_block_kernel, K=K, H=H, W=W)
    flops = 2 * N * (H1 * W1 * K * K * Cin * Cmid + H2 * W2 * K * K * Cmid * Cout)
    bytes_accessed = 4 * (x_nhwc.size + w1_r.size + w2_r.size +
                          b1_2d.size + b2_2d.size + N * Cout * H2 * W2)

    out_flat = pl.pallas_call(
        kernel,
        out_shape=jax.ShapeDtypeStruct((N, Cout, H2 * W2), x_nchw.dtype),
        grid=(N,),
        in_specs=[
            pl.BlockSpec((1, H, W, Cin), lambda n: (n, 0, 0, 0)),
            pl.BlockSpec((Cmid, K * K * Cin), lambda n: (0, 0)),
            pl.BlockSpec((Cmid, 1), lambda n: (0, 0)),
            pl.BlockSpec((Cout, K * K * Cmid), lambda n: (0, 0)),
            pl.BlockSpec((Cout, 1), lambda n: (0, 0)),
        ],
        out_specs=pl.BlockSpec((1, Cout, H2 * W2), lambda n: (n, 0, 0)),
        compiler_params=pltpu.CompilerParams(dimension_semantics=("parallel",)),
        cost_estimate=pl.CostEstimate(flops=flops, transcendentals=0,
                                      bytes_accessed=bytes_accessed),
    )(x_nhwc, w1_r, b1_2d, w2_r, b2_2d)

    return out_flat.reshape(N, Cout, H2, W2)


def _ref_conv_transpose2d(x_nchw, w, b):
    """Pure-JAX transcription of PyTorch ConvTranspose2d(stride=1, padding=0)."""
    N, Cin, H, W = x_nchw.shape
    Cout, K = w.shape[1], w.shape[2]
    y = jnp.zeros((N, Cout, H + K - 1, W + K - 1), jnp.float32)
    for kh in range(K):
        for kw in range(K):
            contrib = jnp.einsum('nchw,co->nohw', x_nchw, w[:, :, kh, kw])
            y = y.at[:, :, kh:kh + H, kw:kw + W].add(contrib)
    return y + b.reshape(1, Cout, 1, 1)


if __name__ == "__main__":
    N, Cin, Cout, K, H, W = 2, 4, 8, 3, 16, 16

    key = jax.random.PRNGKey(0)
    k1, k2, k3, k4, k5 = jax.random.split(key, 5)
    x = jax.random.normal(k1, (N, Cin, H, W), jnp.float32)             # NCHW, like PyTorch
    w1 = 0.1 * jax.random.normal(k2, (Cin, Cout, K, K), jnp.float32)   # upconv1.weight
    b1 = 0.1 * jax.random.normal(k3, (Cout,), jnp.float32)             # upconv1.bias
    w2 = 0.1 * jax.random.normal(k4, (Cout, Cout, K, K), jnp.float32)  # upconv2.weight
    b2 = 0.1 * jax.random.normal(k5, (Cout,), jnp.float32)             # upconv2.bias

    y = upsampling_block_pallas(x, w1, b1, w2, b2)
    y = jax.block_until_ready(y)

    # correctness check against a pure-JAX transcription of the PyTorch semantics
    y_ref = _ref_conv_transpose2d(_ref_conv_transpose2d(x, w1, b1), w2, b2)
    assert y.shape == (N, Cout, H + 2 * (K - 1), W + 2 * (K - 1)), y.shape
    max_err = float(jnp.max(jnp.abs(y - y_ref)))
    assert jnp.allclose(y, y_ref, atol=1e-4, rtol=1e-4), max_err

    print("KERNEL_OK")
</pallas_src>

<mosaic_0001>
module attributes {stable_mosaic.version = 11 : i64} {
  func.func @_upsampling_block_kernel(%arg0: i32, %arg1: memref<1x16x16x4xf32, #tpu.memory_space<vmem>>, %arg2: memref<8x36xf32, #tpu.memory_space<vmem>>, %arg3: memref<8x1xf32, #tpu.memory_space<vmem>>, %arg4: memref<8x72xf32, #tpu.memory_space<vmem>>, %arg5: memref<8x1xf32, #tpu.memory_space<vmem>>, %arg6: memref<1x8x400xf32, #tpu.memory_space<vmem>>) attributes {dimension_semantics = [#tpu.dimension_semantics<parallel>], iteration_bounds = array<i64: 2>, scalar_prefetch = 0 : i64, scratch_operands = 0 : i64, tpu.core_type = #tpu.core_type<tc>, window_params = [{transform_indices = @transform_0, window_bounds = array<i64: 1, 16, 16, 4>}, {pipeline_mode = #tpu.pipeline_mode<synchronous>, transform_indices = @transform_1, window_bounds = array<i64: 8, 36>}, {pipeline_mode = #tpu.pipeline_mode<synchronous>, transform_indices = @transform_2, window_bounds = array<i64: 8, 1>}, {pipeline_mode = #tpu.pipeline_mode<synchronous>, transform_indices = @transform_3, window_bounds = array<i64: 8, 72>}, {pipeline_mode = #tpu.pipeline_mode<synchronous>, transform_indices = @transform_4, window_bounds = array<i64: 8, 1>}, {transform_indices = @transform_5, window_bounds = array<i64: 1, 8, 400>}]} {
    %c0 = arith.constant 0 : index
    %c0_0 = arith.constant 0 : index
    %c0_1 = arith.constant 0 : index
    %c0_2 = arith.constant 0 : index
    %0 = vector.load %arg1[%c0, %c0_0, %c0_1, %c0_2] : memref<1x16x16x4xf32, #tpu.memory_space<vmem>>, vector<1x16x16x4xf32>
    %1 = vector.shape_cast %0 : vector<1x16x16x4xf32> to vector<16x16x4xf32>
    %cst = arith.constant 0.000000e+00 : f32
    %2 = vector.broadcast %cst : f32 to vector<2x16x4xf32>
    %3 = tpu.concatenate %2, %1, %2 in 0 : vector<2x16x4xf32>, vector<16x16x4xf32>, vector<2x16x4xf32> -> vector<20x16x4xf32>
    %cst_3 = arith.constant 0.000000e+00 : f32
    %4 = vector.broadcast %cst_3 : f32 to vector<20x2x4xf32>
    %5 = tpu.concatenate %4, %3, %4 in 1 : vector<20x2x4xf32>, vector<20x16x4xf32>, vector<20x2x4xf32> -> vector<20x20x4xf32>
    %c0_4 = arith.constant 0 : index
    %c0_5 = arith.constant 0 : index
    %6 = vector.load %arg2[%c0_4, %c0_5] : memref<8x36xf32, #tpu.memory_space<vmem>>, vector<8x36xf32>
    %c0_6 = arith.constant 0 : index
    %c0_7 = arith.constant 0 : index
    %7 = vector.load %arg3[%c0_6, %c0_7] : memref<8x1xf32, #tpu.memory_space<vmem>>, vector<8x1xf32>
    %8 = vector.extract_strided_slice %5 {offsets = [0, 0, 0], sizes = [18, 18, 4], strides = [1, 1, 1]} : vector<20x20x4xf32> to vector<18x18x4xf32>
    %9 = vector.extract_strided_slice %5 {offsets = [0, 1, 0], sizes = [18, 18, 4], strides = [1, 1, 1]} : vector<20x20x4xf32> to vector<18x18x4xf32>
    %10 = vector.extract_strided_slice %5 {offsets = [0, 2, 0], sizes = [18, 18, 4], strides = [1, 1, 1]} : vector<20x20x4xf32> to vector<18x18x4xf32>
    %11 = vector.extract_strided_slice %5 {offsets = [1, 0, 0], sizes = [18, 18, 4], strides = [1, 1, 1]} : vector<20x20x4xf32> to vector<18x18x4xf32>
    %12 = vector.extract_strided_slice %5 {offsets = [1, 1, 0], sizes = [18, 18, 4], strides = [1, 1, 1]} : vector<20x20x4xf32> to vector<18x18x4xf32>
    %13 = vector.extract_strided_slice %5 {offsets = [1, 2, 0], sizes = [18, 18, 4], strides = [1, 1, 1]} : vector<20x20x4xf32> to vector<18x18x4xf32>
    %14 = vector.extract_strided_slice %5 {offsets = [2, 0, 0], sizes = [18, 18, 4], strides = [1, 1, 1]} : vector<20x20x4xf32> to vector<18x18x4xf32>
    %15 = vector.extract_strided_slice %5 {offsets = [2, 1, 0], sizes = [18, 18, 4], strides = [1, 1, 1]} : vector<20x20x4xf32> to vector<18x18x4xf32>
    %16 = vector.extract_strided_slice %5 {offsets = [2, 2, 0], sizes = [18, 18, 4], strides = [1, 1, 1]} : vector<20x20x4xf32> to vector<18x18x4xf32>
    %17 = tpu.concatenate %8, %9, %10, %11, %12, %13, %14, %15, %16 in 2 : vector<18x18x4xf32>, vector<18x18x4xf32>, vector<18x18x4xf32>, vector<18x18x4xf32>, vector<18x18x4xf32>, vector<18x18x4xf32>, vector<18x18x4xf32>, vector<18x18x4xf32>, vector<18x18x4xf32> -> vector<18x18x36xf32>
    %18 = vector.shape_cast %17 : vector<18x18x36xf32> to vector<324x36xf32>
    %19 = tpu.transpose %18, [1, 0] : vector<324x36xf32> -> vector<36x324xf32>
    %cst_8 = arith.constant dense<0.000000e+00> : vector<8x324xf32>
    %20 = tpu.matmul %6, %19, %cst_8 {dimension_numbers = #tpu.dot_dimension_numbers<[1], [0], [0], [1], [0, 0, 1, 1], [], []>} : vector<8x36xf32>, vector<36x324xf32>, vector<8x324xf32> -> vector<8x324xf32>
    %21 = vector.broadcast %7 : vector<8x1xf32> to vector<8x324xf32>
    %22 = arith.addf %20, %21 : vector<8x324xf32>
    %23 = tpu.transpose %22, [1, 0] : vector<8x324xf32> -> vector<324x8xf32>
    %24 = vector.shape_cast %23 : vector<324x8xf32> to vector<18x18x8xf32>
    %cst_9 = arith.constant 0.000000e+00 : f32
    %25 = vector.broadcast %cst_9 : f32 to vector<2x18x8xf32>
    %26 = tpu.concatenate %25, %24, %25 in 0 : vector<2x18x8xf32>, vector<18x18x8xf32>, vector<2x18x8xf32> -> vector<22x18x8xf32>
    %cst_10 = arith.constant 0.000000e+00 : f32
    %27 = vector.broadcast %cst_10 : f32 to vector<22x2x8xf32>
    %28 = tpu.concatenate %27, %26, %27 in 1 : vector<22x2x8xf32>, vector<22x18x8xf32>, vector<22x2x8xf32> -> vector<22x22x8xf32>
    %c0_11 = arith.constant 0 : index
    %c0_12 = arith.constant 0 : index
    %29 = vector.load %arg4[%c0_11, %c0_12] : memref<8x72xf32, #tpu.memory_space<vmem>>, vector<8x72xf32>
    %c0_13 = arith.constant 0 : index
    %c0_14 = arith.constant 0 : index
    %30 = vector.load %arg5[%c0_13, %c0_14] : memref<8x1xf32, #tpu.memory_space<vmem>>, vector<8x1xf32>
    %31 = vector.extract_strided_slice %28 {offsets = [0, 0, 0], sizes = [20, 20, 8], strides = [1, 1, 1]} : vector<22x22x8xf32> to vector<20x20x8xf32>
    %32 = vector.extract_strided_slice %28 {offsets = [0, 1, 0], sizes = [20, 20, 8], strides = [1, 1, 1]} : vector<22x22x8xf32> to vector<20x20x8xf32>
    %33 = vector.extract_strided_slice %28 {offsets = [0, 2, 0], sizes = [20, 20, 8], strides = [1, 1, 1]} : vector<22x22x8xf32> to vector<20x20x8xf32>
    %34 = vector.extract_strided_slice %28 {offsets = [1, 0, 0], sizes = [20, 20, 8], strides = [1, 1, 1]} : vector<22x22x8xf32> to vector<20x20x8xf32>
    %35 = vector.extract_strided_slice %28 {offsets = [1, 1, 0], sizes = [20, 20, 8], strides = [1, 1, 1]} : vector<22x22x8xf32> to vector<20x20x8xf32>
    %36 = vector.extract_strided_slice %28 {offsets = [1, 2, 0], sizes = [20, 20, 8], strides = [1, 1, 1]} : vector<22x22x8xf32> to vector<20x20x8xf32>
    %37 = vector.extract_strided_slice %28 {offsets = [2, 0, 0], sizes = [20, 20, 8], strides = [1, 1, 1]} : vector<22x22x8xf32> to vector<20x20x8xf32>
    %38 = vector.extract_strided_slice %28 {offsets = [2, 1, 0], sizes = [20, 20, 8], strides = [1, 1, 1]} : vector<22x22x8xf32> to vector<20x20x8xf32>
    %39 = vector.extract_strided_slice %28 {offsets = [2, 2, 0], sizes = [20, 20, 8], strides = [1, 1, 1]} : vector<22x22x8xf32> to vector<20x20x8xf32>
    %40 = tpu.concatenate %31, %32, %33, %34, %35, %36, %37, %38, %39 in 2 : vector<20x20x8xf32>, vector<20x20x8xf32>, vector<20x20x8xf32>, vector<20x20x8xf32>, vector<20x20x8xf32>, vector<20x20x8xf32>, vector<20x20x8xf32>, vector<20x20x8xf32>, vector<20x20x8xf32> -> vector<20x20x72xf32>
    %41 = vector.shape_cast %40 : vector<20x20x72xf32> to vector<400x72xf32>
    %42 = tpu.transpose %41, [1, 0] : vector<400x72xf32> -> vector<72x400xf32>
    %cst_15 = arith.constant dense<0.000000e+00> : vector<8x400xf32>
    %43 = tpu.matmul %29, %42, %cst_15 {dimension_numbers = #tpu.dot_dimension_numbers<[1], [0], [0], [1], [0, 0, 1, 1], [], []>} : vector<8x72xf32>, vector<72x400xf32>, vector<8x400xf32> -> vector<8x400xf32>
    %44 = vector.broadcast %30 : vector<8x1xf32> to vector<8x400xf32>
    %45 = arith.addf %43, %44 : vector<8x400xf32>
    %46 = vector.shape_cast %45 : vector<8x400xf32> to vector<1x8x400xf32>
    %c0_16 = arith.constant 0 : index
    %c0_17 = arith.constant 0 : index
    %c0_18 = arith.constant 0 : index
    %47 = vector.load %arg6[%c0_16, %c0_17, %c0_18] : memref<1x8x400xf32, #tpu.memory_space<vmem>>, vector<1x8x400xf32>
    tpu.vector_store %arg6[%c0_16, %c0_17, %c0_18], %46 {strides = array<i32>} : memref<1x8x400xf32, #tpu.memory_space<vmem>>, vector<1x8x400xf32>,
    return
  }
  func.func @transform_0(%arg0: i32) -> (i32, i32, i32, i32) {
    %c0_i32 = arith.constant 0 : i32
    %c0_i32_0 = arith.constant 0 : i32
    %c0_i32_1 = arith.constant 0 : i32
    %c0_i32_2 = arith.constant 0 : i32
    return %arg0, %c0_i32, %c0_i32_0, %c0_i32_1 : i32, i32, i32, i32
  }
  func.func @transform_1(%arg0: i32) -> (i32, i32) {
    %c0_i32 = arith.constant 0 : i32
    %c0_i32_0 = arith.constant 0 : i32
    %c0_i32_1 = arith.constant 0 : i32
    return %c0_i32, %c0_i32_0 : i32, i32
  }
  func.func @transform_2(%arg0: i32) -> (i32, i32) {
    %c0_i32 = arith.constant 0 : i32
    %c0_i32_0 = arith.constant 0 : i32
    %c0_i32_1 = arith.constant 0 : i32
    return %c0_i32, %c0_i32_0 : i32, i32
  }
  func.func @transform_3(%arg0: i32) -> (i32, i32) {
    %c0_i32 = arith.constant 0 : i32
    %c0_i32_0 = arith.constant 0 : i32
    %c0_i32_1 = arith.constant 0 : i32
    return %c0_i32, %c0_i32_0 : i32, i32
  }
  func.func @transform_4(%arg0: i32) -> (i32, i32) {
    %c0_i32 = arith.constant 0 : i32
    %c0_i32_0 = arith.constant 0 : i32
    %c0_i32_1 = arith.constant 0 : i32
    return %c0_i32, %c0_i32_0 : i32, i32
  }
  func.func @transform_5(%arg0: i32) -> (i32, i32, i32) {
    %c0_i32 = arith.constant 0 : i32
    %c0_i32_0 = arith.constant 0 : i32
    %c0_i32_1 = arith.constant 0 : i32
    return %arg0, %c0_i32, %c0_i32_0 : i32, i32, i32
  }
}

</mosaic_0001>

<llo_original>
// kernel: upsampling_block_pallas.1
$region0: #{upsampling_block_pallas.1}
  #allocation0 [shape = 'u32[]', space=smem, size = 0x4, offset = 0x4, fixed_abs, tag = 'smem constant byte address 0x4 - core index']
  #allocation1 [shape = 'u32[144,128]{1,0:T(1,128)}', space=vmem, size = 0x12000, scoped, tag = 'internal scratch']
  %s0 = inlined_call_operand.vmem [shape: f32[2,16,16,4], index: 0, kind: input, shape index: {}]
  %s1 = inlined_call_operand.vmem [shape: f32[8,36], index: 1, kind: input, shape index: {}]
  %s2 = inlined_call_operand.vmem [shape: f32[8,1], index: 2, kind: input, shape index: {}]
  %s3 = inlined_call_operand.vmem [shape: f32[8,72], index: 3, kind: input, shape index: {}]
  %s4 = inlined_call_operand.vmem [shape: f32[8,1], index: 4, kind: input, shape index: {}]
  %s5 = inlined_call_operand.vmem [shape: f32[2,8,400], index: 5, kind: output, shape index: {}]
  %s6 = sld [smem:[#allocation0]]
  $region53: #{upsampling_block_pallas.1} parent=0
    _
  %s8 = ssub.s32 1, %s6
  %s9 = scalar_select 0, %s8, %s6
  loop: start=0, step=1, limit=4
  $region2: #{upsampling_block_pallas.1} parent=0 // loop_pre_header
    _
  $region3: #{upsampling_block_pallas.1} parent=0 // loop_header
    %s11 = sphi 0, %s15
    %p12 = scmp.ge.s32.totalorder %s11, 4
    %s21 = sphi 0, %s23
    %s24 = sphi 0, %s21
    %s25 = sphi 0, %s24
    %s41 = sphi 0, %s25
    %s45 = sphi 0, %s45
    %s47 = sphi 0, %s45
    %s48 = sphi 0, %s47
    %s62 = sphi 0, %s48
    %s66 = sphi 0, %s66
    %s68 = sphi 0, %s66
    %s69 = sphi 0, %s68
    %s83 = sphi 0, %s69
    %s87 = sphi 0, %s87
    %s89 = sphi 0, %s87
    %s90 = sphi 0, %s89
    %s104 = sphi 0, %s90
    %s108 = sphi 0, %s108
    %s110 = sphi 0, %s108
    %s111 = sphi 0, %s110
    %s125 = sphi 0, %s111
    %s131 = sphi 0, %s133
    %s134 = sphi 0, %s131
    %s135 = sphi 0, %s134
    %s151 = sphi 0, %s135
  $region4: #{upsampling_block_pallas.1} parent=0 // loop_header_branch
    %14 = sbr.rel (%p12) target = $region8
  $region5: #{upsampling_block_pallas.1} parent=0 // loop_body
    %s16 = ssub.s32 %s11, 1
    %s17 = ssub.s32 %s11, 2
    %s18 = sadd.s32 %s11, 1
    %s19 = ssub.s32 %s11, %s18
    %p20 = scmp.eq.s32.totalorder %s19, 0
    %s22 = sadd.s32 %s21, 1
    %s23 = scalar_select %p20, %s21, %s22
    %p26 = pneg %p20
    %p27 = scmp.eq.s32.totalorder %s11, 1
    %p28 = por %p26, %p27
    %p29 = scmp.ne.s32.totalorder %s21, %s24
    %p30 = scmp.eq.s32.totalorder %s11, 0
    %p31 = por %p29, %p30
    %p32 = scmp.ne.s32.totalorder %s21, %s24
    %p33 = scmp.eq.s32.totalorder %s16, 1
    %p34 = por %p32, %p33
    %p35 = scmp.ne.s32.totalorder %s24, %s25
    %p36 = scmp.eq.s32.totalorder %s16, 0
    %p37 = por %p35, %p36
    %p38 = scmp.ne.s32.totalorder %s24, %s25
    %p39 = scmp.eq.s32.totalorder %s17, 1
    %p40 = por %p38, %p39
    %p42 = scmp.ne.s32.totalorder %s25, %s41
    %p43 = scmp.eq.s32.totalorder %s17, 0
    %p44 = por %p42, %p43
    %s46 = sadd.s32 %s45, 1
    %p49 = scmp.eq.s32.totalorder %s11, 1
    %p50 = scmp.ne.s32.totalorder %s45, %s47
    %p51 = scmp.eq.s32.totalorder %s11, 0
    %p52 = por %p50, %p51
    %p53 = scmp.ne.s32.totalorder %s45, %s47
    %p54 = scmp.eq.s32.totalorder %s16, 1
    %p55 = por %p53, %p54
    %p56 = scmp.ne.s32.totalorder %s47, %s48
    %p57 = scmp.eq.s32.totalorder %s16, 0
    %p58 = por %p56, %p57
    %p59 = scmp.ne.s32.totalorder %s47, %s48
    %p60 = scmp.eq.s32.totalorder %s17, 1
    %p61 = por %p59, %p60
    %p63 = scmp.ne.s32.totalorder %s48, %s62
    %p64 = scmp.eq.s32.totalorder %s17, 0
    %p65 = por %p63, %p64
    %s67 = sadd.s32 %s66, 1
    %p70 = scmp.eq.s32.totalorder %s11, 1
    %p71 = scmp.ne.s32.totalorder %s66, %s68
    %p72 = scmp.eq.s32.totalorder %s11, 0
    %p73 = por %p71, %p72
    %p74 = scmp.ne.s32.totalorder %s66, %s68
    %p75 = scmp.eq.s32.totalorder %s16, 1
    %p76 = por %p74, %p75
    %p77 = scmp.ne.s32.totalorder %s68, %s69
    %p78 = scmp.eq.s32.totalorder %s16, 0
    %p79 = por %p77, %p78
    %p80 = scmp.ne.s32.totalorder %s68, %s69
    %p81 = scmp.eq.s32.totalorder %s17, 1
    %p82 = por %p80, %p81
    %p84 = scmp.ne.s32.totalorder %s69, %s83
    %p85 = scmp.eq.s32.totalorder %s17, 0
    %p86 = por %p84, %p85
    %s88 = sadd.s32 %s87, 1
    %p91 = scmp.eq.s32.totalorder %s11, 1
    %p92 = scmp.ne.s32.totalorder %s87, %s89
    %p93 = scmp.eq.s32.totalorder %s11, 0
    %p94 = por %p92, %p93
    %p95 = scmp.ne.s32.totalorder %s87, %s89
    %p96 = scmp.eq.s32.totalorder %s16, 1
    %p97 = por %p95, %p96
    %p98 = scmp.ne.s32.totalorder %s89, %s90
    %p99 = scmp.eq.s32.totalorder %s16, 0
    %p100 = por %p98, %p99
    %p101 = scmp.ne.s32.totalorder %s89, %s90
    %p102 = scmp.eq.s32.totalorder %s17, 1
    %p103 = por %p101, %p102
    %p105 = scmp.ne.s32.totalorder %s90, %s104
    %p106 = scmp.eq.s32.totalorder %s17, 0
    %p107 = por %p105, %p106
    %s109 = sadd.s32 %s108, 1
    %p112 = scmp.eq.s32.totalorder %s11, 1
    %p113 = scmp.ne.s32.totalorder %s108, %s110
    %p114 = scmp.eq.s32.totalorder %s11, 0
    %p115 = por %p113, %p114
    %p116 = scmp.ne.s32.totalorder %s108, %s110
    %p117 = scmp.eq.s32.totalorder %s16, 1
    %p118 = por %p116, %p117
    %p119 = scmp.ne.s32.totalorder %s110, %s111
    %p120 = scmp.eq.s32.totalorder %s16, 0
    %p121 = por %p119, %p120
    %p122 = scmp.ne.s32.totalorder %s110, %s111
    %p123 = scmp.eq.s32.totalorder %s17, 1
    %p124 = por %p122, %p123
    %p126 = scmp.ne.s32.totalorder %s111, %s125
    %p127 = scmp.eq.s32.totalorder %s17, 0
    %p128 = por %p126, %p127
    %s129 = ssub.s32 %s11, %s18
    %p130 = scmp.eq.s32.totalorder %s129, 0
    %s132 = sadd.s32 %s131, 1
    %s133 = scalar_select %p130, %s131, %s132
    %p136 = pneg %p130
    %p137 = scmp.eq.s32.totalorder %s11, 1
    %p138 = por %p136, %p137
    %p139 = scmp.ne.s32.totalorder %s131, %s134
    %p140 = scmp.eq.s32.totalorder %s11, 0
    %p141 = por %p139, %p140
    %p142 = scmp.ne.s32.totalorder %s131, %s134
    %p143 = scmp.eq.s32.totalorder %s16, 1
    %p144 = por %p142, %p143
    %p145 = scmp.ne.s32.totalorder %s134, %s135
    %p146 = scmp.eq.s32.totalorder %s16, 0
    %p147 = por %p145, %p146
    %p148 = scmp.ne.s32.totalorder %s134, %s135
    %p149 = scmp.eq.s32.totalorder %s17, 1
    %p150 = por %p148, %p149
    %p152 = scmp.ne.s32.totalorder %s135, %s151
    %p153 = scmp.eq.s32.totalorder %s17, 0
    %p154 = por %p152, %p153
    %p155 = scmp.le.s32.totalorder 1, %s11
    %p156 = scmp.lt.s32.totalorder %s11, 3
    %p157 = pnand %p155, %p156
    %p158 = pneg %p157
    // Predicated region
    $region9: #{upsampling_block_pallas.1} parent=5 // pred_check
      _
    $region10: #{upsampling_block_pallas.1} parent=5 // pred_check_branch
      %160 = sbr.rel (%p157) target = $region12
    $region11: #{upsampling_block_pallas.1} parent=5 // pred_region
      %s161 = ssub.s32 %s11, 1
      // Predicated region
      $region13: #{upsampling_block_pallas.1} parent=11 // pred_check
        %p162 = pneg %p58
      $region14: #{upsampling_block_pallas.1} parent=11 // pred_check_branch
        %164 = sbr.rel (%p162) target = $region16
      $region15: #{upsampling_block_pallas.1} parent=11 // pred_region
        _
      $region16: #{upsampling_block_pallas.1} parent=11 // pred_fallthru
        _
      // Predicated region
      $region17: #{upsampling_block_pallas.1} parent=11 // pred_check
        %p165 = pneg %p79
      $region18: #{upsampling_block_pallas.1} parent=11 // pred_check_branch
        %167 = sbr.rel (%p165) target = $region20
      $region19: #{upsampling_block_pallas.1} parent=11 // pred_region
        _
      $region20: #{upsampling_block_pallas.1} parent=11 // pred_fallthru
        _
      // Predicated region
      $region21: #{upsampling_block_pallas.1} parent=11 // pred_check
        %p168 = pneg %p100
      $region22: #{upsampling_block_pallas.1} parent=11 // pred_check_branch
        %170 = sbr.rel (%p168) target = $region24
      $region23: #{upsampling_block_pallas.1} parent=11 // pred_region
        _
      $region24: #{upsampling_block_pallas.1} parent=11 // pred_fallthru
        _
      // Predicated region
      $region25: #{upsampling_block_pallas.1} parent=11 // pred_check
        %p171 = pneg %p121
      $region26: #{upsampling_block_pallas.1} parent=11 // pred_check_branch
        %173 = sbr.rel (%p171) target = $region28
      $region27: #{upsampling_block_pallas.1} parent=11 // pred_region
        _
      $region28: #{upsampling_block_pallas.1} parent=11 // pred_fallthru
        _
    $region12: #{upsampling_block_pallas.1} parent=5 // pred_fallthru
      _
    %p174 = scmp.lt.s32.totalorder %s11, 2
    // Predicated region
    $region29: #{upsampling_block_pallas.1} parent=5 // pred_check
      %p175 = pneg %p174
    $region30: #{upsampling_block_pallas.1} parent=5 // pred_check_branch
      %177 = sbr.rel (%p175) target = $region32
    $region31: #{upsampling_block_pallas.1} parent=5 // pred_region
      // Predicated region
      $region33: #{upsampling_block_pallas.1} parent=31 // pred_check
        %p178 = pneg %p31
      $region34: #{upsampling_block_pallas.1} parent=31 // pred_check_branch
        %180 = sbr.rel (%p178) target = $region36
      $region35: #{upsampling_block_pallas.1} parent=31 // pred_region
        %p181 = scmp.lt.s32.totalorder %s11, 1
        %s182 = scalar_select %p181, %s11, 1
        %s183 = smul.addr %s182, 32
        %s184 = smul.addr %s183, 8
        %s185 = scalar_lea.vmem %s0, %s184
      $region36: #{upsampling_block_pallas.1} parent=31 // pred_fallthru
        _
    $region32: #{upsampling_block_pallas.1} parent=5 // pred_fallthru
      _
    %p186 = scmp.le.s32.totalorder 1, %s11
    %p187 = scmp.lt.s32.totalorder %s11, 3
    %p188 = pnand %p186, %p187
    %p189 = pneg %p188
    // Predicated region
    $region37: #{upsampling_block_pallas.1} parent=5 // pred_check
      _
    $region38: #{upsampling_block_pallas.1} parent=5 // pred_check_branch
      %191 = sbr.rel (%p188) target = $region40
    $region39: #{upsampling_block_pallas.1} parent=5 // pred_region
      %s192 = ssub.s32 %s11, 1
      %p193 = scmp.lt.s32.totalorder %s16, 1
      %s194 = scalar_select %p193, %s16, 1
      %s195 = smul.addr %s194, 32
      %s196 = smul.addr %s195, 8
      %s197 = scalar_lea.vmem %s0, %s196
      %p198 = pneg %p37
      %p199 = pneg %p34
      %p200 = pneg %p58
      %p201 = pneg %p55
      %p202 = pneg %p79
      %p203 = pneg %p76
      %p204 = pneg %p100
      %p205 = pneg %p97
      %p206 = pneg %p121
      %p207 = pneg %p118
      %p208 = pneg %p147
      %p209 = pneg %p144
      %p210 = scmp.lt.s32.totalorder %s16, 1
      %s211 = scalar_select %p210, %s16, 1
      %s212 = smul.addr %s211, 4
      %s213 = smul.addr %s212, 8
      %s214 = scalar_lea.vmem %s5, %s213
      %p215 = scmp.lt.s32.totalorder %s16, 1
      %s216 = scalar_select %p215, %s16, 1
      %s217 = smul.addr %s216, 32
      %s218 = smul.addr %s217, 8
      %s219 = scalar_lea.vmem %s0, %s218
      %p220 = scmp.lt.s32.totalorder %s16, 1
      %s221 = scalar_select %p220, %s16, 1
      %s222 = smul.addr %s221, 4
      %s223 = smul.addr %s222, 8
      %s224 = scalar_lea.vmem %s5, %s223
      %v225 = vld [vmem:[%s219] sm:$0xff]
      %v226 = vld [vmem:[%s219 + $0x8] sm:$0xff]
      %v227 = vld [vmem:[%s219 + $0x10] sm:$0xff]
      %v228 = vld [vmem:[%s219 + $0x18] sm:$0xff]
      %v229 = vld [vmem:[%s219 + $0x20] sm:$0xff]
      %v230 = vld [vmem:[%s219 + $0x28] sm:$0xff]
      %v231 = vld [vmem:[%s219 + $0x30] sm:$0xff]
      %v232 = vld [vmem:[%s219 + $0x38] sm:$0xff]
      %v233 = vld [vmem:[%s219 + $0x40] sm:$0xff]
      %v234 = vld [vmem:[%s219 + $0x48] sm:$0xff]
      %v235 = vld [vmem:[%s219 + $0x50] sm:$0xff]
      %v236 = vld [vmem:[%s219 + $0x58] sm:$0xff]
      %v237 = vld [vmem:[%s219 + $0x60] sm:$0xff]
      %v238 = vld [vmem:[%s219 + $0x68] sm:$0xff]
      %v239 = vld [vmem:[%s219 + $0x70] sm:$0xff]
      %v240 = vld [vmem:[%s219 + $0x78] sm:$0xff]
      %v241 = vld [vmem:[%s219 + $0x80] sm:$0xff]
      %v242 = vld [vmem:[%s219 + $0x88] sm:$0xff]
      %v243 = vld [vmem:[%s219 + $0x90] sm:$0xff]
      %v244 = vld [vmem:[%s219 + $0x98] sm:$0xff]
      %v245 = vld [vmem:[%s219 + $0xa0] sm:$0xff]
      %v246 = vld [vmem:[%s219 + $0xa8] sm:$0xff]
      %v247 = vld [vmem:[%s219 + $0xb0] sm:$0xff]
      %v248 = vld [vmem:[%s219 + $0xb8] sm:$0xff]
      %v249 = vld [vmem:[%s219 + $0xc0] sm:$0xff]
      %v250 = vld [vmem:[%s219 + $0xc8] sm:$0xff]
      %v251 = vld [vmem:[%s219 + $0xd0] sm:$0xff]
      %v252 = vld [vmem:[%s219 + $0xd8] sm:$0xff]
      %v253 = vld [vmem:[%s219 + $0xe0] sm:$0xff]
      %v254 = vld [vmem:[%s219 + $0xe8] sm:$0xff]
      %v255 = vld [vmem:[%s219 + $0xf0] sm:$0xff]
      %v256 = vld [vmem:[%s219 + $0xf8] sm:$0xff]
      %vm290 = vcmask 1041408
      %v291 = vrot.slane 0.0, 6
      %v292 = vsel %vm290, %v291, %v291
      %v293 = vrot.slane %v225, 6
      %v294 = vrot.slane %v226, 6
      %v295 = vsel %vm290, %v293, %v294
      %v296 = vrot.slane %v227, 6
      %v297 = vrot.slane %v228, 6
      %v298 = vsel %vm290, %v296, %v297
      %v299 = vrot.slane %v229, 6
      %v300 = vrot.slane %v230, 6
      %v301 = vsel %vm290, %v299, %v300
      %v302 = vrot.slane %v231, 6
      %v303 = vrot.slane %v232, 6
      %v304 = vsel %vm290, %v302, %v303
      %v305 = vrot.slane %v233, 6
      %v306 = vrot.slane %v234, 6
      %v307 = vsel %vm290, %v305, %v306
      %v308 = vrot.slane %v235, 6
      %v309 = vrot.slane %v236, 6
      %v310 = vsel %vm290, %v308, %v309
      %v311 = vrot.slane %v237, 6
      %v312 = vrot.slane %v238, 6
      %v313 = vsel %vm290, %v311, %v312
      %v314 = vrot.slane %v239, 6
      %v315 = vrot.slane %v240, 6
      %v316 = vsel %vm290, %v314, %v315
      %v317 = vrot.slane %v241, 6
      %v318 = vrot.slane %v242, 6
      %v319 = vsel %vm290, %v317, %v318
      %v320 = vrot.slane %v243, 6
      %v321 = vrot.slane %v244, 6
      %v322 = vsel %vm290, %v320, %v321
      %v323 = vrot.slane %v245, 6
      %v324 = vrot.slane %v246, 6
      %v325 = vsel %vm290, %v323, %v324
      %v326 = vrot.slane %v247, 6
      %v327 = vrot.slane %v248, 6
      %v328 = vsel %vm290, %v326, %v327
      %v329 = vrot.slane %v249, 6
      %v330 = vrot.slane %v250, 6
      %v331 = vsel %vm290, %v329, %v330
      %v332 = vrot.slane %v251, 6
      %v333 = vrot.slane %v252, 6
      %v334 = vsel %vm290, %v332, %v333
      %v335 = vrot.slane %v253, 6
      %v336 = vrot.slane %v254, 6
      %v337 = vsel %vm290, %v335, %v336
      %v338 = vrot.slane %v255, 6
      %v339 = vrot.slane %v256, 6
      %v340 = vsel %vm290, %v338, %v339
      %v391 = vsel %vm290, 0.0, %v291
      %v392 = vsel %vm290, 0.0, %v293
      %v393 = vsel %vm290, 0.0, %v296
      %v394 = vsel %vm290, 0.0, %v299
      %v395 = vsel %vm290, 0.0, %v302
      %v396 = vsel %vm290, 0.0, %v305
      %v397 = vsel %vm290, 0.0, %v308
      %v398 = vsel %vm290, 0.0, %v311
      %v399 = vsel %vm290, 0.0, %v314
      %v400 = vsel %vm290, 0.0, %v317
      %v401 = vsel %vm290, 0.0, %v320
      %v402 = vsel %vm290, 0.0, %v323
      %v403 = vsel %vm290, 0.0, %v326
      %v404 = vsel %vm290, 0.0, %v329
      %v405 = vsel %vm290, 0.0, %v332
      %v406 = vsel %vm290, 0.0, %v335
      %v407 = vsel %vm290, 0.0, %v338
      %v408 = vsel %vm290, %v291, 0.0
      %v409 = vsel %vm290, %v294, 0.0
      %v410 = vsel %vm290, %v297, 0.0
      %v411 = vsel %vm290, %v300, 0.0
      %v412 = vsel %vm290, %v303, 0.0
      %v413 = vsel %vm290, %v306, 0.0
      %v414 = vsel %vm290, %v309, 0.0
      %v415 = vsel %vm290, %v312, 0.0
      %v416 = vsel %vm290, %v315, 0.0
      %v417 = vsel %vm290, %v318, 0.0
      %v418 = vsel %vm290, %v321, 0.0
      %v419 = vsel %vm290, %v324, 0.0
      %v420 = vsel %vm290, %v327, 0.0
      %v421 = vsel %vm290, %v330, 0.0
      %v422 = vsel %vm290, %v333, 0.0
      %v423 = vsel %vm290, %v336, 0.0
      %v424 = vsel %vm290, %v339, 0.0
      %v425 = vld [vmem:[%s1] sm:$0xff]
      %v426 = vld [vmem:[%s2] sm:$0xff]
      %vm461 = vcmask 1046528
      %v462 = vrot.slane %v391, 1
      %v463 = vrot.slane %v292, 1
      %v464 = vsel %vm461, %v462, %v463
      %v465 = vrot.slane %v408, 1
      %v466 = vsel %vm461, %v463, %v465
      %v467 = vrot.slane %v392, 1
      %v468 = vrot.slane %v295, 1
      %v469 = vsel %vm461, %v467, %v468
      %v470 = vrot.slane %v409, 1
      %v471 = vsel %vm461, %v468, %v470
      %v472 = vrot.slane %v393, 1
      %v473 = vrot.slane %v298, 1
      %v474 = vsel %vm461, %v472, %v473
      %v475 = vrot.slane %v410, 1
      %v476 = vsel %vm461, %v473, %v475
      %v477 = vrot.slane %v394, 1
      %v478 = vrot.slane %v301, 1
      %v479 = vsel %vm461, %v477, %v478
      %v480 = vrot.slane %v411, 1
      %v481 = vsel %vm461, %v478, %v480
      %v482 = vrot.slane %v395, 1
      %v483 = vrot.slane %v304, 1
      %v484 = vsel %vm461, %v482, %v483
      %v485 = vrot.slane %v412, 1
      %v486 = vsel %vm461, %v483, %v485
      %v487 = vrot.slane %v396, 1
      %v488 = vrot.slane %v307, 1
      %v489 = vsel %vm461, %v487, %v488
      %v490 = vrot.slane %v413, 1
      %v491 = vsel %vm461, %v488, %v490
      %v492 = vrot.slane %v397, 1
      %v493 = vrot.slane %v310, 1
      %v494 = vsel %vm461, %v492, %v493
      %v495 = vrot.slane %v414, 1
      %v496 = vsel %vm461, %v493, %v495
      %v497 = vrot.slane %v398, 1
      %v498 = vrot.slane %v313, 1
      %v499 = vsel %vm461, %v497, %v498
      %v500 = vrot.slane %v415, 1
      %v501 = vsel %vm461, %v498, %v500
      %v502 = vrot.slane %v399, 1
      %v503 = vrot.slane %v316, 1
      %v504 = vsel %vm461, %v502, %v503
      %v505 = vrot.slane %v416, 1
      %v506 = vsel %vm461, %v503, %v505
      %v507 = vrot.slane %v400, 1
      %v508 = vrot.slane %v319, 1
      %v509 = vsel %vm461, %v507, %v508
      %v510 = vrot.slane %v417, 1
      %v511 = vsel %vm461, %v508, %v510
      %v512 = vrot.slane %v401, 1
      %v513 = vrot.slane %v322, 1
      %v514 = vsel %vm461, %v512, %v513
      %v515 = vrot.slane %v418, 1
      %v516 = vsel %vm461, %v513, %v515
      %v517 = vrot.slane %v402, 1
      %v518 = vrot.slane %v325, 1
      %v519 = vsel %vm461, %v517, %v518
      %v520 = vrot.slane %v419, 1
      %v521 = vsel %vm461, %v518, %v520
      %v522 = vrot.slane %v403, 1
      %v523 = vrot.slane %v328, 1
      %v524 = vsel %vm461, %v522, %v523
      %v525 = vrot.slane %v420, 1
      %v526 = vsel %vm461, %v523, %v525
      %v527 = vrot.slane %v404, 1
      %v528 = vrot.slane %v331, 1
      %v529 = vsel %vm461, %v527, %v528
      %v530 = vrot.slane %v421, 1
      %v531 = vsel %vm461, %v528, %v530
      %v532 = vrot.slane %v405, 1
      %v533 = vrot.slane %v334, 1
      %v534 = vsel %vm461, %v532, %v533
      %v535 = vrot.slane %v422, 1
      %v536 = vsel %vm461, %v533, %v535
      %v537 = vrot.slane %v406, 1
      %v538 = vrot.slane %v337, 1
      %v539 = vsel %vm461, %v537, %v538
      %v540 = vrot.slane %v423, 1
      %v541 = vsel %vm461, %v538, %v540
      %v542 = vrot.slane %v407, 1
      %v543 = vrot.slane %v340, 1
      %v544 = vsel %vm461, %v542, %v543
      %v545 = vrot.slane %v424, 1
      %v546 = vsel %vm461, %v543, %v545
      %547 = vrot.lane.b32.xlu0 %v464, 4
      %v548 = vpop.permute.xlu0 %547
      %549 = vrot.lane.b32.xlu0 %v466, 4
      %v550 = vpop.permute.xlu0 %549
      %551 = vrot.lane.b32.xlu0 %v465, 4
      %v552 = vpop.permute.xlu0 %551
      %553 = vrot.lane.b32.xlu0 %v469, 4
      %v554 = vpop.permute.xlu0 %553
      %555 = vrot.lane.b32.xlu0 %v471, 4
      %v556 = vpop.permute.xlu0 %555
      %557 = vrot.lane.b32.xlu0 %v470, 4
      %v558 = vpop.permute.xlu0 %557
      %559 = vrot.lane.b32.xlu0 %v474, 4
      %v560 = vpop.permute.xlu0 %559
      %561 = vrot.lane.b32.xlu0 %v476, 4
      %v562 = vpop.permute.xlu0 %561
      %563 = vrot.lane.b32.xlu0 %v475, 4
      %v564 = vpop.permute.xlu0 %563
      %565 = vrot.lane.b32.xlu0 %v479, 4
      %v566 = vpop.permute.xlu0 %565
      %567 = vrot.lane.b32.xlu0 %v481, 4
      %v568 = vpop.permute.xlu0 %567
      %569 = vrot.lane.b32.xlu0 %v480, 4
      %v570 = vpop.permute.xlu0 %569
      %571 = vrot.lane.b32.xlu0 %v484, 4
      %v572 = vpop.permute.xlu0 %571
      %573 = vrot.lane.b32.xlu0 %v486, 4
      %v574 = vpop.permute.xlu0 %573
      %575 = vrot.lane.b32.xlu0 %v485, 4
      %v576 = vpop.permute.xlu0 %575
      %577 = vrot.lane.b32.xlu0 %v489, 4
      %v578 = vpop.permute.xlu0 %577
      %579 = vrot.lane.b32.xlu0 %v491, 4
      %v580 = vpop.permute.xlu0 %579
      %581 = vrot.lane.b32.xlu0 %v490, 4
      %v582 = vpop.permute.xlu0 %581
      %583 = vrot.lane.b32.xlu0 %v494, 4
      %v584 = vpop.permute.xlu0 %583
      %585 = vrot.lane.b32.xlu0 %v496, 4
      %v586 = vpop.permute.xlu0 %585
      %587 = vrot.lane.b32.xlu0 %v495, 4
      %v588 = vpop.permute.xlu0 %587
      %589 = vrot.lane.b32.xlu0 %v499, 4
      %v590 = vpop.permute.xlu0 %589
      %591 = vrot.lane.b32.xlu0 %v501, 4
      %v592 = vpop.permute.xlu0 %591
      %593 = vrot.lane.b32.xlu0 %v500, 4
      %v594 = vpop.permute.xlu0 %593
      %595 = vrot.lane.b32.xlu0 %v504, 4
      %v596 = vpop.permute.xlu0 %595
      %597 = vrot.lane.b32.xlu0 %v506, 4
      %v598 = vpop.permute.xlu0 %597
      %599 = vrot.lane.b32.xlu0 %v505, 4
      %v600 = vpop.permute.xlu0 %599
      %601 = vrot.lane.b32.xlu0 %v509, 4
      %v602 = vpop.permute.xlu0 %601
      %603 = vrot.lane.b32.xlu0 %v511, 4
      %v604 = vpop.permute.xlu0 %603
      %605 = vrot.lane.b32.xlu0 %v510, 4
      %v606 = vpop.permute.xlu0 %605
      %607 = vrot.lane.b32.xlu0 %v514, 4
      %v608 = vpop.permute.xlu0 %607
      %609 = vrot.lane.b32.xlu0 %v516, 4
      %v610 = vpop.permute.xlu0 %609
      %611 = vrot.lane.b32.xlu0 %v515, 4
      %v612 = vpop.permute.xlu0 %611
      %613 = vrot.lane.b32.xlu0 %v519, 4
      %v614 = vpop.permute.xlu0 %613
      %615 = vrot.lane.b32.xlu0 %v521, 4
      %v616 = vpop.permute.xlu0 %615
      %617 = vrot.lane.b32.xlu0 %v520, 4
      %v618 = vpop.permute.xlu0 %617
      %619 = vrot.lane.b32.xlu0 %v524, 4
      %v620 = vpop.permute.xlu0 %619
      %621 = vrot.lane.b32.xlu0 %v526, 4
      %v622 = vpop.permute.xlu0 %621
      %623 = vrot.lane.b32.xlu0 %v525, 4
      %v624 = vpop.permute.xlu0 %623
      %625 = vrot.lane.b32.xlu0 %v529, 4
      %v626 = vpop.permute.xlu0 %625
      %627 = vrot.lane.b32.xlu0 %v531, 4
      %v628 = vpop.permute.xlu0 %627
      %629 = vrot.lane.b32.xlu0 %v530, 4
      %v630 = vpop.permute.xlu0 %629
      %631 = vrot.lane.b32.xlu0 %v534, 4
      %v632 = vpop.permute.xlu0 %631
      %633 = vrot.lane.b32.xlu0 %v536, 4
      %v634 = vpop.permute.xlu0 %633
      %635 = vrot.lane.b32.xlu0 %v535, 4
      %v636 = vpop.permute.xlu0 %635
      %637 = vrot.lane.b32.xlu0 %v539, 4
      %v638 = vpop.permute.xlu0 %637
      %639 = vrot.lane.b32.xlu0 %v541, 4
      %v640 = vpop.permute.xlu0 %639
      %641 = vrot.lane.b32.xlu0 %v540, 4
      %v642 = vpop.permute.xlu0 %641
      %643 = vrot.lane.b32.xlu0 %v544, 4
      %v644 = vpop.permute.xlu0 %643
      %645 = vrot.lane.b32.xlu0 %v546, 4
      %v646 = vpop.permute.xlu0 %645
      %647 = vrot.lane.b32.xlu0 %v545, 4
      %v648 = vpop.permute.xlu0 %647
      %vm700 = vcmask 1045504
      %v701 = vrot.slane %v391, 2
      %v702 = vrot.slane %v292, 2
      %v703 = vsel %vm700, %v701, %v702
      %v704 = vrot.slane %v408, 2
      %v705 = vsel %vm700, %v702, %v704
      %v706 = vrot.slane %v392, 2
      %v707 = vrot.slane %v295, 2
      %v708 = vsel %vm700, %v706, %v707
      %v709 = vrot.slane %v409, 2
      %v710 = vsel %vm700, %v707, %v709
      %v711 = vrot.slane %v393, 2
      %v712 = vrot.slane %v298, 2
      %v713 = vsel %vm700, %v711, %v712
      %v714 = vrot.slane %v410, 2
      %v715 = vsel %vm700, %v712, %v714
      %v716 = vrot.slane %v394, 2
      %v717 = vrot.slane %v301, 2
      %v718 = vsel %vm700, %v716, %v717
      %v719 = vrot.slane %v411, 2
      %v720 = vsel %vm700, %v717, %v719
      %v721 = vrot.slane %v395, 2
      %v722 = vrot.slane %v304, 2
      %v723 = vsel %vm700, %v721, %v722
      %v724 = vrot.slane %v412, 2
      %v725 = vsel %vm700, %v722, %v724
      %v726 = vrot.slane %v396, 2
      %v727 = vrot.slane %v307, 2
      %v728 = vsel %vm700, %v726, %v727
      %v729 = vrot.slane %v413, 2
      %v730 = vsel %vm700, %v727, %v729
      %v731 = vrot.slane %v397, 2
      %v732 = vrot.slane %v310, 2
      %v733 = vsel %vm700, %v731, %v732
      %v734 = vrot.slane %v414, 2
      %v735 = vsel %vm700, %v732, %v734
      %v736 = vrot.slane %v398, 2
      %v737 = vrot.slane %v313, 2
      %v738 = vsel %vm700, %v736, %v737
      %v739 = vrot.slane %v415, 2
      %v740 = vsel %vm700, %v737, %v739
      %v741 = vrot.slane %v399, 2
      %v742 = vrot.slane %v316, 2
      %v743 = vsel %vm700, %v741, %v742
      %v744 = vrot.slane %v416, 2
      %v745 = vsel %vm700, %v742, %v744
      %v746 = vrot.slane %v400, 2
      %v747 = vrot.slane %v319, 2
      %v748 = vsel %vm700, %v746, %v747
      %v749 = vrot.slane %v417, 2
      %v750 = vsel %vm700, %v747, %v749
      %v751 = vrot.slane %v401, 2
      %v752 = vrot.slane %v322, 2
      %v753 = vsel %vm700, %v751, %v752
      %v754 = vrot.slane %v418, 2
      %v755 = vsel %vm700, %v752, %v754
      %v756 = vrot.slane %v402, 2
      %v757 = vrot.slane %v325, 2
      %v758 = vsel %vm700, %v756, %v757
      %v759 = vrot.slane %v419, 2
      %v760 = vsel %vm700, %v757, %v759
      %v761 = vrot.slane %v403, 2
      %v762 = vrot.slane %v328, 2
      %v763 = vsel %vm700, %v761, %v762
      %v764 = vrot.slane %v420, 2
      %v765 = vsel %vm700, %v762, %v764
      %v766 = vrot.slane %v404, 2
      %v767 = vrot.slane %v331, 2
      %v768 = vsel %vm700, %v766, %v767
      %v769 = vrot.slane %v421, 2
      %v770 = vsel %vm700, %v767, %v769
      %v771 = vrot.slane %v405, 2
      %v772 = vrot.slane %v334, 2
      %v773 = vsel %vm700, %v771, %v772
      %v774 = vrot.slane %v422, 2
      %v775 = vsel %vm700, %v772, %v774
      %v776 = vrot.slane %v406, 2
      %v777 = vrot.slane %v337, 2
      %v778 = vsel %vm700, %v776, %v777
      %v779 = vrot.slane %v423, 2
      %v780 = vsel %vm700, %v777, %v779
      %v781 = vrot.slane %v407, 2
      %v782 = vrot.slane %v340, 2
      %v783 = vsel %vm700, %v781, %v782
      %v784 = vrot.slane %v424, 2
      %v785 = vsel %vm700, %v782, %v784
      %786 = vrot.lane.b32.xlu0 %v703, 8
      %v787 = vpop.permute.xlu0 %786
      %788 = vrot.lane.b32.xlu0 %v705, 8
      %v789 = vpop.permute.xlu0 %788
      %790 = vrot.lane.b32.xlu0 %v704, 8
      %v791 = vpop.permute.xlu0 %790
      %792 = vrot.lane.b32.xlu0 %v708, 8
      %v793 = vpop.permute.xlu0 %792
      %794 = vrot.lane.b32.xlu0 %v710, 8
      %v795 = vpop.permute.xlu0 %794
      %796 = vrot.lane.b32.xlu0 %v709, 8
      %v797 = vpop.permute.xlu0 %796
      %798 = vrot.lane.b32.xlu0 %v713, 8
      %v799 = vpop.permute.xlu0 %798
      %800 = vrot.lane.b32.xlu0 %v715, 8
      %v801 = vpop.permute.xlu0 %800
      %802 = vrot.lane.b32.xlu0 %v714, 8
      %v803 = vpop.permute.xlu0 %802
      %804 = vrot.lane.b32.xlu0 %v718, 8
      %v805 = vpop.permute.xlu0 %804
      %806 = vrot.lane.b32.xlu0 %v720, 8
      %v807 = vpop.permute.xlu0 %806
      %808 = vrot.lane.b32.xlu0 %v719, 8
      %v809 = vpop.permute.xlu0 %808
      %810 = vrot.lane.b32.xlu0 %v723, 8
      %v811 = vpop.permute.xlu0 %810
      %812 = vrot.lane.b32.xlu0 %v725, 8
      %v813 = vpop.permute.xlu0 %812
      %814 = vrot.lane.b32.xlu0 %v724, 8
      %v815 = vpop.permute.xlu0 %814
      %816 = vrot.lane.b32.xlu0 %v728, 8
      %v817 = vpop.permute.xlu0 %816
      %818 = vrot.lane.b32.xlu0 %v730, 8
      %v819 = vpop.permute.xlu0 %818
      %820 = vrot.lane.b32.xlu0 %v729, 8
      %v821 = vpop.permute.xlu0 %820
      %822 = vrot.lane.b32.xlu0 %v733, 8
      %v823 = vpop.permute.xlu0 %822
      %824 = vrot.lane.b32.xlu0 %v735, 8
      %v825 = vpop.permute.xlu0 %824
      %826 = vrot.lane.b32.xlu0 %v734, 8
      %v827 = vpop.permute.xlu0 %826
      %828 = vrot.lane.b32.xlu0 %v738, 8
      %v829 = vpop.permute.xlu0 %828
      %830 = vrot.lane.b32.xlu0 %v740, 8
      %v831 = vpop.permute.xlu0 %830
      %832 = vrot.lane.b32.xlu0 %v739, 8
      %v833 = vpop.permute.xlu0 %832
      %834 = vrot.lane.b32.xlu0 %v743, 8
      %v835 = vpop.permute.xlu0 %834
      %836 = vrot.lane.b32.xlu0 %v745, 8
      %v837 = vpop.permute.xlu0 %836
      %838 = vrot.lane.b32.xlu0 %v744, 8
      %v839 = vpop.permute.xlu0 %838
      %840 = vrot.lane.b32.xlu0 %v748, 8
      %v841 = vpop.permute.xlu0 %840
      %842 = vrot.lane.b32.xlu0 %v750, 8
      %v843 = vpop.permute.xlu0 %842
      %844 = vrot.lane.b32.xlu0 %v749, 8
      %v845 = vpop.permute.xlu0 %844
      %846 = vrot.lane.b32.xlu0 %v753, 8
      %v847 = vpop.permute.xlu0 %846
      %848 = vrot.lane.b32.xlu0 %v755, 8
      %v849 = vpop.permute.xlu0 %848
      %850 = vrot.lane.b32.xlu0 %v754, 8
      %v851 = vpop.permute.xlu0 %850
      %852 = vrot.lane.b32.xlu0 %v758, 8
      %v853 = vpop.permute.xlu0 %852
      %854 = vrot.lane.b32.xlu0 %v760, 8
      %v855 = vpop.permute.xlu0 %854
      %856 = vrot.lane.b32.xlu0 %v759, 8
      %v857 = vpop.permute.xlu0 %856
      %858 = vrot.lane.b32.xlu0 %v763, 8
      %v859 = vpop.permute.xlu0 %858
      %860 = vrot.lane.b32.xlu0 %v765, 8
      %v861 = vpop.permute.xlu0 %860
      %862 = vrot.lane.b32.xlu0 %v764, 8
      %v863 = vpop.permute.xlu0 %862
      %864 = vrot.lane.b32.xlu0 %v768, 8
      %v865 = vpop.permute.xlu0 %864
      %866 = vrot.lane.b32.xlu0 %v770, 8
      %v867 = vpop.permute.xlu0 %866
      %868 = vrot.lane.b32.xlu0 %v769, 8
      %v869 = vpop.permute.xlu0 %868
      %870 = vrot.lane.b32.xlu0 %v773, 8
      %v871 = vpop.permute.xlu0 %870
      %872 = vrot.lane.b32.xlu0 %v775, 8
      %v873 = vpop.permute.xlu0 %872
      %874 = vrot.lane.b32.xlu0 %v774, 8
      %v875 = vpop.permute.xlu0 %874
      %876 = vrot.lane.b32.xlu0 %v778, 8
      %v877 = vpop.permute.xlu0 %876
      %878 = vrot.lane.b32.xlu0 %v780, 8
      %v879 = vpop.permute.xlu0 %878
      %880 = vrot.lane.b32.xlu0 %v779, 8
      %v881 = vpop.permute.xlu0 %880
      %882 = vrot.lane.b32.xlu0 %v783, 8
      %v883 = vpop.permute.xlu0 %882
      %884 = vrot.lane.b32.xlu0 %v785, 8
      %v885 = vpop.permute.xlu0 %884
      %886 = vrot.lane.b32.xlu0 %v784, 8
      %v887 = vpop.permute.xlu0 %886
      %939 = vrot.lane.b32.xlu0 %v391, 12
      %v940 = vpop.permute.xlu0 %939
      %941 = vrot.lane.b32.xlu0 %v292, 12
      %v942 = vpop.permute.xlu0 %941
      %943 = vrot.lane.b32.xlu0 %v408, 12
      %v944 = vpop.permute.xlu0 %943
      %945 = vrot.lane.b32.xlu0 %v392, 12
      %v946 = vpop.permute.xlu0 %945
      %947 = vrot.lane.b32.xlu0 %v295, 12
      %v948 = vpop.permute.xlu0 %947
      %949 = vrot.lane.b32.xlu0 %v409, 12
      %v950 = vpop.permute.xlu0 %949
      %951 = vrot.lane.b32.xlu0 %v393, 12
      %v952 = vpop.permute.xlu0 %951
      %953 = vrot.lane.b32.xlu0 %v298, 12
      %v954 = vpop.permute.xlu0 %953
      %955 = vrot.lane.b32.xlu0 %v410, 12
      %v956 = vpop.permute.xlu0 %955
      %957 = vrot.lane.b32.xlu0 %v394, 12
      %v958 = vpop.permute.xlu0 %957
      %959 = vrot.lane.b32.xlu0 %v301, 12
      %v960 = vpop.permute.xlu0 %959
      %961 = vrot.lane.b32.xlu0 %v411, 12
      %v962 = vpop.permute.xlu0 %961
      %963 = vrot.lane.b32.xlu0 %v395, 12
      %v964 = vpop.permute.xlu0 %963
      %965 = vrot.lane.b32.xlu0 %v304, 12
      %v966 = vpop.permute.xlu0 %965
      %967 = vrot.lane.b32.xlu0 %v412, 12
      %v968 = vpop.permute.xlu0 %967
      %969 = vrot.lane.b32.xlu0 %v396, 12
      %v970 = vpop.permute.xlu0 %969
      %971 = vrot.lane.b32.xlu0 %v307, 12
      %v972 = vpop.permute.xlu0 %971
      %973 = vrot.lane.b32.xlu0 %v413, 12
      %v974 = vpop.permute.xlu0 %973
      %975 = vrot.lane.b32.xlu0 %v397, 12
      %v976 = vpop.permute.xlu0 %975
      %977 = vrot.lane.b32.xlu0 %v310, 12
      %v978 = vpop.permute.xlu0 %977
      %979 = vrot.lane.b32.xlu0 %v414, 12
      %v980 = vpop.permute.xlu0 %979
      %981 = vrot.lane.b32.xlu0 %v398, 12
      %v982 = vpop.permute.xlu0 %981
      %983 = vrot.lane.b32.xlu0 %v313, 12
      %v984 = vpop.permute.xlu0 %983
      %985 = vrot.lane.b32.xlu0 %v415, 12
      %v986 = vpop.permute.xlu0 %985
      %987 = vrot.lane.b32.xlu0 %v399, 12
      %v988 = vpop.permute.xlu0 %987
      %989 = vrot.lane.b32.xlu0 %v316, 12
      %v990 = vpop.permute.xlu0 %989
      %991 = vrot.lane.b32.xlu0 %v416, 12
      %v992 = vpop.permute.xlu0 %991
      %993 = vrot.lane.b32.xlu0 %v400, 12
      %v994 = vpop.permute.xlu0 %993
      %995 = vrot.lane.b32.xlu0 %v319, 12
      %v996 = vpop.permute.xlu0 %995
      %997 = vrot.lane.b32.xlu0 %v417, 12
      %v998 = vpop.permute.xlu0 %997
      %999 = vrot.lane.b32.xlu0 %v401, 12
      %v1000 = vpop.permute.xlu0 %999
      %1001 = vrot.lane.b32.xlu0 %v322, 12
      %v1002 = vpop.permute.xlu0 %1001
      %1003 = vrot.lane.b32.xlu0 %v418, 12
      %v1004 = vpop.permute.xlu0 %1003
      %1005 = vrot.lane.b32.xlu0 %v402, 12
      %v1006 = vpop.permute.xlu0 %1005
      %1007 = vrot.lane.b32.xlu0 %v325, 12
      %v1008 = vpop.permute.xlu0 %1007
      %1009 = vrot.lane.b32.xlu0 %v419, 12
      %v1010 = vpop.permute.xlu0 %1009
      %1011 = vrot.lane.b32.xlu0 %v403, 12
      %v1012 = vpop.permute.xlu0 %1011
      %1013 = vrot.lane.b32.xlu0 %v328, 12
      %v1014 = vpop.permute.xlu0 %1013
      %1015 = vrot.lane.b32.xlu0 %v420, 12
      %v1016 = vpop.permute.xlu0 %1015
      %1017 = vrot.lane.b32.xlu0 %v404, 12
      %v1018 = vpop.permute.xlu0 %1017
      %1019 = vrot.lane.b32.xlu0 %v331, 12
      %v1020 = vpop.permute.xlu0 %1019
      %1021 = vrot.lane.b32.xlu0 %v421, 12
      %v1022 = vpop.permute.xlu0 %1021
      %1023 = vrot.lane.b32.xlu0 %v405, 12
      %v1024 = vpop.permute.xlu0 %1023
      %1025 = vrot.lane.b32.xlu0 %v334, 12
      %v1026 = vpop.permute.xlu0 %1025
      %1027 = vrot.lane.b32.xlu0 %v422, 12
      %v1028 = vpop.permute.xlu0 %1027
      %1029 = vrot.lane.b32.xlu0 %v406, 12
      %v1030 = vpop.permute.xlu0 %1029
      %1031 = vrot.lane.b32.xlu0 %v337, 12
      %v1032 = vpop.permute.xlu0 %1031
      %1033 = vrot.lane.b32.xlu0 %v423, 12
      %v1034 = vpop.permute.xlu0 %1033
      %1035 = vrot.lane.b32.xlu0 %v407, 12
      %v1036 = vpop.permute.xlu0 %1035
      %1037 = vrot.lane.b32.xlu0 %v340, 12
      %v1038 = vpop.permute.xlu0 %1037
      %1039 = vrot.lane.b32.xlu0 %v424, 12
      %v1040 = vpop.permute.xlu0 %1039
      %1092 = vrot.lane.b32.xlu0 %v464, 16
      %v1093 = vpop.permute.xlu0 %1092
      %1094 = vrot.lane.b32.xlu0 %v466, 16
      %v1095 = vpop.permute.xlu0 %1094
      %1096 = vrot.lane.b32.xlu0 %v465, 16
      %v1097 = vpop.permute.xlu0 %1096
      %1098 = vrot.lane.b32.xlu0 %v469, 16
      %v1099 = vpop.permute.xlu0 %1098
      %1100 = vrot.lane.b32.xlu0 %v471, 16
      %v1101 = vpop.permute.xlu0 %1100
      %1102 = vrot.lane.b32.xlu0 %v470, 16
      %v1103 = vpop.permute.xlu0 %1102
      %1104 = vrot.lane.b32.xlu0 %v474, 16
      %v1105 = vpop.permute.xlu0 %1104
      %1106 = vrot.lane.b32.xlu0 %v476, 16
      %v1107 = vpop.permute.xlu0 %1106
      %1108 = vrot.lane.b32.xlu0 %v475, 16
      %v1109 = vpop.permute.xlu0 %1108
      %1110 = vrot.lane.b32.xlu0 %v479, 16
      %v1111 = vpop.permute.xlu0 %1110
      %1112 = vrot.lane.b32.xlu0 %v481, 16
      %v1113 = vpop.permute.xlu0 %1112
      %1114 = vrot.lane.b32.xlu0 %v480, 16
      %v1115 = vpop.permute.xlu0 %1114
      %1116 = vrot.lane.b32.xlu0 %v484, 16
      %v1117 = vpop.permute.xlu0 %1116
      %1118 = vrot.lane.b32.xlu0 %v486, 16
      %v1119 = vpop.permute.xlu0 %1118
      %1120 = vrot.lane.b32.xlu0 %v485, 16
      %v1121 = vpop.permute.xlu0 %1120
      %1122 = vrot.lane.b32.xlu0 %v489, 16
      %v1123 = vpop.permute.xlu0 %1122
      %1124 = vrot.lane.b32.xlu0 %v491, 16
      %v1125 = vpop.permute.xlu0 %1124
      %1126 = vrot.lane.b32.xlu0 %v490, 16
      %v1127 = vpop.permute.xlu0 %1126
      %1128 = vrot.lane.b32.xlu0 %v494, 16
      %v1129 = vpop.permute.xlu0 %1128
      %1130 = vrot.lane.b32.xlu0 %v496, 16
      %v1131 = vpop.permute.xlu0 %1130
      %1132 = vrot.lane.b32.xlu0 %v495, 16
      %v1133 = vpop.permute.xlu0 %1132
      %1134 = vrot.lane.b32.xlu0 %v499, 16
      %v1135 = vpop.permute.xlu0 %1134
      %1136 = vrot.lane.b32.xlu0 %v501, 16
      %v1137 = vpop.permute.xlu0 %1136
      %1138 = vrot.lane.b32.xlu0 %v500, 16
      %v1139 = vpop.permute.xlu0 %1138
      %1140 = vrot.lane.b32.xlu0 %v504, 16
      %v1141 = vpop.permute.xlu0 %1140
      %1142 = vrot.lane.b32.xlu0 %v506, 16
      %v1143 = vpop.permute.xlu0 %1142
      %1144 = vrot.lane.b32.xlu0 %v505, 16
      %v1145 = vpop.permute.xlu0 %1144
      %1146 = vrot.lane.b32.xlu0 %v509, 16
      %v1147 = vpop.permute.xlu0 %1146
      %1148 = vrot.lane.b32.xlu0 %v511, 16
      %v1149 = vpop.permute.xlu0 %1148
      %1150 = vrot.lane.b32.xlu0 %v510, 16
      %v1151 = vpop.permute.xlu0 %1150
      %1152 = vrot.lane.b32.xlu0 %v514, 16
      %v1153 = vpop.permute.xlu0 %1152
      %1154 = vrot.lane.b32.xlu0 %v516, 16
      %v1155 = vpop.permute.xlu0 %1154
      %1156 = vrot.lane.b32.xlu0 %v515, 16
      %v1157 = vpop.permute.xlu0 %1156
      %1158 = vrot.lane.b32.xlu0 %v519, 16
      %v1159 = vpop.permute.xlu0 %1158
      %1160 = vrot.lane.b32.xlu0 %v521, 16
      %v1161 = vpop.permute.xlu0 %1160
      %1162 = vrot.lane.b32.xlu0 %v520, 16
      %v1163 = vpop.permute.xlu0 %1162
      %1164 = vrot.lane.b32.xlu0 %v524, 16
      %v1165 = vpop.permute.xlu0 %1164
      %1166 = vrot.lane.b32.xlu0 %v526, 16
      %v1167 = vpop.permute.xlu0 %1166
      %1168 = vrot.lane.b32.xlu0 %v525, 16
      %v1169 = vpop.permute.xlu0 %1168
      %1170 = vrot.lane.b32.xlu0 %v529, 16
      %v1171 = vpop.permute.xlu0 %1170
      %1172 = vrot.lane.b32.xlu0 %v531, 16
      %v1173 = vpop.permute.xlu0 %1172
      %1174 = vrot.lane.b32.xlu0 %v530, 16
      %v1175 = vpop.permute.xlu0 %1174
      %1176 = vrot.lane.b32.xlu0 %v534, 16
      %v1177 = vpop.permute.xlu0 %1176
      %1178 = vrot.lane.b32.xlu0 %v536, 16
      %v1179 = vpop.permute.xlu0 %1178
      %1180 = vrot.lane.b32.xlu0 %v535, 16
      %v1181 = vpop.permute.xlu0 %1180
      %1182 = vrot.lane.b32.xlu0 %v539, 16
      %v1183 = vpop.permute.xlu0 %1182
      %1184 = vrot.lane.b32.xlu0 %v541, 16
      %v1185 = vpop.permute.xlu0 %1184
      %1186 = vrot.lane.b32.xlu0 %v540, 16
      %v1187 = vpop.permute.xlu0 %1186
      %1188 = vrot.lane.b32.xlu0 %v544, 16
      %v1189 = vpop.permute.xlu0 %1188
      %1190 = vrot.lane.b32.xlu0 %v546, 16
      %v1191 = vpop.permute.xlu0 %1190
      %1192 = vrot.lane.b32.xlu0 %v545, 16
      %v1193 = vpop.permute.xlu0 %1192
      %1245 = vrot.lane.b32.xlu0 %v703, 20
      %v1246 = vpop.permute.xlu0 %1245
      %1247 = vrot.lane.b32.xlu0 %v705, 20
      %v1248 = vpop.permute.xlu0 %1247
      %1249 = vrot.lane.b32.xlu0 %v704, 20
      %v1250 = vpop.permute.xlu0 %1249
      %1251 = vrot.lane.b32.xlu0 %v708, 20
      %v1252 = vpop.permute.xlu0 %1251
      %1253 = vrot.lane.b32.xlu0 %v710, 20
      %v1254 = vpop.permute.xlu0 %1253
      %1255 = vrot.lane.b32.xlu0 %v709, 20
      %v1256 = vpop.permute.xlu0 %1255
      %1257 = vrot.lane.b32.xlu0 %v713, 20
      %v1258 = vpop.permute.xlu0 %1257
      %1259 = vrot.lane.b32.xlu0 %v715, 20
      %v1260 = vpop.permute.xlu0 %1259
      %1261 = vrot.lane.b32.xlu0 %v714, 20
      %v1262 = vpop.permute.xlu0 %1261
      %1263 = vrot.lane.b32.xlu0 %v718, 20
      %v1264 = vpop.permute.xlu0 %1263
      %1265 = vrot.lane.b32.xlu0 %v720, 20
      %v1266 = vpop.permute.xlu0 %1265
      %1267 = vrot.lane.b32.xlu0 %v719, 20
      %v1268 = vpop.permute.xlu0 %1267
      %1269 = vrot.lane.b32.xlu0 %v723, 20
      %v1270 = vpop.permute.xlu0 %1269
      %1271 = vrot.lane.b32.xlu0 %v725, 20
      %v1272 = vpop.permute.xlu0 %1271
      %1273 = vrot.lane.b32.xlu0 %v724, 20
      %v1274 = vpop.permute.xlu0 %1273
      %1275 = vrot.lane.b32.xlu0 %v728, 20
      %v1276 = vpop.permute.xlu0 %1275
      %1277 = vrot.lane.b32.xlu0 %v730, 20
      %v1278 = vpop.permute.xlu0 %1277
      %1279 = vrot.lane.b32.xlu0 %v729, 20
      %v1280 = vpop.permute.xlu0 %1279
      %1281 = vrot.lane.b32.xlu0 %v733, 20
      %v1282 = vpop.permute.xlu0 %1281
      %1283 = vrot.lane.b32.xlu0 %v735, 20
      %v1284 = vpop.permute.xlu0 %1283
      %1285 = vrot.lane.b32.xlu0 %v734, 20
      %v1286 = vpop.permute.xlu0 %1285
      %1287 = vrot.lane.b32.xlu0 %v738, 20
      %v1288 = vpop.permute.xlu0 %1287
      %1289 = vrot.lane.b32.xlu0 %v740, 20
      %v1290 = vpop.permute.xlu0 %1289
      %1291 = vrot.lane.b32.xlu0 %v739, 20
      %v1292 = vpop.permute.xlu0 %1291
      %1293 = vrot.lane.b32.xlu0 %v743, 20
      %v1294 = vpop.permute.xlu0 %1293
      %1295 = vrot.lane.b32.xlu0 %v745, 20
      %v1296 = vpop.permute.xlu0 %1295
      %1297 = vrot.lane.b32.xlu0 %v744, 20
      %v1298 = vpop.permute.xlu0 %1297
      %1299 = vrot.lane.b32.xlu0 %v748, 20
      %v1300 = vpop.permute.xlu0 %1299
      %1301 = vrot.lane.b32.xlu0 %v750, 20
      %v1302 = vpop.permute.xlu0 %1301
      %1303 = vrot.lane.b32.xlu0 %v749, 20
      %v1304 = vpop.permute.xlu0 %1303
      %1305 = vrot.lane.b32.xlu0 %v753, 20
      %v1306 = vpop.permute.xlu0 %1305
      %1307 = vrot.lane.b32.xlu0 %v755, 20
      %v1308 = vpop.permute.xlu0 %1307
      %1309 = vrot.lane.b32.xlu0 %v754, 20
      %v1310 = vpop.permute.xlu0 %1309
      %1311 = vrot.lane.b32.xlu0 %v758, 20
      %v1312 = vpop.permute.xlu0 %1311
      %1313 = vrot.lane.b32.xlu0 %v760, 20
      %v1314 = vpop.permute.xlu0 %1313
      %1315 = vrot.lane.b32.xlu0 %v759, 20
      %v1316 = vpop.permute.xlu0 %1315
      %1317 = vrot.lane.b32.xlu0 %v763, 20
      %v1318 = vpop.permute.xlu0 %1317
      %1319 = vrot.lane.b32.xlu0 %v765, 20
      %v1320 = vpop.permute.xlu0 %1319
      %1321 = vrot.lane.b32.xlu0 %v764, 20
      %v1322 = vpop.permute.xlu0 %1321
      %1323 = vrot.lane.b32.xlu0 %v768, 20
      %v1324 = vpop.permute.xlu0 %1323
      %1325 = vrot.lane.b32.xlu0 %v770, 20
      %v1326 = vpop.permute.xlu0 %1325
      %1327 = vrot.lane.b32.xlu0 %v769, 20
      %v1328 = vpop.permute.xlu0 %1327
      %1329 = vrot.lane.b32.xlu0 %v773, 20
      %v1330 = vpop.permute.xlu0 %1329
      %1331 = vrot.lane.b32.xlu0 %v775, 20
      %v1332 = vpop.permute.xlu0 %1331
      %1333 = vrot.lane.b32.xlu0 %v774, 20
      %v1334 = vpop.permute.xlu0 %1333
      %1335 = vrot.lane.b32.xlu0 %v778, 20
      %v1336 = vpop.permute.xlu0 %1335
      %1337 = vrot.lane.b32.xlu0 %v780, 20
      %v1338 = vpop.permute.xlu0 %1337
      %1339 = vrot.lane.b32.xlu0 %v779, 20
      %v1340 = vpop.permute.xlu0 %1339
      %1341 = vrot.lane.b32.xlu0 %v783, 20
      %v1342 = vpop.permute.xlu0 %1341
      %1343 = vrot.lane.b32.xlu0 %v785, 20
      %v1344 = vpop.permute.xlu0 %1343
      %1345 = vrot.lane.b32.xlu0 %v784, 20
      %v1346 = vpop.permute.xlu0 %1345
      %1398 = vrot.lane.b32.xlu0 %v392, 24
      %v1399 = vpop.permute.xlu0 %1398
      %1400 = vrot.lane.b32.xlu0 %v295, 24
      %v1401 = vpop.permute.xlu0 %1400
      %1402 = vrot.lane.b32.xlu0 %v409, 24
      %v1403 = vpop.permute.xlu0 %1402
      %1404 = vrot.lane.b32.xlu0 %v393, 24
      %v1405 = vpop.permute.xlu0 %1404
      %1406 = vrot.lane.b32.xlu0 %v298, 24
      %v1407 = vpop.permute.xlu0 %1406
      %1408 = vrot.lane.b32.xlu0 %v410, 24
      %v1409 = vpop.permute.xlu0 %1408
      %1410 = vrot.lane.b32.xlu0 %v394, 24
      %v1411 = vpop.permute.xlu0 %1410
      %1412 = vrot.lane.b32.xlu0 %v301, 24
      %v1413 = vpop.permute.xlu0 %1412
      %1414 = vrot.lane.b32.xlu0 %v411, 24
      %v1415 = vpop.permute.xlu0 %1414
      %1416 = vrot.lane.b32.xlu0 %v395, 24
      %v1417 = vpop.permute.xlu0 %1416
      %1418 = vrot.lane.b32.xlu0 %v304, 24
      %v1419 = vpop.permute.xlu0 %1418
      %1420 = vrot.lane.b32.xlu0 %v412, 24
      %v1421 = vpop.permute.xlu0 %1420
      %1422 = vrot.lane.b32.xlu0 %v396, 24
      %v1423 = vpop.permute.xlu0 %1422
      %1424 = vrot.lane.b32.xlu0 %v307, 24
      %v1425 = vpop.permute.xlu0 %1424
      %1426 = vrot.lane.b32.xlu0 %v413, 24
      %v1427 = vpop.permute.xlu0 %1426
      %1428 = vrot.lane.b32.xlu0 %v397, 24
      %v1429 = vpop.permute.xlu0 %1428
      %1430 = vrot.lane.b32.xlu0 %v310, 24
      %v1431 = vpop.permute.xlu0 %1430
      %1432 = vrot.lane.b32.xlu0 %v414, 24
      %v1433 = vpop.permute.xlu0 %1432
      %1434 = vrot.lane.b32.xlu0 %v398, 24
      %v1435 = vpop.permute.xlu0 %1434
      %1436 = vrot.lane.b32.xlu0 %v313, 24
      %v1437 = vpop.permute.xlu0 %1436
      %1438 = vrot.lane.b32.xlu0 %v415, 24
      %v1439 = vpop.permute.xlu0 %1438
      %1440 = vrot.lane.b32.xlu0 %v399, 24
      %v1441 = vpop.permute.xlu0 %1440
      %1442 = vrot.lane.b32.xlu0 %v316, 24
      %v1443 = vpop.permute.xlu0 %1442
      %1444 = vrot.lane.b32.xlu0 %v416, 24
      %v1445 = vpop.permute.xlu0 %1444
      %1446 = vrot.lane.b32.xlu0 %v400, 24
      %v1447 = vpop.permute.xlu0 %1446
      %1448 = vrot.lane.b32.xlu0 %v319, 24
      %v1449 = vpop.permute.xlu0 %1448
      %1450 = vrot.lane.b32.xlu0 %v417, 24
      %v1451 = vpop.permute.xlu0 %1450
      %1452 = vrot.lane.b32.xlu0 %v401, 24
      %v1453 = vpop.permute.xlu0 %1452
      %1454 = vrot.lane.b32.xlu0 %v322, 24
      %v1455 = vpop.permute.xlu0 %1454
      %1456 = vrot.lane.b32.xlu0 %v418, 24
      %v1457 = vpop.permute.xlu0 %1456
      %1458 = vrot.lane.b32.xlu0 %v402, 24
      %v1459 = vpop.permute.xlu0 %1458
      %1460 = vrot.lane.b32.xlu0 %v325, 24
      %v1461 = vpop.permute.xlu0 %1460
      %1462 = vrot.lane.b32.xlu0 %v419, 24
      %v1463 = vpop.permute.xlu0 %1462
      %1464 = vrot.lane.b32.xlu0 %v403, 24
      %v1465 = vpop.permute.xlu0 %1464
      %1466 = vrot.lane.b32.xlu0 %v328, 24
      %v1467 = vpop.permute.xlu0 %1466
      %1468 = vrot.lane.b32.xlu0 %v420, 24
      %v1469 = vpop.permute.xlu0 %1468
      %1470 = vrot.lane.b32.xlu0 %v404, 24
      %v1471 = vpop.permute.xlu0 %1470
      %1472 = vrot.lane.b32.xlu0 %v331, 24
      %v1473 = vpop.permute.xlu0 %1472
      %1474 = vrot.lane.b32.xlu0 %v421, 24
      %v1475 = vpop.permute.xlu0 %1474
      %1476 = vrot.lane.b32.xlu0 %v405, 24
      %v1477 = vpop.permute.xlu0 %1476
      %1478 = vrot.lane.b32.xlu0 %v334, 24
      %v1479 = vpop.permute.xlu0 %1478
      %1480 = vrot.lane.b32.xlu0 %v422, 24
      %v1481 = vpop.permute.xlu0 %1480
      %1482 = vrot.lane.b32.xlu0 %v406, 24
      %v1483 = vpop.permute.xlu0 %1482
      %1484 = vrot.lane.b32.xlu0 %v337, 24
      %v1485 = vpop.permute.xlu0 %1484
      %1486 = vrot.lane.b32.xlu0 %v423, 24
      %v1487 = vpop.permute.xlu0 %1486
      %1488 = vrot.lane.b32.xlu0 %v407, 24
      %v1489 = vpop.permute.xlu0 %1488
      %1490 = vrot.lane.b32.xlu0 %v340, 24
      %v1491 = vpop.permute.xlu0 %1490
      %1492 = vrot.lane.b32.xlu0 %v424, 24
      %v1493 = vpop.permute.xlu0 %1492
      %1494 = vrot.lane.b32.xlu0 %v391, 24
      %v1495 = vpop.permute.xlu0 %1494
      %1496 = vrot.lane.b32.xlu0 %v292, 24
      %v1497 = vpop.permute.xlu0 %1496
      %1498 = vrot.lane.b32.xlu0 %v408, 24
      %v1499 = vpop.permute.xlu0 %1498
      %1551 = vrot.lane.b32.xlu0 %v469, 28
      %v1552 = vpop.permute.xlu0 %1551
      %1553 = vrot.lane.b32.xlu0 %v471, 28
      %v1554 = vpop.permute.xlu0 %1553
      %1555 = vrot.lane.b32.xlu0 %v470, 28
      %v1556 = vpop.permute.xlu0 %1555
      %1557 = vrot.lane.b32.xlu0 %v474, 28
      %v1558 = vpop.permute.xlu0 %1557
      %1559 = vrot.lane.b32.xlu0 %v476, 28
      %v1560 = vpop.permute.xlu0 %1559
      %1561 = vrot.lane.b32.xlu0 %v475, 28
      %v1562 = vpop.permute.xlu0 %1561
      %1563 = vrot.lane.b32.xlu0 %v479, 28
      %v1564 = vpop.permute.xlu0 %1563
      %1565 = vrot.lane.b32.xlu0 %v481, 28
      %v1566 = vpop.permute.xlu0 %1565
      %1567 = vrot.lane.b32.xlu0 %v480, 28
      %v1568 = vpop.permute.xlu0 %1567
      %1569 = vrot.lane.b32.xlu0 %v484, 28
      %v1570 = vpop.permute.xlu0 %1569
      %1571 = vrot.lane.b32.xlu0 %v486, 28
      %v1572 = vpop.permute.xlu0 %1571
      %1573 = vrot.lane.b32.xlu0 %v485, 28
      %v1574 = vpop.permute.xlu0 %1573
      %1575 = vrot.lane.b32.xlu0 %v489, 28
      %v1576 = vpop.permute.xlu0 %1575
      %1577 = vrot.lane.b32.xlu0 %v491, 28
      %v1578 = vpop.permute.xlu0 %1577
      %1579 = vrot.lane.b32.xlu0 %v490, 28
      %v1580 = vpop.permute.xlu0 %1579
      %1581 = vrot.lane.b32.xlu0 %v494, 28
      %v1582 = vpop.permute.xlu0 %1581
      %1583 = vrot.lane.b32.xlu0 %v496, 28
      %v1584 = vpop.permute.xlu0 %1583
      %1585 = vrot.lane.b32.xlu0 %v495, 28
      %v1586 = vpop.permute.xlu0 %1585
      %1587 = vrot.lane.b32.xlu0 %v499, 28
      %v1588 = vpop.permute.xlu0 %1587
      %1589 = vrot.lane.b32.xlu0 %v501, 28
      %v1590 = vpop.permute.xlu0 %1589
      %1591 = vrot.lane.b32.xlu0 %v500, 28
      %v1592 = vpop.permute.xlu0 %1591
      %1593 = vrot.lane.b32.xlu0 %v504, 28
      %v1594 = vpop.permute.xlu0 %1593
      %1595 = vrot.lane.b32.xlu0 %v506, 28
      %v1596 = vpop.permute.xlu0 %1595
      %1597 = vrot.lane.b32.xlu0 %v505, 28
      %v1598 = vpop.permute.xlu0 %1597
      %1599 = vrot.lane.b32.xlu0 %v509, 28
      %v1600 = vpop.permute.xlu0 %1599
      %1601 = vrot.lane.b32.xlu0 %v511, 28
      %v1602 = vpop.permute.xlu0 %1601
      %1603 = vrot.lane.b32.xlu0 %v510, 28
      %v1604 = vpop.permute.xlu0 %1603
      %1605 = vrot.lane.b32.xlu0 %v514, 28
      %v1606 = vpop.permute.xlu0 %1605
      %1607 = vrot.lane.b32.xlu0 %v516, 28
      %v1608 = vpop.permute.xlu0 %1607
      %1609 = vrot.lane.b32.xlu0 %v515, 28
      %v1610 = vpop.permute.xlu0 %1609
      %1611 = vrot.lane.b32.xlu0 %v519, 28
      %v1612 = vpop.permute.xlu0 %1611
      %1613 = vrot.lane.b32.xlu0 %v521, 28
      %v1614 = vpop.permute.xlu0 %1613
      %1615 = vrot.lane.b32.xlu0 %v520, 28
      %v1616 = vpop.permute.xlu0 %1615
      %1617 = vrot.lane.b32.xlu0 %v524, 28
      %v1618 = vpop.permute.xlu0 %1617
      %1619 = vrot.lane.b32.xlu0 %v526, 28
      %v1620 = vpop.permute.xlu0 %1619
      %1621 = vrot.lane.b32.xlu0 %v525, 28
      %v1622 = vpop.permute.xlu0 %1621
      %1623 = vrot.lane.b32.xlu0 %v529, 28
      %v1624 = vpop.permute.xlu0 %1623
      %1625 = vrot.lane.b32.xlu0 %v531, 28
      %v1626 = vpop.permute.xlu0 %1625
      %1627 = vrot.lane.b32.xlu0 %v530, 28
      %v1628 = vpop.permute.xlu0 %1627
      %1629 = vrot.lane.b32.xlu0 %v534, 28
      %v1630 = vpop.permute.xlu0 %1629
      %1631 = vrot.lane.b32.xlu0 %v536, 28
      %v1632 = vpop.permute.xlu0 %1631
      %1633 = vrot.lane.b32.xlu0 %v535, 28
      %v1634 = vpop.permute.xlu0 %1633
      %1635 = vrot.lane.b32.xlu0 %v539, 28
      %v1636 = vpop.permute.xlu0 %1635
      %1637 = vrot.lane.b32.xlu0 %v541, 28
      %v1638 = vpop.permute.xlu0 %1637
      %1639 = vrot.lane.b32.xlu0 %v540, 28
      %v1640 = vpop.permute.xlu0 %1639
      %1641 = vrot.lane.b32.xlu0 %v544, 28
      %v1642 = vpop.permute.xlu0 %1641
      %1643 = vrot.lane.b32.xlu0 %v546, 28
      %v1644 = vpop.permute.xlu0 %1643
      %1645 = vrot.lane.b32.xlu0 %v545, 28
      %v1646 = vpop.permute.xlu0 %1645
      %1647 = vrot.lane.b32.xlu0 %v464, 28
      %v1648 = vpop.permute.xlu0 %1647
      %1649 = vrot.lane.b32.xlu0 %v466, 28
      %v1650 = vpop.permute.xlu0 %1649
      %1651 = vrot.lane.b32.xlu0 %v465, 28
      %v1652 = vpop.permute.xlu0 %1651
      %1704 = vrot.lane.b32.xlu0 %v708, 32
      %v1705 = vpop.permute.xlu0 %1704
      %1706 = vrot.lane.b32.xlu0 %v710, 32
      %v1707 = vpop.permute.xlu0 %1706
      %1708 = vrot.lane.b32.xlu0 %v709, 32
      %v1709 = vpop.permute.xlu0 %1708
      %1710 = vrot.lane.b32.xlu0 %v713, 32
      %v1711 = vpop.permute.xlu0 %1710
      %1712 = vrot.lane.b32.xlu0 %v715, 32
      %v1713 = vpop.permute.xlu0 %1712
      %1714 = vrot.lane.b32.xlu0 %v714, 32
      %v1715 = vpop.permute.xlu0 %1714
      %1716 = vrot.lane.b32.xlu0 %v718, 32
      %v1717 = vpop.permute.xlu0 %1716
      %1718 = vrot.lane.b32.xlu0 %v720, 32
      %v1719 = vpop.permute.xlu0 %1718
      %1720 = vrot.lane.b32.xlu0 %v719, 32
      %v1721 = vpop.permute.xlu0 %1720
      %1722 = vrot.lane.b32.xlu0 %v723, 32
      %v1723 = vpop.permute.xlu0 %1722
      %1724 = vrot.lane.b32.xlu0 %v725, 32
      %v1725 = vpop.permute.xlu0 %1724
      %1726 = vrot.lane.b32.xlu0 %v724, 32
      %v1727 = vpop.permute.xlu0 %1726
      %1728 = vrot.lane.b32.xlu0 %v728, 32
      %v1729 = vpop.permute.xlu0 %1728
      %1730 = vrot.lane.b32.xlu0 %v730, 32
      %v1731 = vpop.permute.xlu0 %1730
      %1732 = vrot.lane.b32.xlu0 %v729, 32
      %v1733 = vpop.permute.xlu0 %1732
      %1734 = vrot.lane.b32.xlu0 %v733, 32
      %v1735 = vpop.permute.xlu0 %1734
      %1736 = vrot.lane.b32.xlu0 %v735, 32
      %v1737 = vpop.permute.xlu0 %1736
      %1738 = vrot.lane.b32.xlu0 %v734, 32
      %v1739 = vpop.permute.xlu0 %1738
      %1740 = vrot.lane.b32.xlu0 %v738, 32
      %v1741 = vpop.permute.xlu0 %1740
      %1742 = vrot.lane.b32.xlu0 %v740, 32
      %v1743 = vpop.permute.xlu0 %1742
      %1744 = vrot.lane.b32.xlu0 %v739, 32
      %v1745 = vpop.permute.xlu0 %1744
      %1746 = vrot.lane.b32.xlu0 %v743, 32
      %v1747 = vpop.permute.xlu0 %1746
      %1748 = vrot.lane.b32.xlu0 %v745, 32
      %v1749 = vpop.permute.xlu0 %1748
      %1750 = vrot.lane.b32.xlu0 %v744, 32
      %v1751 = vpop.permute.xlu0 %1750
      %1752 = vrot.lane.b32.xlu0 %v748, 32
      %v1753 = vpop.permute.xlu0 %1752
      %1754 = vrot.lane.b32.xlu0 %v750, 32
      %v1755 = vpop.permute.xlu0 %1754
      %1756 = vrot.lane.b32.xlu0 %v749, 32
      %v1757 = vpop.permute.xlu0 %1756
      %1758 = vrot.lane.b32.xlu0 %v753, 32
      %v1759 = vpop.permute.xlu0 %1758
      %1760 = vrot.lane.b32.xlu0 %v755, 32
      %v1761 = vpop.permute.xlu0 %1760
      %1762 = vrot.lane.b32.xlu0 %v754, 32
      %v1763 = vpop.permute.xlu0 %1762
      %1764 = vrot.lane.b32.xlu0 %v758, 32
      %v1765 = vpop.permute.xlu0 %1764
      %1766 = vrot.lane.b32.xlu0 %v760, 32
      %v1767 = vpop.permute.xlu0 %1766
      %1768 = vrot.lane.b32.xlu0 %v759, 32
      %v1769 = vpop.permute.xlu0 %1768
      %1770 = vrot.lane.b32.xlu0 %v763, 32
      %v1771 = vpop.permute.xlu0 %1770
      %1772 = vrot.lane.b32.xlu0 %v765, 32
      %v1773 = vpop.permute.xlu0 %1772
      %1774 = vrot.lane.b32.xlu0 %v764, 32
      %v1775 = vpop.permute.xlu0 %1774
      %1776 = vrot.lane.b32.xlu0 %v768, 32
      %v1777 = vpop.permute.xlu0 %1776
      %1778 = vrot.lane.b32.xlu0 %v770, 32
      %v1779 = vpop.permute.xlu0 %1778
      %1780 = vrot.lane.b32.xlu0 %v769, 32
      %v1781 = vpop.permute.xlu0 %1780
      %1782 = vrot.lane.b32.xlu0 %v773, 32
      %v1783 = vpop.permute.xlu0 %1782
      %1784 = vrot.lane.b32.xlu0 %v775, 32
      %v1785 = vpop.permute.xlu0 %1784
      %1786 = vrot.lane.b32.xlu0 %v774, 32
      %v1787 = vpop.permute.xlu0 %1786
      %1788 = vrot.lane.b32.xlu0 %v778, 32
      %v1789 = vpop.permute.xlu0 %1788
      %1790 = vrot.lane.b32.xlu0 %v780, 32
      %v1791 = vpop.permute.xlu0 %1790
      %1792 = vrot.lane.b32.xlu0 %v779, 32
      %v1793 = vpop.permute.xlu0 %1792
      %1794 = vrot.lane.b32.xlu0 %v783, 32
      %v1795 = vpop.permute.xlu0 %1794
      %1796 = vrot.lane.b32.xlu0 %v785, 32
      %v1797 = vpop.permute.xlu0 %1796
      %1798 = vrot.lane.b32.xlu0 %v784, 32
      %v1799 = vpop.permute.xlu0 %1798
      %1800 = vrot.lane.b32.xlu0 %v703, 32
      %v1801 = vpop.permute.xlu0 %1800
      %1802 = vrot.lane.b32.xlu0 %v705, 32
      %v1803 = vpop.permute.xlu0 %1802
      %1804 = vrot.lane.b32.xlu0 %v704, 32
      %v1805 = vpop.permute.xlu0 %1804
      %vm1857 = vcmask 31744
      %v1858 = vsel %vm1857, %v391, %v548
      %v1859 = vsel %vm1857, %v292, %v550
      %v1860 = vsel %vm1857, %v408, %v552
      %v1861 = vsel %vm1857, %v392, %v554
      %v1862 = vsel %vm1857, %v295, %v556
      %v1863 = vsel %vm1857, %v409, %v558
      %v1864 = vsel %vm1857, %v393, %v560
      %v1865 = vsel %vm1857, %v298, %v562
      %v1866 = vsel %vm1857, %v410, %v564
      %v1867 = vsel %vm1857, %v394, %v566
      %v1868 = vsel %vm1857, %v301, %v568
      %v1869 = vsel %vm1857, %v411, %v570
      %v1870 = vsel %vm1857, %v395, %v572
      %v1871 = vsel %vm1857, %v304, %v574
      %v1872 = vsel %vm1857, %v412, %v576
      %v1873 = vsel %vm1857, %v396, %v578
      %v1874 = vsel %vm1857, %v307, %v580
      %v1875 = vsel %vm1857, %v413, %v582
      %v1876 = vsel %vm1857, %v397, %v584
      %v1877 = vsel %vm1857, %v310, %v586
      %v1878 = vsel %vm1857, %v414, %v588
      %v1879 = vsel %vm1857, %v398, %v590
      %v1880 = vsel %vm1857, %v313, %v592
      %v1881 = vsel %vm1857, %v415, %v594
      %v1882 = vsel %vm1857, %v399, %v596
      %v1883 = vsel %vm1857, %v316, %v598
      %v1884 = vsel %vm1857, %v416, %v600
      %v1885 = vsel %vm1857, %v400, %v602
      %v1886 = vsel %vm1857, %v319, %v604
      %v1887 = vsel %vm1857, %v417, %v606
      %v1888 = vsel %vm1857, %v401, %v608
      %v1889 = vsel %vm1857, %v322, %v610
      %v1890 = vsel %vm1857, %v418, %v612
      %v1891 = vsel %vm1857, %v402, %v614
      %v1892 = vsel %vm1857, %v325, %v616
      %v1893 = vsel %vm1857, %v419, %v618
      %v1894 = vsel %vm1857, %v403, %v620
      %v1895 = vsel %vm1857, %v328, %v622
      %v1896 = vsel %vm1857, %v420, %v624
      %v1897 = vsel %vm1857, %v404, %v626
      %v1898 = vsel %vm1857, %v331, %v628
      %v1899 = vsel %vm1857, %v421, %v630
      %v1900 = vsel %vm1857, %v405, %v632
      %v1901 = vsel %vm1857, %v334, %v634
      %v1902 = vsel %vm1857, %v422, %v636
      %v1903 = vsel %vm1857, %v406, %v638
      %v1904 = vsel %vm1857, %v337, %v640
      %v1905 = vsel %vm1857, %v423, %v642
      %v1906 = vsel %vm1857, %v407, %v644
      %v1907 = vsel %vm1857, %v340, %v646
      %v1908 = vsel %vm1857, %v424, %v648
      %vm1909 = vcmask 64512
      %v1910 = vsel %vm1909, %v1858, %v787
      %v1911 = vsel %vm1909, %v1859, %v789
      %v1912 = vsel %vm1909, %v1860, %v791
      %v1913 = vsel %vm1909, %v1861, %v793
      %v1914 = vsel %vm1909, %v1862, %v795
      %v1915 = vsel %vm1909, %v1863, %v797
      %v1916 = vsel %vm1909, %v1864, %v799
      %v1917 = vsel %vm1909, %v1865, %v801
      %v1918 = vsel %vm1909, %v1866, %v803
      %v1919 = vsel %vm1909, %v1867, %v805
      %v1920 = vsel %vm1909, %v1868, %v807
      %v1921 = vsel %vm1909, %v1869, %v809
      %v1922 = vsel %vm1909, %v1870, %v811
      %v1923 = vsel %vm1909, %v1871, %v813
      %v1924 = vsel %vm1909, %v1872, %v815
      %v1925 = vsel %vm1909, %v1873, %v817
      %v1926 = vsel %vm1909, %v1874, %v819
      %v1927 = vsel %vm1909, %v1875, %v821
      %v1928 = vsel %vm1909, %v1876, %v823
      %v1929 = vsel %vm1909, %v1877, %v825
      %v1930 = vsel %vm1909, %v1878, %v827
      %v1931 = vsel %vm1909, %v1879, %v829
      %v1932 = vsel %vm1909, %v1880, %v831
      %v1933 = vsel %vm1909, %v1881, %v833
      %v1934 = vsel %vm1909, %v1882, %v835
      %v1935 = vsel %vm1909, %v1883, %v837
      %v1936 = vsel %vm1909, %v1884, %v839
      %v1937 = vsel %vm1909, %v1885, %v841
      %v1938 = vsel %vm1909, %v1886, %v843
      %v1939 = vsel %vm1909, %v1887, %v845
      %v1940 = vsel %vm1909, %v1888, %v847
      %v1941 = vsel %vm1909, %v1889, %v849
      %v1942 = vsel %vm1909, %v1890, %v851
      %v1943 = vsel %vm1909, %v1891, %v853
      %v1944 = vsel %vm1909, %v1892, %v855
      %v1945 = vsel %vm1909, %v1893, %v857
      %v1946 = vsel %vm1909, %v1894, %v859
      %v1947 = vsel %vm1909, %v1895, %v861
      %v1948 = vsel %vm1909, %v1896, %v863
      %v1949 = vsel %vm1909, %v1897, %v865
      %v1950 = vsel %vm1909, %v1898, %v867
      %v1951 = vsel %vm1909, %v1899, %v869
      %v1952 = vsel %vm1909, %v1900, %v871
      %v1953 = vsel %vm1909, %v1901, %v873
      %v1954 = vsel %vm1909, %v1902, %v875
      %v1955 = vsel %vm1909, %v1903, %v877
      %v1956 = vsel %vm1909, %v1904, %v879
      %v1957 = vsel %vm1909, %v1905, %v881
      %v1958 = vsel %vm1909, %v1906, %v883
      %v1959 = vsel %vm1909, %v1907, %v885
      %v1960 = vsel %vm1909, %v1908, %v887
      %vm1961 = vcmask 97280
      %v1962 = vsel %vm1961, %v1910, %v940
      %v1963 = vsel %vm1961, %v1911, %v942
      %v1964 = vsel %vm1961, %v1912, %v944
      %v1965 = vsel %vm1961, %v1910, %v946
      %v1966 = vsel %vm1961, %v1911, %v948
      %v1967 = vsel %vm1961, %v1912, %v950
      %v1968 = vsel %vm1961, %v1913, %v952
      %v1969 = vsel %vm1961, %v1914, %v954
      %v1970 = vsel %vm1961, %v1915, %v956
      %v1971 = vsel %vm1961, %v1916, %v958
      %v1972 = vsel %vm1961, %v1917, %v960
      %v1973 = vsel %vm1961, %v1918, %v962
      %v1974 = vsel %vm1961, %v1919, %v964
      %v1975 = vsel %vm1961, %v1920, %v966
      %v1976 = vsel %vm1961, %v1921, %v968
      %v1977 = vsel %vm1961, %v1922, %v970
      %v1978 = vsel %vm1961, %v1923, %v972
      %v1979 = vsel %vm1961, %v1924, %v974
      %v1980 = vsel %vm1961, %v1925, %v976
      %v1981 = vsel %vm1961, %v1926, %v978
      %v1982 = vsel %vm1961, %v1927, %v980
      %v1983 = vsel %vm1961, %v1928, %v982
      %v1984 = vsel %vm1961, %v1929, %v984
      %v1985 = vsel %vm1961, %v1930, %v986
      %v1986 = vsel %vm1961, %v1931, %v988
      %v1987 = vsel %vm1961, %v1932, %v990
      %v1988 = vsel %vm1961, %v1933, %v992
      %v1989 = vsel %vm1961, %v1934, %v994
      %v1990 = vsel %vm1961, %v1935, %v996
      %v1991 = vsel %vm1961, %v1936, %v998
      %v1992 = vsel %vm1961, %v1937, %v1000
      %v1993 = vsel %vm1961, %v1938, %v1002
      %v1994 = vsel %vm1961, %v1939, %v1004
      %v1995 = vsel %vm1961, %v1940, %v1006
      %v1996 = vsel %vm1961, %v1941, %v1008
      %v1997 = vsel %vm1961, %v1942, %v1010
      %v1998 = vsel %vm1961, %v1943, %v1012
      %v1999 = vsel %vm1961, %v1944, %v1014
      %v2000 = vsel %vm1961, %v1945, %v1016
      %v2001 = vsel %vm1961, %v1946, %v1018
      %v2002 = vsel %vm1961, %v1947, %v1020
      %v2003 = vsel %vm1961, %v1948, %v1022
      %v2004 = vsel %vm1961, %v1949, %v1024
      %v2005 = vsel %vm1961, %v1950, %v1026
      %v2006 = vsel %vm1961, %v1951, %v1028
      %v2007 = vsel %vm1961, %v1952, %v1030
      %v2008 = vsel %vm1961, %v1953, %v1032
      %v2009 = vsel %vm1961, %v1954, %v1034
      %v2010 = vsel %vm1961, %v1955, %v1036
      %v2011 = vsel %vm1961, %v1956, %v1038
      %v2012 = vsel %vm1961, %v1957, %v1040
      %v2013 = vsel %vm1961, %v1958, %v940
      %v2014 = vsel %vm1961, %v1959, %v942
      %v2015 = vsel %vm1961, %v1960, %v944
      %vm2016 = vcmask 130048
      %v2017 = vsel %vm2016, %v1962, %v1093
      %v2018 = vsel %vm2016, %v1963, %v1095
      %v2019 = vsel %vm2016, %v1964, %v1097
      %v2020 = vsel %vm2016, %v1965, %v1099
      %v2021 = vsel %vm2016, %v1966, %v1101
      %v2022 = vsel %vm2016, %v1967, %v1103
      %v2023 = vsel %vm2016, %v1968, %v1105
      %v2024 = vsel %vm2016, %v1969, %v1107
      %v2025 = vsel %vm2016, %v1970, %v1109
      %v2026 = vsel %vm2016, %v1971, %v1111
      %v2027 = vsel %vm2016, %v1972, %v1113
      %v2028 = vsel %vm2016, %v1973, %v1115
      %v2029 = vsel %vm2016, %v1974, %v1117
      %v2030 = vsel %vm2016, %v1975, %v1119
      %v2031 = vsel %vm2016, %v1976, %v1121
      %v2032 = vsel %vm2016, %v1977, %v1123
      %v2033 = vsel %vm2016, %v1978, %v1125
      %v2034 = vsel %vm2016, %v1979, %v1127
      %v2035 = vsel %vm2016, %v1980, %v1129
      %v2036 = vsel %vm2016, %v1981, %v1131
      %v2037 = vsel %vm2016, %v1982, %v1133
      %v2038 = vsel %vm2016, %v1983, %v1135
      %v2039 = vsel %vm2016, %v1984, %v1137
      %v2040 = vsel %vm2016, %v1985, %v1139
      %v2041 = vsel %vm2016, %v1986, %v1141
      %v2042 = vsel %vm2016, %v1987, %v1143
      %v2043 = vsel %vm2016, %v1988, %v1145
      %v2044 = vsel %vm2016, %v1989, %v1147
      %v2045 = vsel %vm2016, %v1990, %v1149
      %v2046 = vsel %vm2016, %v1991, %v1151
      %v2047 = vsel %vm2016, %v1992, %v1153
      %v2048 = vsel %vm2016, %v1993, %v1155
      %v2049 = vsel %vm2016, %v1994, %v1157
      %v2050 = vsel %vm2016, %v1995, %v1159
      %v2051 = vsel %vm2016, %v1996, %v1161
      %v2052 = vsel %vm2016, %v1997, %v1163
      %v2053 = vsel %vm2016, %v1998, %v1165
      %v2054 = vsel %vm2016, %v1999, %v1167
      %v2055 = vsel %vm2016, %v2000, %v1169
      %v2056 = vsel %vm2016, %v2001, %v1171
      %v2057 = vsel %vm2016, %v2002, %v1173
      %v2058 = vsel %vm2016, %v2003, %v1175
      %v2059 = vsel %vm2016, %v2004, %v1177
      %v2060 = vsel %vm2016, %v2005, %v1179
      %v2061 = vsel %vm2016, %v2006, %v1181
      %v2062 = vsel %vm2016, %v2007, %v1183
      %v2063 = vsel %vm2016, %v2008, %v1185
      %v2064 = vsel %vm2016, %v2009, %v1187
      %v2065 = vsel %vm2016, %v2010, %v1189
      %v2066 = vsel %vm2016, %v2011, %v1191
      %v2067 = vsel %vm2016, %v2012, %v1193
      %v2068 = vsel %vm2016, %v2013, %v1093
      %v2069 = vsel %vm2016, %v2014, %v1095
      %v2070 = vsel %vm2016, %v2015, %v1097
      %vm2071 = vcmask 162816
      %v2072 = vsel %vm2071, %v2017, %v1246
      %v2073 = vsel %vm2071, %v2018, %v1248
      %v2074 = vsel %vm2071, %v2019, %v1250
      %v2075 = vsel %vm2071, %v2020, %v1252
      %v2076 = vsel %vm2071, %v2021, %v1254
      %v2077 = vsel %vm2071, %v2022, %v1256
      %v2078 = vsel %vm2071, %v2023, %v1258
      %v2079 = vsel %vm2071, %v2024, %v1260
      %v2080 = vsel %vm2071, %v2025, %v1262
      %v2081 = vsel %vm2071, %v2026, %v1264
      %v2082 = vsel %vm2071, %v2027, %v1266
      %v2083 = vsel %vm2071, %v2028, %v1268
      %v2084 = vsel %vm2071, %v2029, %v1270
      %v2085 = vsel %vm2071, %v2030, %v1272
      %v2086 = vsel %vm2071, %v2031, %v1274
      %v2087 = vsel %vm2071, %v2032, %v1276
      %v2088 = vsel %vm2071, %v2033, %v1278
      %v2089 = vsel %vm2071, %v2034, %v1280
      %v2090 = vsel %vm2071, %v2035, %v1282
      %v2091 = vsel %vm2071, %v2036, %v1284
      %v2092 = vsel %vm2071, %v2037, %v1286
      %v2093 = vsel %vm2071, %v2038, %v1288
      %v2094 = vsel %vm2071, %v2039, %v1290
      %v2095 = vsel %vm2071, %v2040, %v1292
      %v2096 = vsel %vm2071, %v2041, %v1294
      %v2097 = vsel %vm2071, %v2042, %v1296
      %v2098 = vsel %vm2071, %v2043, %v1298
      %v2099 = vsel %vm2071, %v2044, %v1300
      %v2100 = vsel %vm2071, %v2045, %v1302
      %v2101 = vsel %vm2071, %v2046, %v1304
      %v2102 = vsel %vm2071, %v2047, %v1306
      %v2103 = vsel %vm2071, %v2048, %v1308
      %v2104 = vsel %vm2071, %v2049, %v1310
      %v2105 = vsel %vm2071, %v2050, %v1312
      %v2106 = vsel %vm2071, %v2051, %v1314
      %v2107 = vsel %vm2071, %v2052, %v1316
      %v2108 = vsel %vm2071, %v2053, %v1318
      %v2109 = vsel %vm2071, %v2054, %v1320
      %v2110 = vsel %vm2071, %v2055, %v1322
      %v2111 = vsel %vm2071, %v2056, %v1324
      %v2112 = vsel %vm2071, %v2057, %v1326
      %v2113 = vsel %vm2071, %v2058, %v1328
      %v2114 = vsel %vm2071, %v2059, %v1330
      %v2115 = vsel %vm2071, %v2060, %v1332
      %v2116 = vsel %vm2071, %v2061, %v1334
      %v2117 = vsel %vm2071, %v2062, %v1336
      %v2118 = vsel %vm2071, %v2063, %v1338
      %v2119 = vsel %vm2071, %v2064, %v1340
      %v2120 = vsel %vm2071, %v2065, %v1342
      %v2121 = vsel %vm2071, %v2066, %v1344
      %v2122 = vsel %vm2071, %v2067, %v1346
      %v2123 = vsel %vm2071, %v2068, %v1246
      %v2124 = vsel %vm2071, %v2069, %v1248
      %v2125 = vsel %vm2071, %v2070, %v1250
      %vm2126 = vcmask 195584
      %v2127 = vsel %vm2126, %v2072, %v1399
      %v2128 = vsel %vm2126, %v2073, %v1401
      %v2129 = vsel %vm2126, %v2074, %v1403
      %v2130 = vsel %vm2126, %v2075, %v1405
      %v2131 = vsel %vm2126, %v2076, %v1407
      %v2132 = vsel %vm2126, %v2077, %v1409
      %v2133 = vsel %vm2126, %v2078, %v1411
      %v2134 = vsel %vm2126, %v2079, %v1413
      %v2135 = vsel %vm2126, %v2080, %v1415
      %v2136 = vsel %vm2126, %v2081, %v1417
      %v2137 = vsel %vm2126, %v2082, %v1419
      %v2138 = vsel %vm2126, %v2083, %v1421
      %v2139 = vsel %vm2126, %v2084, %v1423
      %v2140 = vsel %vm2126, %v2085, %v1425
      %v2141 = vsel %vm2126, %v2086, %v1427
      %v2142 = vsel %vm2126, %v2087, %v1429
      %v2143 = vsel %vm2126, %v2088, %v1431
      %v2144 = vsel %vm2126, %v2089, %v1433
      %v2145 = vsel %vm2126, %v2090, %v1435
      %v2146 = vsel %vm2126, %v2091, %v1437
      %v2147 = vsel %vm2126, %v2092, %v1439
      %v2148 = vsel %vm2126, %v2093, %v1441
      %v2149 = vsel %vm2126, %v2094, %v1443
      %v2150 = vsel %vm2126, %v2095, %v1445
      %v2151 = vsel %vm2126, %v2096, %v1447
      %v2152 = vsel %vm2126, %v2097, %v1449
      %v2153 = vsel %vm2126, %v2098, %v1451
      %v2154 = vsel %vm2126, %v2099, %v1453
      %v2155 = vsel %vm2126, %v2100, %v1455
      %v2156 = vsel %vm2126, %v2101, %v1457
      %v2157 = vsel %vm2126, %v2102, %v1459
      %v2158 = vsel %vm2126, %v2103, %v1461
      %v2159 = vsel %vm2126, %v2104, %v1463
      %v2160 = vsel %vm2126, %v2105, %v1465
      %v2161 = vsel %vm2126, %v2106, %v1467
      %v2162 = vsel %vm2126, %v2107, %v1469
      %v2163 = vsel %vm2126, %v2108, %v1471
      %v2164 = vsel %vm2126, %v2109, %v1473
      %v2165 = vsel %vm2126, %v2110, %v1475
      %v2166 = vsel %vm2126, %v2111, %v1477
      %v2167 = vsel %vm2126, %v2112, %v1479
      %v2168 = vsel %vm2126, %v2113, %v1481
      %v2169 = vsel %vm2126, %v2114, %v1483
      %v2170 = vsel %vm2126, %v2115, %v1485
      %v2171 = vsel %vm2126, %v2116, %v1487
      %v2172 = vsel %vm2126, %v2117, %v1489
      %v2173 = vsel %vm2126, %v2118, %v1491
      %v2174 = vsel %vm2126, %v2119, %v1493
      %v2175 = vsel %vm2126, %v2120, %v1495
      %v2176 = vsel %vm2126, %v2121, %v1497
      %v2177 = vsel %vm2126, %v2122, %v1499
      %v2178 = vsel %vm2126, %v2123, %v1495
      %v2179 = vsel %vm2126, %v2124, %v1497
      %v2180 = vsel %vm2126, %v2125, %v1499
      %vm2181 = vcmask 228352
      %v2182 = vsel %vm2181, %v2127, %v1552
      %v2183 = vsel %vm2181, %v2128, %v1554
      %v2184 = vsel %vm2181, %v2129, %v1556
      %v2185 = vsel %vm2181, %v2130, %v1558
      %v2186 = vsel %vm2181, %v2131, %v1560
      %v2187 = vsel %vm2181, %v2132, %v1562
      %v2188 = vsel %vm2181, %v2133, %v1564
      %v2189 = vsel %vm2181, %v2134, %v1566
      %v2190 = vsel %vm2181, %v2135, %v1568
      %v2191 = vsel %vm2181, %v2136, %v1570
      %v2192 = vsel %vm2181, %v2137, %v1572
      %v2193 = vsel %vm2181, %v2138, %v1574
      %v2194 = vsel %vm2181, %v2139, %v1576
      %v2195 = vsel %vm2181, %v2140, %v1578
      %v2196 = vsel %vm2181, %v2141, %v1580
      %v2197 = vsel %vm2181, %v2142, %v1582
      %v2198 = vsel %vm2181, %v2143, %v1584
      %v2199 = vsel %vm2181, %v2144, %v1586
      %v2200 = vsel %vm2181, %v2145, %v1588
      %v2201 = vsel %vm2181, %v2146, %v1590
      %v2202 = vsel %vm2181, %v2147, %v1592
      %v2203 = vsel %vm2181, %v2148, %v1594
      %v2204 = vsel %vm2181, %v2149, %v1596
      %v2205 = vsel %vm2181, %v2150, %v1598
      %v2206 = vsel %vm2181, %v2151, %v1600
      %v2207 = vsel %vm2181, %v2152, %v1602
      %v2208 = vsel %vm2181, %v2153, %v1604
      %v2209 = vsel %vm2181, %v2154, %v1606
      %v2210 = vsel %vm2181, %v2155, %v1608
      %v2211 = vsel %vm2181, %v2156, %v1610
      %v2212 = vsel %vm2181, %v2157, %v1612
      %v2213 = vsel %vm2181, %v2158, %v1614
      %v2214 = vsel %vm2181, %v2159, %v1616
      %v2215 = vsel %vm2181, %v2160, %v1618
      %v2216 = vsel %vm2181, %v2161, %v1620
      %v2217 = vsel %vm2181, %v2162, %v1622
      %v2218 = vsel %vm2181, %v2163, %v1624
      %v2219 = vsel %vm2181, %v2164, %v1626
      %v2220 = vsel %vm2181, %v2165, %v1628
      %v2221 = vsel %vm2181, %v2166, %v1630
      %v2222 = vsel %vm2181, %v2167, %v1632
      %v2223 = vsel %vm2181, %v2168, %v1634
      %v2224 = vsel %vm2181, %v2169, %v1636
      %v2225 = vsel %vm2181, %v2170, %v1638
      %v2226 = vsel %vm2181, %v2171, %v1640
      %v2227 = vsel %vm2181, %v2172, %v1642
      %v2228 = vsel %vm2181, %v2173, %v1644
      %v2229 = vsel %vm2181, %v2174, %v1646
      %v2230 = vsel %vm2181, %v2175, %v1648
      %v2231 = vsel %vm2181, %v2176, %v1650
      %v2232 = vsel %vm2181, %v2177, %v1652
      %v2233 = vsel %vm2181, %v2178, %v1648
      %v2234 = vsel %vm2181, %v2179, %v1650
      %v2235 = vsel %vm2181, %v2180, %v1652
      %vm2236 = vcmask 261120
      %v2237 = vsel %vm2236, %v2182, %v1705
      %v2238 = vsel %vm2236, %v2183, %v1707
      %v2239 = vsel %vm2236, %v2184, %v1709
      %v2240 = vsel %vm2236, %v2185, %v1711
      %v2241 = vsel %vm2236, %v2186, %v1713
      %v2242 = vsel %vm2236, %v2187, %v1715
      %v2243 = vsel %vm2236, %v2188, %v1717
      %v2244 = vsel %vm2236, %v2189, %v1719
      %v2245 = vsel %vm2236, %v2190, %v1721
      %v2246 = vsel %vm2236, %v2191, %v1723
      %v2247 = vsel %vm2236, %v2192, %v1725
      %v2248 = vsel %vm2236, %v2193, %v1727
      %v2249 = vsel %vm2236, %v2194, %v1729
      %v2250 = vsel %vm2236, %v2195, %v1731
      %v2251 = vsel %vm2236, %v2196, %v1733
      %v2252 = vsel %vm2236, %v2197, %v1735
      %v2253 = vsel %vm2236, %v2198, %v1737
      %v2254 = vsel %vm2236, %v2199, %v1739
      %v2255 = vsel %vm2236, %v2200, %v1741
      %v2256 = vsel %vm2236, %v2201, %v1743
      %v2257 = vsel %vm2236, %v2202, %v1745
      %v2258 = vsel %vm2236, %v2203, %v1747
      %v2259 = vsel %vm2236, %v2204, %v1749
      %v2260 = vsel %vm2236, %v2205, %v1751
      %v2261 = vsel %vm2236, %v2206, %v1753
      %v2262 = vsel %vm2236, %v2207, %v1755
      %v2263 = vsel %vm2236, %v2208, %v1757
      %v2264 = vsel %vm2236, %v2209, %v1759
      %v2265 = vsel %vm2236, %v2210, %v1761
      %v2266 = vsel %vm2236, %v2211, %v1763
      %v2267 = vsel %vm2236, %v2212, %v1765
      %v2268 = vsel %vm2236, %v2213, %v1767
      %v2269 = vsel %vm2236, %v2214, %v1769
      %v2270 = vsel %vm2236, %v2215, %v1771
      %v2271 = vsel %vm2236, %v2216, %v1773
      %v2272 = vsel %vm2236, %v2217, %v1775
      %v2273 = vsel %vm2236, %v2218, %v1777
      %v2274 = vsel %vm2236, %v2219, %v1779
      %v2275 = vsel %vm2236, %v2220, %v1781
      %v2276 = vsel %vm2236, %v2221, %v1783
      %v2277 = vsel %vm2236, %v2222, %v1785
      %v2278 = vsel %vm2236, %v2223, %v1787
      %v2279 = vsel %vm2236, %v2224, %v1789
      %v2280 = vsel %vm2236, %v2225, %v1791
      %v2281 = vsel %vm2236, %v2226, %v1793
      %v2282 = vsel %vm2236, %v2227, %v1795
      %v2283 = vsel %vm2236, %v2228, %v1797
      %v2284 = vsel %vm2236, %v2229, %v1799
      %v2285 = vsel %vm2236, %v2230, %v1801
      %v2286 = vsel %vm2236, %v2231, %v1803
      %v2287 = vsel %vm2236, %v2232, %v1805
      %v2288 = vsel %vm2236, %v2233, %v1801
      %v2289 = vsel %vm2236, %v2234, %v1803
      %v2290 = vsel %vm2236, %v2235, %v1805
      %v2345 = vcombine.high %v2237, %v2237
      %v2347 = vunpack.c.l.s4 1983009808
      %v2348 = vunpack.c.0.s8 %v2347
      %v2349 = vlaneseq
      %v2350 = vshrl.u32 %v2349, 7
      %v2351 = vsub.s32 %v2348, %v2350
      %v2352 = vrot.slane %v2237, %v2351
      %v2354 = vunpack.c.l.s4 1983009808
      %v2355 = vunpack.c.0.s8 %v2354
      %v2356 = vlaneseq
      %v2357 = vshrl.u32 %v2356, 7
      %v2358 = vsub.s32 %v2355, %v2357
      %v2359 = vrot.slane %v2345, %v2358
      %v2360 = vcombine.high %v2352, %v2352
      %v2361 = vcombine.high %v2359, %v2359
      %v2362 = vcombine.high %v2238, %v2238
      %v2364 = vunpack.c.l.s4 1983009808
      %v2365 = vunpack.c.0.s8 %v2364
      %v2366 = vlaneseq
      %v2367 = vshrl.u32 %v2366, 7
      %v2368 = vsub.s32 %v2365, %v2367
      %v2369 = vrot.slane %v2238, %v2368
      %v2371 = vunpack.c.l.s4 1983009808
      %v2372 = vunpack.c.0.s8 %v2371
      %v2373 = vlaneseq
      %v2374 = vshrl.u32 %v2373, 7
      %v2375 = vsub.s32 %v2372, %v2374
      %v2376 = vrot.slane %v2362, %v2375
      %v2377 = vcombine.high %v2369, %v2369
      %v2378 = vcombine.high %v2376, %v2376
      %v2380 = vunpack.c.l.s4 1983009808
      %v2381 = vunpack.c.0.s8 %v2380
      %v2382 = vlaneseq
      %v2383 = vshrl.u32 %v2382, 7
      %v2384 = vsub.s32 %v2381, %v2383
      %v2385 = vrot.slane %v2239, %v2384
      %v2386 = vcombine.high %v2240, %v2240
      %v2388 = vunpack.c.l.s4 1983009808
      %v2389 = vunpack.c.0.s8 %v2388
      %v2390 = vlaneseq
      %v2391 = vshrl.u32 %v2390, 7
      %v2392 = vsub.s32 %v2389, %v2391
      %v2393 = vrot.slane %v2240, %v2392
      %v2395 = vunpack.c.l.s4 1983009808
      %v2396 = vunpack.c.0.s8 %v2395
      %v2397 = vlaneseq
      %v2398 = vshrl.u32 %v2397, 7
      %v2399 = vsub.s32 %v2396, %v2398
      %v2400 = vrot.slane %v2386, %v2399
      %v2401 = vcombine.high %v2393, %v2393
      %v2402 = vcombine.high %v2400, %v2400
      %v2403 = vcombine.high %v2241, %v2241
      %v2405 = vunpack.c.l.s4 1983009808
      %v2406 = vunpack.c.0.s8 %v2405
      %v2407 = vlaneseq
      %v2408 = vshrl.u32 %v2407, 7
      %v2409 = vsub.s32 %v2406, %v2408
      %v2410 = vrot.slane %v2241, %v2409
      %v2412 = vunpack.c.l.s4 1983009808
      %v2413 = vunpack.c.0.s8 %v2412
      %v2414 = vlaneseq
      %v2415 = vshrl.u32 %v2414, 7
      %v2416 = vsub.s32 %v2413, %v2415
      %v2417 = vrot.slane %v2403, %v2416
      %v2418 = vcombine.high %v2410, %v2410
      %v2419 = vcombine.high %v2417, %v2417
      %v2421 = vunpack.c.l.s4 1983009808
      %v2422 = vunpack.c.0.s8 %v2421
      %v2423 = vlaneseq
      %v2424 = vshrl.u32 %v2423, 7
      %v2425 = vsub.s32 %v2422, %v2424
      %v2426 = vrot.slane %v2242, %v2425
      %v2427 = vcombine.high %v2243, %v2243
      %v2429 = vunpack.c.l.s4 1983009808
      %v2430 = vunpack.c.0.s8 %v2429
      %v2431 = vlaneseq
      %v2432 = vshrl.u32 %v2431, 7
      %v2433 = vsub.s32 %v2430, %v2432
      %v2434 = vrot.slane %v2243, %v2433
      %v2436 = vunpack.c.l.s4 1983009808
      %v2437 = vunpack.c.0.s8 %v2436
      %v2438 = vlaneseq
      %v2439 = vshrl.u32 %v2438, 7
      %v2440 = vsub.s32 %v2437, %v2439
      %v2441 = vrot.slane %v2427, %v2440
      %v2442 = vcombine.high %v2434, %v2434
      %v2443 = vcombine.high %v2441, %v2441
      %v2444 = vcombine.high %v2244, %v2244
      %v2446 = vunpack.c.l.s4 1983009808
      %v2447 = vunpack.c.0.s8 %v2446
      %v2448 = vlaneseq
      %v2449 = vshrl.u32 %v2448, 7
      %v2450 = vsub.s32 %v2447, %v2449
      %v2451 = vrot.slane %v2244, %v2450
      %v2453 = vunpack.c.l.s4 1983009808
      %v2454 = vunpack.c.0.s8 %v2453
      %v2455 = vlaneseq
      %v2456 = vshrl.u32 %v2455, 7
      %v2457 = vsub.s32 %v2454, %v2456
      %v2458 = vrot.slane %v2444, %v2457
      %v2459 = vcombine.high %v2451, %v2451
      %v2460 = vcombine.high %v2458, %v2458
      %v2462 = vunpack.c.l.s4 1983009808
      %v2463 = vunpack.c.0.s8 %v2462
      %v2464 = vlaneseq
      %v2465 = vshrl.u32 %v2464, 7
      %v2466 = vsub.s32 %v2463, %v2465
      %v2467 = vrot.slane %v2245, %v2466
      %v2468 = vcombine.high %v2246, %v2246
      %v2470 = vunpack.c.l.s4 1983009808
      %v2471 = vunpack.c.0.s8 %v2470
      %v2472 = vlaneseq
      %v2473 = vshrl.u32 %v2472, 7
      %v2474 = vsub.s32 %v2471, %v2473
      %v2475 = vrot.slane %v2246, %v2474
      %v2477 = vunpack.c.l.s4 1983009808
      %v2478 = vunpack.c.0.s8 %v2477
      %v2479 = vlaneseq
      %v2480 = vshrl.u32 %v2479, 7
      %v2481 = vsub.s32 %v2478, %v2480
      %v2482 = vrot.slane %v2468, %v2481
      %v2483 = vcombine.high %v2475, %v2475
      %v2484 = vcombine.high %v2482, %v2482
      %v2485 = vcombine.high %v2247, %v2247
      %v2487 = vunpack.c.l.s4 1983009808
      %v2488 = vunpack.c.0.s8 %v2487
      %v2489 = vlaneseq
      %v2490 = vshrl.u32 %v2489, 7
      %v2491 = vsub.s32 %v2488, %v2490
      %v2492 = vrot.slane %v2247, %v2491
      %v2494 = vunpack.c.l.s4 1983009808
      %v2495 = vunpack.c.0.s8 %v2494
      %v2496 = vlaneseq
      %v2497 = vshrl.u32 %v2496, 7
      %v2498 = vsub.s32 %v2495, %v2497
      %v2499 = vrot.slane %v2485, %v2498
      %v2500 = vcombine.high %v2492, %v2492
      %v2501 = vcombine.high %v2499, %v2499
      %v2503 = vunpack.c.l.s4 1983009808
      %v2504 = vunpack.c.0.s8 %v2503
      %v2505 = vlaneseq
      %v2506 = vshrl.u32 %v2505, 7
      %v2507 = vsub.s32 %v2504, %v2506
      %v2508 = vrot.slane %v2248, %v2507
      %v2509 = vcombine.high %v2249, %v2249
      %v2511 = vunpack.c.l.s4 1983009808
      %v2512 = vunpack.c.0.s8 %v2511
      %v2513 = vlaneseq
      %v2514 = vshrl.u32 %v2513, 7
      %v2515 = vsub.s32 %v2512, %v2514
      %v2516 = vrot.slane %v2249, %v2515
      %v2518 = vunpack.c.l.s4 1983009808
      %v2519 = vunpack.c.0.s8 %v2518
      %v2520 = vlaneseq
      %v2521 = vshrl.u32 %v2520, 7
      %v2522 = vsub.s32 %v2519, %v2521
      %v2523 = vrot.slane %v2509, %v2522
      %v2524 = vcombine.high %v2516, %v2516
      %v2525 = vcombine.high %v2523, %v2523
      %v2526 = vcombine.high %v2250, %v2250
      %v2528 = vunpack.c.l.s4 1983009808
      %v2529 = vunpack.c.0.s8 %v2528
      %v2530 = vlaneseq
      %v2531 = vshrl.u32 %v2530, 7
      %v2532 = vsub.s32 %v2529, %v2531
      %v2533 = vrot.slane %v2250, %v2532
      %v2535 = vunpack.c.l.s4 1983009808
      %v2536 = vunpack.c.0.s8 %v2535
      %v2537 = vlaneseq
      %v2538 = vshrl.u32 %v2537, 7
      %v2539 = vsub.s32 %v2536, %v2538
      %v2540 = vrot.slane %v2526, %v2539
      %v2541 = vcombine.high %v2533, %v2533
      %v2542 = vcombine.high %v2540, %v2540
      %v2544 = vunpack.c.l.s4 1983009808
      %v2545 = vunpack.c.0.s8 %v2544
      %v2546 = vlaneseq
      %v2547 = vshrl.u32 %v2546, 7
      %v2548 = vsub.s32 %v2545, %v2547
      %v2549 = vrot.slane %v2251, %v2548
      %v2550 = vcombine.high %v2252, %v2252
      %v2552 = vunpack.c.l.s4 1983009808
      %v2553 = vunpack.c.0.s8 %v2552
      %v2554 = vlaneseq
      %v2555 = vshrl.u32 %v2554, 7
      %v2556 = vsub.s32 %v2553, %v2555
      %v2557 = vrot.slane %v2252, %v2556
      %v2559 = vunpack.c.l.s4 1983009808
      %v2560 = vunpack.c.0.s8 %v2559
      %v2561 = vlaneseq
      %v2562 = vshrl.u32 %v2561, 7
      %v2563 = vsub.s32 %v2560, %v2562
      %v2564 = vrot.slane %v2550, %v2563
      %v2565 = vcombine.high %v2557, %v2557
      %v2566 = vcombine.high %v2564, %v2564
      %v2567 = vcombine.high %v2253, %v2253
      %v2569 = vunpack.c.l.s4 1983009808
      %v2570 = vunpack.c.0.s8 %v2569
      %v2571 = vlaneseq
      %v2572 = vshrl.u32 %v2571, 7
      %v2573 = vsub.s32 %v2570, %v2572
      %v2574 = vrot.slane %v2253, %v2573
      %v2576 = vunpack.c.l.s4 1983009808
      %v2577 = vunpack.c.0.s8 %v2576
      %v2578 = vlaneseq
      %v2579 = vshrl.u32 %v2578, 7
      %v2580 = vsub.s32 %v2577, %v2579
      %v2581 = vrot.slane %v2567, %v2580
      %v2582 = vcombine.high %v2574, %v2574
      %v2583 = vcombine.high %v2581, %v2581
      %v2585 = vunpack.c.l.s4 1983009808
      %v2586 = vunpack.c.0.s8 %v2585
      %v2587 = vlaneseq
      %v2588 = vshrl.u32 %v2587, 7
      %v2589 = vsub.s32 %v2586, %v2588
      %v2590 = vrot.slane %v2254, %v2589
      %v2591 = vcombine.high %v2255, %v2255
      %v2593 = vunpack.c.l.s4 1983009808
      %v2594 = vunpack.c.0.s8 %v2593
      %v2595 = vlaneseq
      %v2596 = vshrl.u32 %v2595, 7
      %v2597 = vsub.s32 %v2594, %v2596
      %v2598 = vrot.slane %v2255, %v2597
      %v2600 = vunpack.c.l.s4 1983009808
      %v2601 = vunpack.c.0.s8 %v2600
      %v2602 = vlaneseq
      %v2603 = vshrl.u32 %v2602, 7
      %v2604 = vsub.s32 %v2601, %v2603
      %v2605 = vrot.slane %v2591, %v2604
      %v2606 = vcombine.high %v2598, %v2598
      %v2607 = vcombine.high %v2605, %v2605
      %v2608 = vcombine.high %v2256, %v2256
      %v2610 = vunpack.c.l.s4 1983009808
      %v2611 = vunpack.c.0.s8 %v2610
      %v2612 = vlaneseq
      %v2613 = vshrl.u32 %v2612, 7
      %v2614 = vsub.s32 %v2611, %v2613
      %v2615 = vrot.slane %v2256, %v2614
      %v2617 = vunpack.c.l.s4 1983009808
      %v2618 = vunpack.c.0.s8 %v2617
      %v2619 = vlaneseq
      %v2620 = vshrl.u32 %v2619, 7
      %v2621 = vsub.s32 %v2618, %v2620
      %v2622 = vrot.slane %v2608, %v2621
      %v2623 = vcombine.high %v2615, %v2615
      %v2624 = vcombine.high %v2622, %v2622
      %v2626 = vunpack.c.l.s4 1983009808
      %v2627 = vunpack.c.0.s8 %v2626
      %v2628 = vlaneseq
      %v2629 = vshrl.u32 %v2628, 7
      %v2630 = vsub.s32 %v2627, %v2629
      %v2631 = vrot.slane %v2257, %v2630
      %v2632 = vcombine.high %v2258, %v2258
      %v2634 = vunpack.c.l.s4 1983009808
      %v2635 = vunpack.c.0.s8 %v2634
      %v2636 = vlaneseq
      %v2637 = vshrl.u32 %v2636, 7
      %v2638 = vsub.s32 %v2635, %v2637
      %v2639 = vrot.slane %v2258, %v2638
      %v2641 = vunpack.c.l.s4 1983009808
      %v2642 = vunpack.c.0.s8 %v2641
      %v2643 = vlaneseq
      %v2644 = vshrl.u32 %v2643, 7
      %v2645 = vsub.s32 %v2642, %v2644
      %v2646 = vrot.slane %v2632, %v2645
      %v2647 = vcombine.high %v2639, %v2639
      %v2648 = vcombine.high %v2646, %v2646
      %v2649 = vcombine.high %v2259, %v2259
      %v2651 = vunpack.c.l.s4 1983009808
      %v2652 = vunpack.c.0.s8 %v2651
      %v2653 = vlaneseq
      %v2654 = vshrl.u32 %v2653, 7
      %v2655 = vsub.s32 %v2652, %v2654
      %v2656 = vrot.slane %v2259, %v2655
      %v2658 = vunpack.c.l.s4 1983009808
      %v2659 = vunpack.c.0.s8 %v2658
      %v2660 = vlaneseq
      %v2661 = vshrl.u32 %v2660, 7
      %v2662 = vsub.s32 %v2659, %v2661
      %v2663 = vrot.slane %v2649, %v2662
      %v2664 = vcombine.high %v2656, %v2656
      %v2665 = vcombine.high %v2663, %v2663
      %v2667 = vunpack.c.l.s4 1983009808
      %v2668 = vunpack.c.0.s8 %v2667
      %v2669 = vlaneseq
      %v2670 = vshrl.u32 %v2669, 7
      %v2671 = vsub.s32 %v2668, %v2670
      %v2672 = vrot.slane %v2260, %v2671
      %v2673 = vcombine.high %v2261, %v2261
      %v2675 = vunpack.c.l.s4 1983009808
      %v2676 = vunpack.c.0.s8 %v2675
      %v2677 = vlaneseq
      %v2678 = vshrl.u32 %v2677, 7
      %v2679 = vsub.s32 %v2676, %v2678
      %v2680 = vrot.slane %v2261, %v2679
      %v2682 = vunpack.c.l.s4 1983009808
      %v2683 = vunpack.c.0.s8 %v2682
      %v2684 = vlaneseq
      %v2685 = vshrl.u32 %v2684, 7
      %v2686 = vsub.s32 %v2683, %v2685
      %v2687 = vrot.slane %v2673, %v2686
      %v2688 = vcombine.high %v2680, %v2680
      %v2689 = vcombine.high %v2687, %v2687
      %v2690 = vcombine.high %v2262, %v2262
      %v2692 = vunpack.c.l.s4 1983009808
      %v2693 = vunpack.c.0.s8 %v2692
      %v2694 = vlaneseq
      %v2695 = vshrl.u32 %v2694, 7
      %v2696 = vsub.s32 %v2693, %v2695
      %v2697 = vrot.slane %v2262, %v2696
      %v2699 = vunpack.c.l.s4 1983009808
      %v2700 = vunpack.c.0.s8 %v2699
      %v2701 = vlaneseq
      %v2702 = vshrl.u32 %v2701, 7
      %v2703 = vsub.s32 %v2700, %v2702
      %v2704 = vrot.slane %v2690, %v2703
      %v2705 = vcombine.high %v2697, %v2697
      %v2706 = vcombine.high %v2704, %v2704
      %v2708 = vunpack.c.l.s4 1983009808
      %v2709 = vunpack.c.0.s8 %v2708
      %v2710 = vlaneseq
      %v2711 = vshrl.u32 %v2710, 7
      %v2712 = vsub.s32 %v2709, %v2711
      %v2713 = vrot.slane %v2263, %v2712
      %v2714 = vcombine.high %v2264, %v2264
      %v2716 = vunpack.c.l.s4 1983009808
      %v2717 = vunpack.c.0.s8 %v2716
      %v2718 = vlaneseq
      %v2719 = vshrl.u32 %v2718, 7
      %v2720 = vsub.s32 %v2717, %v2719
      %v2721 = vrot.slane %v2264, %v2720
      %v2723 = vunpack.c.l.s4 1983009808
      %v2724 = vunpack.c.0.s8 %v2723
      %v2725 = vlaneseq
      %v2726 = vshrl.u32 %v2725, 7
      %v2727 = vsub.s32 %v2724, %v2726
      %v2728 = vrot.slane %v2714, %v2727
      %v2729 = vcombine.high %v2721, %v2721
      %v2730 = vcombine.high %v2728, %v2728
      %v2731 = vcombine.high %v2265, %v2265
      %v2733 = vunpack.c.l.s4 1983009808
      %v2734 = vunpack.c.0.s8 %v2733
      %v2735 = vlaneseq
      %v2736 = vshrl.u32 %v2735, 7
      %v2737 = vsub.s32 %v2734, %v2736
      %v2738 = vrot.slane %v2265, %v2737
      %v2740 = vunpack.c.l.s4 1983009808
      %v2741 = vunpack.c.0.s8 %v2740
      %v2742 = vlaneseq
      %v2743 = vshrl.u32 %v2742, 7
      %v2744 = vsub.s32 %v2741, %v2743
      %v2745 = vrot.slane %v2731, %v2744
      %v2746 = vcombine.high %v2738, %v2738
      %v2747 = vcombine.high %v2745, %v2745
      %v2749 = vunpack.c.l.s4 1983009808
      %v2750 = vunpack.c.0.s8 %v2749
      %v2751 = vlaneseq
      %v2752 = vshrl.u32 %v2751, 7
      %v2753 = vsub.s32 %v2750, %v2752
      %v2754 = vrot.slane %v2266, %v2753
      %v2755 = vcombine.high %v2267, %v2267
      %v2757 = vunpack.c.l.s4 1983009808
      %v2758 = vunpack.c.0.s8 %v2757
      %v2759 = vlaneseq
      %v2760 = vshrl.u32 %v2759, 7
      %v2761 = vsub.s32 %v2758, %v2760
      %v2762 = vrot.slane %v2267, %v2761
      %v2764 = vunpack.c.l.s4 1983009808
      %v2765 = vunpack.c.0.s8 %v2764
      %v2766 = vlaneseq
      %v2767 = vshrl.u32 %v2766, 7
      %v2768 = vsub.s32 %v2765, %v2767
      %v2769 = vrot.slane %v2755, %v2768
      %v2770 = vcombine.high %v2762, %v2762
      %v2771 = vcombine.high %v2769, %v2769
      %v2772 = vcombine.high %v2268, %v2268
      %v2774 = vunpack.c.l.s4 1983009808
      %v2775 = vunpack.c.0.s8 %v2774
      %v2776 = vlaneseq
      %v2777 = vshrl.u32 %v2776, 7
      %v2778 = vsub.s32 %v2775, %v2777
      %v2779 = vrot.slane %v2268, %v2778
      %v2781 = vunpack.c.l.s4 1983009808
      %v2782 = vunpack.c.0.s8 %v2781
      %v2783 = vlaneseq
      %v2784 = vshrl.u32 %v2783, 7
      %v2785 = vsub.s32 %v2782, %v2784
      %v2786 = vrot.slane %v2772, %v2785
      %v2787 = vcombine.high %v2779, %v2779
      %v2788 = vcombine.high %v2786, %v2786
      %v2790 = vunpack.c.l.s4 1983009808
      %v2791 = vunpack.c.0.s8 %v2790
      %v2792 = vlaneseq
      %v2793 = vshrl.u32 %v2792, 7
      %v2794 = vsub.s32 %v2791, %v2793
      %v2795 = vrot.slane %v2269, %v2794
      %v2796 = vcombine.high %v2270, %v2270
      %v2798 = vunpack.c.l.s4 1983009808
      %v2799 = vunpack.c.0.s8 %v2798
      %v2800 = vlaneseq
      %v2801 = vshrl.u32 %v2800, 7
      %v2802 = vsub.s32 %v2799, %v2801
      %v2803 = vrot.slane %v2270, %v2802
      %v2805 = vunpack.c.l.s4 1983009808
      %v2806 = vunpack.c.0.s8 %v2805
      %v2807 = vlaneseq
      %v2808 = vshrl.u32 %v2807, 7
      %v2809 = vsub.s32 %v2806, %v2808
      %v2810 = vrot.slane %v2796, %v2809
      %v2811 = vcombine.high %v2803, %v2803
      %v2812 = vcombine.high %v2810, %v2810
      %v2813 = vcombine.high %v2271, %v2271
      %v2815 = vunpack.c.l.s4 1983009808
      %v2816 = vunpack.c.0.s8 %v2815
      %v2817 = vlaneseq
      %v2818 = vshrl.u32 %v2817, 7
      %v2819 = vsub.s32 %v2816, %v2818
      %v2820 = vrot.slane %v2271, %v2819
      %v2822 = vunpack.c.l.s4 1983009808
      %v2823 = vunpack.c.0.s8 %v2822
      %v2824 = vlaneseq
      %v2825 = vshrl.u32 %v2824, 7
      %v2826 = vsub.s32 %v2823, %v2825
      %v2827 = vrot.slane %v2813, %v2826
      %v2828 = vcombine.high %v2820, %v2820
      %v2829 = vcombine.high %v2827, %v2827
      %v2831 = vunpack.c.l.s4 1983009808
      %v2832 = vunpack.c.0.s8 %v2831
      %v2833 = vlaneseq
      %v2834 = vshrl.u32 %v2833, 7
      %v2835 = vsub.s32 %v2832, %v2834
      %v2836 = vrot.slane %v2272, %v2835
      %v2837 = vcombine.high %v2273, %v2273
      %v2839 = vunpack.c.l.s4 1983009808
      %v2840 = vunpack.c.0.s8 %v2839
      %v2841 = vlaneseq
      %v2842 = vshrl.u32 %v2841, 7
      %v2843 = vsub.s32 %v2840, %v2842
      %v2844 = vrot.slane %v2273, %v2843
      %v2846 = vunpack.c.l.s4 1983009808
      %v2847 = vunpack.c.0.s8 %v2846
      %v2848 = vlaneseq
      %v2849 = vshrl.u32 %v2848, 7
      %v2850 = vsub.s32 %v2847, %v2849
      %v2851 = vrot.slane %v2837, %v2850
      %v2852 = vcombine.high %v2844, %v2844
      %v2853 = vcombine.high %v2851, %v2851
      %v2854 = vcombine.high %v2274, %v2274
      %v2856 = vunpack.c.l.s4 1983009808
      %v2857 = vunpack.c.0.s8 %v2856
      %v2858 = vlaneseq
      %v2859 = vshrl.u32 %v2858, 7
      %v2860 = vsub.s32 %v2857, %v2859
      %v2861 = vrot.slane %v2274, %v2860
      %v2863 = vunpack.c.l.s4 1983009808
      %v2864 = vunpack.c.0.s8 %v2863
      %v2865 = vlaneseq
      %v2866 = vshrl.u32 %v2865, 7
      %v2867 = vsub.s32 %v2864, %v2866
      %v2868 = vrot.slane %v2854, %v2867
      %v2869 = vcombine.high %v2861, %v2861
      %v2870 = vcombine.high %v2868, %v2868
      %v2872 = vunpack.c.l.s4 1983009808
      %v2873 = vunpack.c.0.s8 %v2872
      %v2874 = vlaneseq
      %v2875 = vshrl.u32 %v2874, 7
      %v2876 = vsub.s32 %v2873, %v2875
      %v2877 = vrot.slane %v2275, %v2876
      %v2878 = vcombine.high %v2276, %v2276
      %v2880 = vunpack.c.l.s4 1983009808
      %v2881 = vunpack.c.0.s8 %v2880
      %v2882 = vlaneseq
      %v2883 = vshrl.u32 %v2882, 7
      %v2884 = vsub.s32 %v2881, %v2883
      %v2885 = vrot.slane %v2276, %v2884
      %v2887 = vunpack.c.l.s4 1983009808
      %v2888 = vunpack.c.0.s8 %v2887
      %v2889 = vlaneseq
      %v2890 = vshrl.u32 %v2889, 7
      %v2891 = vsub.s32 %v2888, %v2890
      %v2892 = vrot.slane %v2878, %v2891
      %v2893 = vcombine.high %v2885, %v2885
      %v2894 = vcombine.high %v2892, %v2892
      %v2895 = vcombine.high %v2277, %v2277
      %v2897 = vunpack.c.l.s4 1983009808
      %v2898 = vunpack.c.0.s8 %v2897
      %v2899 = vlaneseq
      %v2900 = vshrl.u32 %v2899, 7
      %v2901 = vsub.s32 %v2898, %v2900
      %v2902 = vrot.slane %v2277, %v2901
      %v2904 = vunpack.c.l.s4 1983009808
      %v2905 = vunpack.c.0.s8 %v2904
      %v2906 = vlaneseq
      %v2907 = vshrl.u32 %v2906, 7
      %v2908 = vsub.s32 %v2905, %v2907
      %v2909 = vrot.slane %v2895, %v2908
      %v2910 = vcombine.high %v2902, %v2902
      %v2911 = vcombine.high %v2909, %v2909
      %v2913 = vunpack.c.l.s4 1983009808
      %v2914 = vunpack.c.0.s8 %v2913
      %v2915 = vlaneseq
      %v2916 = vshrl.u32 %v2915, 7
      %v2917 = vsub.s32 %v2914, %v2916
      %v2918 = vrot.slane %v2278, %v2917
      %v2919 = vcombine.high %v2279, %v2279
      %v2921 = vunpack.c.l.s4 1983009808
      %v2922 = vunpack.c.0.s8 %v2921
      %v2923 = vlaneseq
      %v2924 = vshrl.u32 %v2923, 7
      %v2925 = vsub.s32 %v2922, %v2924
      %v2926 = vrot.slane %v2279, %v2925
      %v2928 = vunpack.c.l.s4 1983009808
      %v2929 = vunpack.c.0.s8 %v2928
      %v2930 = vlaneseq
      %v2931 = vshrl.u32 %v2930, 7
      %v2932 = vsub.s32 %v2929, %v2931
      %v2933 = vrot.slane %v2919, %v2932
      %v2934 = vcombine.high %v2926, %v2926
      %v2935 = vcombine.high %v2933, %v2933
      %v2936 = vcombine.high %v2280, %v2280
      %v2938 = vunpack.c.l.s4 1983009808
      %v2939 = vunpack.c.0.s8 %v2938
      %v2940 = vlaneseq
      %v2941 = vshrl.u32 %v2940, 7
      %v2942 = vsub.s32 %v2939, %v2941
      %v2943 = vrot.slane %v2280, %v2942
      %v2945 = vunpack.c.l.s4 1983009808
      %v2946 = vunpack.c.0.s8 %v2945
      %v2947 = vlaneseq
      %v2948 = vshrl.u32 %v2947, 7
      %v2949 = vsub.s32 %v2946, %v2948
      %v2950 = vrot.slane %v2936, %v2949
      %v2951 = vcombine.high %v2943, %v2943
      %v2952 = vcombine.high %v2950, %v2950
      %v2954 = vunpack.c.l.s4 1983009808
      %v2955 = vunpack.c.0.s8 %v2954
      %v2956 = vlaneseq
      %v2957 = vshrl.u32 %v2956, 7
      %v2958 = vsub.s32 %v2955, %v2957
      %v2959 = vrot.slane %v2281, %v2958
      %v2960 = vcombine.high %v2282, %v2282
      %v2962 = vunpack.c.l.s4 1983009808
      %v2963 = vunpack.c.0.s8 %v2962
      %v2964 = vlaneseq
      %v2965 = vshrl.u32 %v2964, 7
      %v2966 = vsub.s32 %v2963, %v2965
      %v2967 = vrot.slane %v2282, %v2966
      %v2969 = vunpack.c.l.s4 1983009808
      %v2970 = vunpack.c.0.s8 %v2969
      %v2971 = vlaneseq
      %v2972 = vshrl.u32 %v2971, 7
      %v2973 = vsub.s32 %v2970, %v2972
      %v2974 = vrot.slane %v2960, %v2973
      %v2975 = vcombine.high %v2967, %v2967
      %v2976 = vcombine.high %v2974, %v2974
      %v2977 = vcombine.high %v2283, %v2283
      %v2979 = vunpack.c.l.s4 1983009808
      %v2980 = vunpack.c.0.s8 %v2979
      %v2981 = vlaneseq
      %v2982 = vshrl.u32 %v2981, 7
      %v2983 = vsub.s32 %v2980, %v2982
      %v2984 = vrot.slane %v2283, %v2983
      %v2986 = vunpack.c.l.s4 1983009808
      %v2987 = vunpack.c.0.s8 %v2986
      %v2988 = vlaneseq
      %v2989 = vshrl.u32 %v2988, 7
      %v2990 = vsub.s32 %v2987, %v2989
      %v2991 = vrot.slane %v2977, %v2990
      %v2992 = vcombine.high %v2984, %v2984
      %v2993 = vcombine.high %v2991, %v2991
      %v2995 = vunpack.c.l.s4 1983009808
      %v2996 = vunpack.c.0.s8 %v2995
      %v2997 = vlaneseq
      %v2998 = vshrl.u32 %v2997, 7
      %v2999 = vsub.s32 %v2996, %v2998
      %v3000 = vrot.slane %v2284, %v2999
      %v3001 = vcombine.high %v2285, %v2285
      %v3003 = vunpack.c.l.s4 1983009808
      %v3004 = vunpack.c.0.s8 %v3003
      %v3005 = vlaneseq
      %v3006 = vshrl.u32 %v3005, 7
      %v3007 = vsub.s32 %v3004, %v3006
      %v3008 = vrot.slane %v2285, %v3007
      %v3010 = vunpack.c.l.s4 1983009808
      %v3011 = vunpack.c.0.s8 %v3010
      %v3012 = vlaneseq
      %v3013 = vshrl.u32 %v3012, 7
      %v3014 = vsub.s32 %v3011, %v3013
      %v3015 = vrot.slane %v3001, %v3014
      %v3016 = vcombine.high %v3008, %v3008
      %v3017 = vcombine.high %v3015, %v3015
      %v3018 = vcombine.high %v2286, %v2286
      %v3020 = vunpack.c.l.s4 1983009808
      %v3021 = vunpack.c.0.s8 %v3020
      %v3022 = vlaneseq
      %v3023 = vshrl.u32 %v3022, 7
      %v3024 = vsub.s32 %v3021, %v3023
      %v3025 = vrot.slane %v2286, %v3024
      %v3027 = vunpack.c.l.s4 1983009808
      %v3028 = vunpack.c.0.s8 %v3027
      %v3029 = vlaneseq
      %v3030 = vshrl.u32 %v3029, 7
      %v3031 = vsub.s32 %v3028, %v3030
      %v3032 = vrot.slane %v3018, %v3031
      %v3033 = vcombine.high %v3025, %v3025
      %v3034 = vcombine.high %v3032, %v3032
      %v3036 = vunpack.c.l.s4 1983009808
      %v3037 = vunpack.c.0.s8 %v3036
      %v3038 = vlaneseq
      %v3039 = vshrl.u32 %v3038, 7
      %v3040 = vsub.s32 %v3037, %v3039
      %v3041 = vrot.slane %v2287, %v3040
      %v3042 = vcombine.high %v2288, %v2288
      %v3044 = vunpack.c.l.s4 1983009808
      %v3045 = vunpack.c.0.s8 %v3044
      %v3046 = vlaneseq
      %v3047 = vshrl.u32 %v3046, 7
      %v3048 = vsub.s32 %v3045, %v3047
      %v3049 = vrot.slane %v2288, %v3048
      %v3051 = vunpack.c.l.s4 1983009808
      %v3052 = vunpack.c.0.s8 %v3051
      %v3053 = vlaneseq
      %v3054 = vshrl.u32 %v3053, 7
      %v3055 = vsub.s32 %v3052, %v3054
      %v3056 = vrot.slane %v3042, %v3055
      %v3057 = vcombine.high %v3049, %v3049
      %v3058 = vcombine.high %v3056, %v3056
      %v3059 = vcombine.high %v2289, %v2289
      %v3061 = vunpack.c.l.s4 1983009808
      %v3062 = vunpack.c.0.s8 %v3061
      %v3063 = vlaneseq
      %v3064 = vshrl.u32 %v3063, 7
      %v3065 = vsub.s32 %v3062, %v3064
      %v3066 = vrot.slane %v2289, %v3065
      %v3068 = vunpack.c.l.s4 1983009808
      %v3069 = vunpack.c.0.s8 %v3068
      %v3070 = vlaneseq
      %v3071 = vshrl.u32 %v3070, 7
      %v3072 = vsub.s32 %v3069, %v3071
      %v3073 = vrot.slane %v3059, %v3072
      %v3074 = vcombine.high %v3066, %v3066
      %v3075 = vcombine.high %v3073, %v3073
      %v3077 = vunpack.c.l.s4 1983009808
      %v3078 = vunpack.c.0.s8 %v3077
      %v3079 = vlaneseq
      %v3080 = vshrl.u32 %v3079, 7
      %v3081 = vsub.s32 %v3078, %v3080
      %v3082 = vrot.slane %v2290, %v3081
      %3084 = vset.pattern.permute.xlu0 0
      %3085 = vperm.xlu0 %3084, %v426
      %v3086 = vpop.permute.xlu0 %3085
      %v3088 = vcombine.low %v2352, %v2360
      %v3089 = vcombine.low %v2359, %v2361
      %v3091 = vunpack.c.l.s4 1983009808
      %v3092 = vunpack.c.0.s8 %v3091
      %v3093 = vlaneseq
      %v3094 = vshrl.u32 %v3093, 7
      %v3095 = vsub.s32 %v3092, %v3094
      %v3096 = vrot.slane %v3088, %v3095
      %v3098 = vunpack.c.l.s4 1983009808
      %v3099 = vunpack.c.0.s8 %v3098
      %v3100 = vlaneseq
      %v3101 = vshrl.u32 %v3100, 7
      %v3102 = vsub.s32 %v3099, %v3101
      %v3103 = vrot.slane %v3089, %v3102
      %v3104 = vcombine.low %v3096, %v3103
      %v3105 = vcombine.low %v2369, %v2377
      %v3106 = vcombine.low %v2376, %v2378
      %v3108 = vunpack.c.l.s4 1983009808
      %v3109 = vunpack.c.0.s8 %v3108
      %v3110 = vlaneseq
      %v3111 = vshrl.u32 %v3110, 7
      %v3112 = vsub.s32 %v3109, %v3111
      %v3113 = vrot.slane %v3105, %v3112
      %v3115 = vunpack.c.l.s4 1983009808
      %v3116 = vunpack.c.0.s8 %v3115
      %v3117 = vlaneseq
      %v3118 = vshrl.u32 %v3117, 7
      %v3119 = vsub.s32 %v3116, %v3118
      %v3120 = vrot.slane %v3106, %v3119
      %v3121 = vcombine.low %v3113, %v3120
      %v3122 = vcombine.low %v2385, %v2393
      %v3123 = vcombine.low %v2401, %v2400
      %v3125 = vunpack.c.l.s4 1983009808
      %v3126 = vunpack.c.0.s8 %v3125
      %v3127 = vlaneseq
      %v3128 = vshrl.u32 %v3127, 7
      %v3129 = vsub.s32 %v3126, %v3128
      %v3130 = vrot.slane %v3122, %v3129
      %v3132 = vunpack.c.l.s4 1983009808
      %v3133 = vunpack.c.0.s8 %v3132
      %v3134 = vlaneseq
      %v3135 = vshrl.u32 %v3134, 7
      %v3136 = vsub.s32 %v3133, %v3135
      %v3137 = vrot.slane %v3123, %v3136
      %v3138 = vcombine.low %v3130, %v3137
      %v3139 = vcombine.low %v2402, %v2410
      %v3140 = vcombine.low %v2418, %v2417
      %v3142 = vunpack.c.l.s4 1983009808
      %v3143 = vunpack.c.0.s8 %v3142
      %v3144 = vlaneseq
      %v3145 = vshrl.u32 %v3144, 7
      %v3146 = vsub.s32 %v3143, %v3145
      %v3147 = vrot.slane %v3139, %v3146
      %v3149 = vunpack.c.l.s4 1983009808
      %v3150 = vunpack.c.0.s8 %v3149
      %v3151 = vlaneseq
      %v3152 = vshrl.u32 %v3151, 7
      %v3153 = vsub.s32 %v3150, %v3152
      %v3154 = vrot.slane %v3140, %v3153
      %v3155 = vcombine.low %v3147, %v3154
      %v3156 = vcombine.low %v2419, %v2426
      %v3157 = vcombine.low %v2434, %v2442
      %v3159 = vunpack.c.l.s4 1983009808
      %v3160 = vunpack.c.0.s8 %v3159
      %v3161 = vlaneseq
      %v3162 = vshrl.u32 %v3161, 7
      %v3163 = vsub.s32 %v3160, %v3162
      %v3164 = vrot.slane %v3156, %v3163
      %v3166 = vunpack.c.l.s4 1983009808
      %v3167 = vunpack.c.0.s8 %v3166
      %v3168 = vlaneseq
      %v3169 = vshrl.u32 %v3168, 7
      %v3170 = vsub.s32 %v3167, %v3169
      %v3171 = vrot.slane %v3157, %v3170
      %v3172 = vcombine.low %v3164, %v3171
      %v3173 = vcombine.low %v2441, %v2443
      %v3174 = vcombine.low %v2451, %v2459
      %v3176 = vunpack.c.l.s4 1983009808
      %v3177 = vunpack.c.0.s8 %v3176
      %v3178 = vlaneseq
      %v3179 = vshrl.u32 %v3178, 7
      %v3180 = vsub.s32 %v3177, %v3179
      %v3181 = vrot.slane %v3173, %v3180
      %v3183 = vunpack.c.l.s4 1983009808
      %v3184 = vunpack.c.0.s8 %v3183
      %v3185 = vlaneseq
      %v3186 = vshrl.u32 %v3185, 7
      %v3187 = vsub.s32 %v3184, %v3186
      %v3188 = vrot.slane %v3174, %v3187
      %v3189 = vcombine.low %v3181, %v3188
      %v3190 = vcombine.low %v2458, %v2460
      %v3191 = vcombine.low %v2467, %v2475
      %v3193 = vunpack.c.l.s4 1983009808
      %v3194 = vunpack.c.0.s8 %v3193
      %v3195 = vlaneseq
      %v3196 = vshrl.u32 %v3195, 7
      %v3197 = vsub.s32 %v3194, %v3196
      %v3198 = vrot.slane %v3190, %v3197
      %v3200 = vunpack.c.l.s4 1983009808
      %v3201 = vunpack.c.0.s8 %v3200
      %v3202 = vlaneseq
      %v3203 = vshrl.u32 %v3202, 7
      %v3204 = vsub.s32 %v3201, %v3203
      %v3205 = vrot.slane %v3191, %v3204
      %v3206 = vcombine.low %v3198, %v3205
      %v3207 = vcombine.low %v2483, %v2482
      %v3208 = vcombine.low %v2484, %v2492
      %v3210 = vunpack.c.l.s4 1983009808
      %v3211 = vunpack.c.0.s8 %v3210
      %v3212 = vlaneseq
      %v3213 = vshrl.u32 %v3212, 7
      %v3214 = vsub.s32 %v3211, %v3213
      %v3215 = vrot.slane %v3207, %v3214
      %v3217 = vunpack.c.l.s4 1983009808
      %v3218 = vunpack.c.0.s8 %v3217
      %v3219 = vlaneseq
      %v3220 = vshrl.u32 %v3219, 7
      %v3221 = vsub.s32 %v3218, %v3220
      %v3222 = vrot.slane %v3208, %v3221
      %v3223 = vcombine.low %v3215, %v3222
      %v3224 = vcombine.low %v2500, %v2499
      %v3225 = vcombine.low %v2501, %v2508
      %v3227 = vunpack.c.l.s4 1983009808
      %v3228 = vunpack.c.0.s8 %v3227
      %v3229 = vlaneseq
      %v3230 = vshrl.u32 %v3229, 7
      %v3231 = vsub.s32 %v3228, %v3230
      %v3232 = vrot.slane %v3224, %v3231
      %v3234 = vunpack.c.l.s4 1983009808
      %v3235 = vunpack.c.0.s8 %v3234
      %v3236 = vlaneseq
      %v3237 = vshrl.u32 %v3236, 7
      %v3238 = vsub.s32 %v3235, %v3237
      %v3239 = vrot.slane %v3225, %v3238
      %v3240 = vcombine.low %v3232, %v3239
      %v3241 = vcombine.low %v2516, %v2524
      %v3242 = vcombine.low %v2523, %v2525
      %v3244 = vunpack.c.l.s4 1983009808
      %v3245 = vunpack.c.0.s8 %v3244
      %v3246 = vlaneseq
      %v3247 = vshrl.u32 %v3246, 7
      %v3248 = vsub.s32 %v3245, %v3247
      %v3249 = vrot.slane %v3241, %v3248
      %v3251 = vunpack.c.l.s4 1983009808
      %v3252 = vunpack.c.0.s8 %v3251
      %v3253 = vlaneseq
      %v3254 = vshrl.u32 %v3253, 7
      %v3255 = vsub.s32 %v3252, %v3254
      %v3256 = vrot.slane %v3242, %v3255
      %v3257 = vcombine.low %v3249, %v3256
      %v3258 = vcombine.low %v2533, %v2541
      %v3259 = vcombine.low %v2540, %v2542
      %v3261 = vunpack.c.l.s4 1983009808
      %v3262 = vunpack.c.0.s8 %v3261
      %v3263 = vlaneseq
      %v3264 = vshrl.u32 %v3263, 7
      %v3265 = vsub.s32 %v3262, %v3264
      %v3266 = vrot.slane %v3258, %v3265
      %v3268 = vunpack.c.l.s4 1983009808
      %v3269 = vunpack.c.0.s8 %v3268
      %v3270 = vlaneseq
      %v3271 = vshrl.u32 %v3270, 7
      %v3272 = vsub.s32 %v3269, %v3271
      %v3273 = vrot.slane %v3259, %v3272
      %v3274 = vcombine.low %v3266, %v3273
      %v3275 = vcombine.low %v2549, %v2557
      %v3276 = vcombine.low %v2565, %v2564
      %v3278 = vunpack.c.l.s4 1983009808
      %v3279 = vunpack.c.0.s8 %v3278
      %v3280 = vlaneseq
      %v3281 = vshrl.u32 %v3280, 7
      %v3282 = vsub.s32 %v3279, %v3281
      %v3283 = vrot.slane %v3275, %v3282
      %v3285 = vunpack.c.l.s4 1983009808
      %v3286 = vunpack.c.0.s8 %v3285
      %v3287 = vlaneseq
      %v3288 = vshrl.u32 %v3287, 7
      %v3289 = vsub.s32 %v3286, %v3288
      %v3290 = vrot.slane %v3276, %v3289
      %v3291 = vcombine.low %v3283, %v3290
      %v3292 = vcombine.low %v2566, %v2574
      %v3293 = vcombine.low %v2582, %v2581
      %v3295 = vunpack.c.l.s4 1983009808
      %v3296 = vunpack.c.0.s8 %v3295
      %v3297 = vlaneseq
      %v3298 = vshrl.u32 %v3297, 7
      %v3299 = vsub.s32 %v3296, %v3298
      %v3300 = vrot.slane %v3292, %v3299
      %v3302 = vunpack.c.l.s4 1983009808
      %v3303 = vunpack.c.0.s8 %v3302
      %v3304 = vlaneseq
      %v3305 = vshrl.u32 %v3304, 7
      %v3306 = vsub.s32 %v3303, %v3305
      %v3307 = vrot.slane %v3293, %v3306
      %v3308 = vcombine.low %v3300, %v3307
      %v3309 = vcombine.low %v2583, %v2590
      %v3310 = vcombine.low %v2598, %v2606
      %v3312 = vunpack.c.l.s4 1983009808
      %v3313 = vunpack.c.0.s8 %v3312
      %v3314 = vlaneseq
      %v3315 = vshrl.u32 %v3314, 7
      %v3316 = vsub.s32 %v3313, %v3315
      %v3317 = vrot.slane %v3309, %v3316
      %v3319 = vunpack.c.l.s4 1983009808
      %v3320 = vunpack.c.0.s8 %v3319
      %v3321 = vlaneseq
      %v3322 = vshrl.u32 %v3321, 7
      %v3323 = vsub.s32 %v3320, %v3322
      %v3324 = vrot.slane %v3310, %v3323
      %v3325 = vcombine.low %v3317, %v3324
      %v3326 = vcombine.low %v2605, %v2607
      %v3327 = vcombine.low %v2615, %v2623
      %v3329 = vunpack.c.l.s4 1983009808
      %v3330 = vunpack.c.0.s8 %v3329
      %v3331 = vlaneseq
      %v3332 = vshrl.u32 %v3331, 7
      %v3333 = vsub.s32 %v3330, %v3332
      %v3334 = vrot.slane %v3326, %v3333
      %v3336 = vunpack.c.l.s4 1983009808
      %v3337 = vunpack.c.0.s8 %v3336
      %v3338 = vlaneseq
      %v3339 = vshrl.u32 %v3338, 7
      %v3340 = vsub.s32 %v3337, %v3339
      %v3341 = vrot.slane %v3327, %v3340
      %v3342 = vcombine.low %v3334, %v3341
      %v3343 = vcombine.low %v2622, %v2624
      %v3344 = vcombine.low %v2631, %v2639
      %v3346 = vunpack.c.l.s4 1983009808
      %v3347 = vunpack.c.0.s8 %v3346
      %v3348 = vlaneseq
      %v3349 = vshrl.u32 %v3348, 7
      %v3350 = vsub.s32 %v3347, %v3349
      %v3351 = vrot.slane %v3343, %v3350
      %v3353 = vunpack.c.l.s4 1983009808
      %v3354 = vunpack.c.0.s8 %v3353
      %v3355 = vlaneseq
      %v3356 = vshrl.u32 %v3355, 7
      %v3357 = vsub.s32 %v3354, %v3356
      %v3358 = vrot.slane %v3344, %v3357
      %v3359 = vcombine.low %v3351, %v3358
      %v3360 = vcombine.low %v2647, %v2646
      %v3361 = vcombine.low %v2648, %v2656
      %v3363 = vunpack.c.l.s4 1983009808
      %v3364 = vunpack.c.0.s8 %v3363
      %v3365 = vlaneseq
      %v3366 = vshrl.u32 %v3365, 7
      %v3367 = vsub.s32 %v3364, %v3366
      %v3368 = vrot.slane %v3360, %v3367
      %v3370 = vunpack.c.l.s4 1983009808
      %v3371 = vunpack.c.0.s8 %v3370
      %v3372 = vlaneseq
      %v3373 = vshrl.u32 %v3372, 7
      %v3374 = vsub.s32 %v3371, %v3373
      %v3375 = vrot.slane %v3361, %v3374
      %v3376 = vcombine.low %v3368, %v3375
      %v3377 = vcombine.low %v2664, %v2663
      %v3378 = vcombine.low %v2665, %v2672
      %v3380 = vunpack.c.l.s4 1983009808
      %v3381 = vunpack.c.0.s8 %v3380
      %v3382 = vlaneseq
      %v3383 = vshrl.u32 %v3382, 7
      %v3384 = vsub.s32 %v3381, %v3383
      %v3385 = vrot.slane %v3377, %v3384
      %v3387 = vunpack.c.l.s4 1983009808
      %v3388 = vunpack.c.0.s8 %v3387
      %v3389 = vlaneseq
      %v3390 = vshrl.u32 %v3389, 7
      %v3391 = vsub.s32 %v3388, %v3390
      %v3392 = vrot.slane %v3378, %v3391
      %v3393 = vcombine.low %v3385, %v3392
      %v3394 = vcombine.low %v2680, %v2688
      %v3395 = vcombine.low %v2687, %v2689
      %v3397 = vunpack.c.l.s4 1983009808
      %v3398 = vunpack.c.0.s8 %v3397
      %v3399 = vlaneseq
      %v3400 = vshrl.u32 %v3399, 7
      %v3401 = vsub.s32 %v3398, %v3400
      %v3402 = vrot.slane %v3394, %v3401
      %v3404 = vunpack.c.l.s4 1983009808
      %v3405 = vunpack.c.0.s8 %v3404
      %v3406 = vlaneseq
      %v3407 = vshrl.u32 %v3406, 7
      %v3408 = vsub.s32 %v3405, %v3407
      %v3409 = vrot.slane %v3395, %v3408
      %v3410 = vcombine.low %v3402, %v3409
      %v3411 = vcombine.low %v2697, %v2705
      %v3412 = vcombine.low %v2704, %v2706
      %v3414 = vunpack.c.l.s4 1983009808
      %v3415 = vunpack.c.0.s8 %v3414
      %v3416 = vlaneseq
      %v3417 = vshrl.u32 %v3416, 7
      %v3418 = vsub.s32 %v3415, %v3417
      %v3419 = vrot.slane %v3411, %v3418
      %v3421 = vunpack.c.l.s4 1983009808
      %v3422 = vunpack.c.0.s8 %v3421
      %v3423 = vlaneseq
      %v3424 = vshrl.u32 %v3423, 7
      %v3425 = vsub.s32 %v3422, %v3424
      %v3426 = vrot.slane %v3412, %v3425
      %v3427 = vcombine.low %v3419, %v3426
      %v3428 = vcombine.low %v2713, %v2721
      %v3429 = vcombine.low %v2729, %v2728
      %v3431 = vunpack.c.l.s4 1983009808
      %v3432 = vunpack.c.0.s8 %v3431
      %v3433 = vlaneseq
      %v3434 = vshrl.u32 %v3433, 7
      %v3435 = vsub.s32 %v3432, %v3434
      %v3436 = vrot.slane %v3428, %v3435
      %v3438 = vunpack.c.l.s4 1983009808
      %v3439 = vunpack.c.0.s8 %v3438
      %v3440 = vlaneseq
      %v3441 = vshrl.u32 %v3440, 7
      %v3442 = vsub.s32 %v3439, %v3441
      %v3443 = vrot.slane %v3429, %v3442
      %v3444 = vcombine.low %v3436, %v3443
      %v3445 = vcombine.low %v2730, %v2738
      %v3446 = vcombine.low %v2746, %v2745
      %v3448 = vunpack.c.l.s4 1983009808
      %v3449 = vunpack.c.0.s8 %v3448
      %v3450 = vlaneseq
      %v3451 = vshrl.u32 %v3450, 7
      %v3452 = vsub.s32 %v3449, %v3451
      %v3453 = vrot.slane %v3445, %v3452
      %v3455 = vunpack.c.l.s4 1983009808
      %v3456 = vunpack.c.0.s8 %v3455
      %v3457 = vlaneseq
      %v3458 = vshrl.u32 %v3457, 7
      %v3459 = vsub.s32 %v3456, %v3458
      %v3460 = vrot.slane %v3446, %v3459
      %v3461 = vcombine.low %v3453, %v3460
      %v3462 = vcombine.low %v2747, %v2754
      %v3463 = vcombine.low %v2762, %v2770
      %v3465 = vunpack.c.l.s4 1983009808
      %v3466 = vunpack.c.0.s8 %v3465
      %v3467 = vlaneseq
      %v3468 = vshrl.u32 %v3467, 7
      %v3469 = vsub.s32 %v3466, %v3468
      %v3470 = vrot.slane %v3462, %v3469
      %v3472 = vunpack.c.l.s4 1983009808
      %v3473 = vunpack.c.0.s8 %v3472
      %v3474 = vlaneseq
      %v3475 = vshrl.u32 %v3474, 7
      %v3476 = vsub.s32 %v3473, %v3475
      %v3477 = vrot.slane %v3463, %v3476
      %v3478 = vcombine.low %v3470, %v3477
      %v3479 = vcombine.low %v2769, %v2771
      %v3480 = vcombine.low %v2779, %v2787
      %v3482 = vunpack.c.l.s4 1983009808
      %v3483 = vunpack.c.0.s8 %v3482
      %v3484 = vlaneseq
      %v3485 = vshrl.u32 %v3484, 7
      %v3486 = vsub.s32 %v3483, %v3485
      %v3487 = vrot.slane %v3479, %v3486
      %v3489 = vunpack.c.l.s4 1983009808
      %v3490 = vunpack.c.0.s8 %v3489
      %v3491 = vlaneseq
      %v3492 = vshrl.u32 %v3491, 7
      %v3493 = vsub.s32 %v3490, %v3492
      %v3494 = vrot.slane %v3480, %v3493
      %v3495 = vcombine.low %v3487, %v3494
      %v3496 = vcombine.low %v2786, %v2788
      %v3497 = vcombine.low %v2795, %v2803
      %v3499 = vunpack.c.l.s4 1983009808
      %v3500 = vunpack.c.0.s8 %v3499
      %v3501 = vlaneseq
      %v3502 = vshrl.u32 %v3501, 7
      %v3503 = vsub.s32 %v3500, %v3502
      %v3504 = vrot.slane %v3496, %v3503
      %v3506 = vunpack.c.l.s4 1983009808
      %v3507 = vunpack.c.0.s8 %v3506
      %v3508 = vlaneseq
      %v3509 = vshrl.u32 %v3508, 7
      %v3510 = vsub.s32 %v3507, %v3509
      %v3511 = vrot.slane %v3497, %v3510
      %v3512 = vcombine.low %v3504, %v3511
      %v3513 = vcombine.low %v2811, %v2810
      %v3514 = vcombine.low %v2812, %v2820
      %v3516 = vunpack.c.l.s4 1983009808
      %v3517 = vunpack.c.0.s8 %v3516
      %v3518 = vlaneseq
      %v3519 = vshrl.u32 %v3518, 7
      %v3520 = vsub.s32 %v3517, %v3519
      %v3521 = vrot.slane %v3513, %v3520
      %v3523 = vunpack.c.l.s4 1983009808
      %v3524 = vunpack.c.0.s8 %v3523
      %v3525 = vlaneseq
      %v3526 = vshrl.u32 %v3525, 7
      %v3527 = vsub.s32 %v3524, %v3526
      %v3528 = vrot.slane %v3514, %v3527
      %v3529 = vcombine.low %v3521, %v3528
      %v3530 = vcombine.low %v2828, %v2827
      %v3531 = vcombine.low %v2829, %v2836
      %v3533 = vunpack.c.l.s4 1983009808
      %v3534 = vunpack.c.0.s8 %v3533
      %v3535 = vlaneseq
      %v3536 = vshrl.u32 %v3535, 7
      %v3537 = vsub.s32 %v3534, %v3536
      %v3538 = vrot.slane %v3530, %v3537
      %v3540 = vunpack.c.l.s4 1983009808
      %v3541 = vunpack.c.0.s8 %v3540
      %v3542 = vlaneseq
      %v3543 = vshrl.u32 %v3542, 7
      %v3544 = vsub.s32 %v3541, %v3543
      %v3545 = vrot.slane %v3531, %v3544
      %v3546 = vcombine.low %v3538, %v3545
      %v3547 = vcombine.low %v2844, %v2852
      %v3548 = vcombine.low %v2851, %v2853
      %v3550 = vunpack.c.l.s4 1983009808
      %v3551 = vunpack.c.0.s8 %v3550
      %v3552 = vlaneseq
      %v3553 = vshrl.u32 %v3552, 7
      %v3554 = vsub.s32 %v3551, %v3553
      %v3555 = vrot.slane %v3547, %v3554
      %v3557 = vunpack.c.l.s4 1983009808
      %v3558 = vunpack.c.0.s8 %v3557
      %v3559 = vlaneseq
      %v3560 = vshrl.u32 %v3559, 7
      %v3561 = vsub.s32 %v3558, %v3560
      %v3562 = vrot.slane %v3548, %v3561
      %v3563 = vcombine.low %v3555, %v3562
      %v3564 = vcombine.low %v2861, %v2869
      %v3565 = vcombine.low %v2868, %v2870
      %v3567 = vunpack.c.l.s4 1983009808
      %v3568 = vunpack.c.0.s8 %v3567
      %v3569 = vlaneseq
      %v3570 = vshrl.u32 %v3569, 7
      %v3571 = vsub.s32 %v3568, %v3570
      %v3572 = vrot.slane %v3564, %v3571
      %v3574 = vunpack.c.l.s4 1983009808
      %v3575 = vunpack.c.0.s8 %v3574
      %v3576 = vlaneseq
      %v3577 = vshrl.u32 %v3576, 7
      %v3578 = vsub.s32 %v3575, %v3577
      %v3579 = vrot.slane %v3565, %v3578
      %v3580 = vcombine.low %v3572, %v3579
      %v3581 = vcombine.low %v2877, %v2885
      %v3582 = vcombine.low %v2893, %v2892
      %v3584 = vunpack.c.l.s4 1983009808
      %v3585 = vunpack.c.0.s8 %v3584
      %v3586 = vlaneseq
      %v3587 = vshrl.u32 %v3586, 7
      %v3588 = vsub.s32 %v3585, %v3587
      %v3589 = vrot.slane %v3581, %v3588
      %v3591 = vunpack.c.l.s4 1983009808
      %v3592 = vunpack.c.0.s8 %v3591
      %v3593 = vlaneseq
      %v3594 = vshrl.u32 %v3593, 7
      %v3595 = vsub.s32 %v3592, %v3594
      %v3596 = vrot.slane %v3582, %v3595
      %v3597 = vcombine.low %v3589, %v3596
      %v3598 = vcombine.low %v2894, %v2902
      %v3599 = vcombine.low %v2910, %v2909
      %v3601 = vunpack.c.l.s4 1983009808
      %v3602 = vunpack.c.0.s8 %v3601
      %v3603 = vlaneseq
      %v3604 = vshrl.u32 %v3603, 7
      %v3605 = vsub.s32 %v3602, %v3604
      %v3606 = vrot.slane %v3598, %v3605
      %v3608 = vunpack.c.l.s4 1983009808
      %v3609 = vunpack.c.0.s8 %v3608
      %v3610 = vlaneseq
      %v3611 = vshrl.u32 %v3610, 7
      %v3612 = vsub.s32 %v3609, %v3611
      %v3613 = vrot.slane %v3599, %v3612
      %v3614 = vcombine.low %v3606, %v3613
      %v3615 = vcombine.low %v2911, %v2918
      %v3616 = vcombine.low %v2926, %v2934
      %v3618 = vunpack.c.l.s4 1983009808
      %v3619 = vunpack.c.0.s8 %v3618
      %v3620 = vlaneseq
      %v3621 = vshrl.u32 %v3620, 7
      %v3622 = vsub.s32 %v3619, %v3621
      %v3623 = vrot.slane %v3615, %v3622
      %v3625 = vunpack.c.l.s4 1983009808
      %v3626 = vunpack.c.0.s8 %v3625
      %v3627 = vlaneseq
      %v3628 = vshrl.u32 %v3627, 7
      %v3629 = vsub.s32 %v3626, %v3628
      %v3630 = vrot.slane %v3616, %v3629
      %v3631 = vcombine.low %v3623, %v3630
      %v3632 = vcombine.low %v2933, %v2935
      %v3633 = vcombine.low %v2943, %v2951
      %v3635 = vunpack.c.l.s4 1983009808
      %v3636 = vunpack.c.0.s8 %v3635
      %v3637 = vlaneseq
      %v3638 = vshrl.u32 %v3637, 7
      %v3639 = vsub.s32 %v3636, %v3638
      %v3640 = vrot.slane %v3632, %v3639
      %v3642 = vunpack.c.l.s4 1983009808
      %v3643 = vunpack.c.0.s8 %v3642
      %v3644 = vlaneseq
      %v3645 = vshrl.u32 %v3644, 7
      %v3646 = vsub.s32 %v3643, %v3645
      %v3647 = vrot.slane %v3633, %v3646
      %v3648 = vcombine.low %v3640, %v3647
      %v3649 = vcombine.low %v2950, %v2952
      %v3650 = vcombine.low %v2959, %v2967
      %v3652 = vunpack.c.l.s4 1983009808
      %v3653 = vunpack.c.0.s8 %v3652
      %v3654 = vlaneseq
      %v3655 = vshrl.u32 %v3654, 7
      %v3656 = vsub.s32 %v3653, %v3655
      %v3657 = vrot.slane %v3649, %v3656
      %v3659 = vunpack.c.l.s4 1983009808
      %v3660 = vunpack.c.0.s8 %v3659
      %v3661 = vlaneseq
      %v3662 = vshrl.u32 %v3661, 7
      %v3663 = vsub.s32 %v3660, %v3662
      %v3664 = vrot.slane %v3650, %v3663
      %v3665 = vcombine.low %v3657, %v3664
      %v3666 = vcombine.low %v2975, %v2974
      %v3667 = vcombine.low %v2976, %v2984
      %v3669 = vunpack.c.l.s4 1983009808
      %v3670 = vunpack.c.0.s8 %v3669
      %v3671 = vlaneseq
      %v3672 = vshrl.u32 %v3671, 7
      %v3673 = vsub.s32 %v3670, %v3672
      %v3674 = vrot.slane %v3666, %v3673
      %v3676 = vunpack.c.l.s4 1983009808
      %v3677 = vunpack.c.0.s8 %v3676
      %v3678 = vlaneseq
      %v3679 = vshrl.u32 %v3678, 7
      %v3680 = vsub.s32 %v3677, %v3679
      %v3681 = vrot.slane %v3667, %v3680
      %v3682 = vcombine.low %v3674, %v3681
      %v3683 = vcombine.low %v2992, %v2991
      %v3684 = vcombine.low %v2993, %v3000
      %v3686 = vunpack.c.l.s4 1983009808
      %v3687 = vunpack.c.0.s8 %v3686
      %v3688 = vlaneseq
      %v3689 = vshrl.u32 %v3688, 7
      %v3690 = vsub.s32 %v3687, %v3689
      %v3691 = vrot.slane %v3683, %v3690
      %v3693 = vunpack.c.l.s4 1983009808
      %v3694 = vunpack.c.0.s8 %v3693
      %v3695 = vlaneseq
      %v3696 = vshrl.u32 %v3695, 7
      %v3697 = vsub.s32 %v3694, %v3696
      %v3698 = vrot.slane %v3684, %v3697
      %v3699 = vcombine.low %v3691, %v3698
      %v3700 = vcombine.low %v3008, %v3016
      %v3701 = vcombine.low %v3015, %v3017
      %v3703 = vunpack.c.l.s4 1983009808
      %v3704 = vunpack.c.0.s8 %v3703
      %v3705 = vlaneseq
      %v3706 = vshrl.u32 %v3705, 7
      %v3707 = vsub.s32 %v3704, %v3706
      %v3708 = vrot.slane %v3700, %v3707
      %v3710 = vunpack.c.l.s4 1983009808
      %v3711 = vunpack.c.0.s8 %v3710
      %v3712 = vlaneseq
      %v3713 = vshrl.u32 %v3712, 7
      %v3714 = vsub.s32 %v3711, %v3713
      %v3715 = vrot.slane %v3701, %v3714
      %v3716 = vcombine.low %v3708, %v3715
      %v3717 = vcombine.low %v3025, %v3033
      %v3718 = vcombine.low %v3032, %v3034
      %v3720 = vunpack.c.l.s4 1983009808
      %v3721 = vunpack.c.0.s8 %v3720
      %v3722 = vlaneseq
      %v3723 = vshrl.u32 %v3722, 7
      %v3724 = vsub.s32 %v3721, %v3723
      %v3725 = vrot.slane %v3717, %v3724
      %v3727 = vunpack.c.l.s4 1983009808
      %v3728 = vunpack.c.0.s8 %v3727
      %v3729 = vlaneseq
      %v3730 = vshrl.u32 %v3729, 7
      %v3731 = vsub.s32 %v3728, %v3730
      %v3732 = vrot.slane %v3718, %v3731
      %v3733 = vcombine.low %v3725, %v3732
      %v3734 = vcombine.low %v3041, %v3049
      %v3735 = vcombine.low %v3057, %v3056
      %v3737 = vunpack.c.l.s4 1983009808
      %v3738 = vunpack.c.0.s8 %v3737
      %v3739 = vlaneseq
      %v3740 = vshrl.u32 %v3739, 7
      %v3741 = vsub.s32 %v3738, %v3740
      %v3742 = vrot.slane %v3734, %v3741
      %v3744 = vunpack.c.l.s4 1983009808
      %v3745 = vunpack.c.0.s8 %v3744
      %v3746 = vlaneseq
      %v3747 = vshrl.u32 %v3746, 7
      %v3748 = vsub.s32 %v3745, %v3747
      %v3749 = vrot.slane %v3735, %v3748
      %v3750 = vcombine.low %v3742, %v3749
      %v3751 = vcombine.low %v3058, %v3066
      %v3752 = vcombine.low %v3074, %v3073
      %v3754 = vunpack.c.l.s4 1983009808
      %v3755 = vunpack.c.0.s8 %v3754
      %v3756 = vlaneseq
      %v3757 = vshrl.u32 %v3756, 7
      %v3758 = vsub.s32 %v3755, %v3757
      %v3759 = vrot.slane %v3751, %v3758
      %v3761 = vunpack.c.l.s4 1983009808
      %v3762 = vunpack.c.0.s8 %v3761
      %v3763 = vlaneseq
      %v3764 = vshrl.u32 %v3763, 7
      %v3765 = vsub.s32 %v3762, %v3764
      %v3766 = vrot.slane %v3752, %v3765
      %v3767 = vcombine.low %v3759, %v3766
      %v3768 = vcombine.low %v3075, %v3082
      %v3770 = vunpack.c.l.s4 1983009808
      %v3771 = vunpack.c.0.s8 %v3770
      %v3772 = vlaneseq
      %v3773 = vshrl.u32 %v3772, 7
      %v3774 = vsub.s32 %v3771, %v3773
      %v3775 = vrot.slane %v3768, %v3774
      %vm3776 = vcmask 293888
      %v3778 = vsel %vm3776, %v425, 0
      %v3780 = vsel %vm3776, %v3104, 0
      %v3782 = vsel %vm3776, %v3121, 0
      %v3784 = vsel %vm3776, %v3138, 0
      %v3786 = vsel %vm3776, %v3155, 0
      %v3788 = vsel %vm3776, %v3172, 0
      %v3790 = vsel %vm3776, %v3189, 0
      %v3792 = vsel %vm3776, %v3206, 0
      %v3794 = vsel %vm3776, %v3223, 0
      %v3796 = vsel %vm3776, %v3240, 0
      %v3798 = vsel %vm3776, %v3257, 0
      %v3800 = vsel %vm3776, %v3274, 0
      %v3802 = vsel %vm3776, %v3291, 0
      %v3804 = vsel %vm3776, %v3308, 0
      %v3806 = vsel %vm3776, %v3325, 0
      %v3808 = vsel %vm3776, %v3342, 0
      %v3810 = vsel %vm3776, %v3359, 0
      %v3812 = vsel %vm3776, %v3376, 0
      %v3814 = vsel %vm3776, %v3393, 0
      %v3816 = vsel %vm3776, %v3410, 0
      %v3818 = vsel %vm3776, %v3427, 0
      %v3820 = vsel %vm3776, %v3444, 0
      %v3822 = vsel %vm3776, %v3461, 0
      %v3824 = vsel %vm3776, %v3478, 0
      %v3826 = vsel %vm3776, %v3495, 0
      %v3828 = vsel %vm3776, %v3512, 0
      %v3830 = vsel %vm3776, %v3529, 0
      %v3832 = vsel %vm3776, %v3546, 0
      %v3834 = vsel %vm3776, %v3563, 0
      %v3836 = vsel %vm3776, %v3580, 0
      %v3838 = vsel %vm3776, %v3597, 0
      %v3840 = vsel %vm3776, %v3614, 0
      %v3842 = vsel %vm3776, %v3631, 0
      %v3844 = vsel %vm3776, %v3648, 0
      %v3846 = vsel %vm3776, %v3665, 0
      %v3848 = vsel %vm3776, %v3682, 0
      %v3850 = vsel %vm3776, %v3699, 0
      %v3852 = vsel %vm3776, %v3716, 0
      %v3854 = vsel %vm3776, %v3733, 0
      %v3856 = vsel %vm3776, %v3750, 0
      %v3858 = vsel %vm3776, %v3767, 0
      %v3860 = vsel %vm3776, %v3775, 0
      %3862 = vmatprep.subr.mxu0 0.0
      %3863 = vmatpush1.xpose.msra.mxu0 %v3780
      %3864 = vmatprep.subr.mxu0 0.0
      %3865 = vmatpush1.xpose.msra.mxu0 %v3782
      %3866 = vmatprep.subr.mxu0 0.0
      %3867 = vmatpush1.xpose.msra.mxu0 %v3784
      %3868 = vmatprep.subr.mxu0 0.0
      %3869 = vmatpush1.xpose.msra.mxu0 %v3786
      %3870 = vmatprep.subr.mxu0 0.0
      %3871 = vmatpush1.xpose.msra.mxu0 %v3788
      %3872 = vmatprep.subr.mxu0 0.0
      %3873 = vmatpush1.xpose.msra.mxu0 %v3790
      %3874 = vmatprep.subr.mxu0 0.0
      %3875 = vmatpush1.xpose.msra.mxu0 %v3792
      %3876 = vmatprep.subr.mxu0 0.0
      %3877 = vmatpush1.xpose.msra.mxu0 %v3794
      %3878 = vmatprep.subr.mxu0 0.0
      %3879 = vmatpush1.xpose.msra.mxu0 %v3796
      %3880 = vmatprep.subr.mxu0 0.0
      %3881 = vmatpush1.xpose.msra.mxu0 %v3798
      %3882 = vmatprep.subr.mxu0 0.0
      %3883 = vmatpush1.xpose.msra.mxu0 %v3800
      %3884 = vmatprep.subr.mxu0 0.0
      %3885 = vmatpush1.xpose.msra.mxu0 %v3802
      %3886 = vmatprep.subr.mxu0 0.0
      %3887 = vmatpush1.xpose.msra.mxu0 %v3804
      %3888 = vmatprep.subr.mxu0 0.0
      %3889 = vmatpush1.xpose.msra.mxu0 %v3806
      %3890 = vmatprep.subr.mxu0 0.0
      %3891 = vmatpush1.xpose.msra.mxu0 %v3808
      %3892 = vmatprep.subr.mxu0 0.0
      %3893 = vmatpush1.xpose.msra.mxu0 %v3810
      %3894 = vmatprep.subr.mxu0 0.0
      %3895 = vmatpush1.xpose.msra.mxu0 %v3812
      %3896 = vmatprep.subr.mxu0 0.0
      %3897 = vmatpush1.xpose.msra.mxu0 %v3814
      %3898 = vmatprep.subr.mxu0 0.0
      %3899 = vmatpush1.xpose.msra.mxu0 %v3816
      %3900 = vmatprep.subr.mxu0 0.0
      %3901 = vmatpush1.xpose.msra.mxu0 %v3818
      %3902 = vmatprep.subr.mxu0 0.0
      %3903 = vmatpush1.xpose.msra.mxu0 %v3820
      %3904 = vmatprep.subr.mxu0 0.0
      %3905 = vmatpush1.xpose.msra.mxu0 %v3822
      %3906 = vmatprep.subr.mxu0 0.0
      %3907 = vmatpush1.xpose.msra.mxu0 %v3824
      %3908 = vmatprep.subr.mxu0 0.0
      %3909 = vmatpush1.xpose.msra.mxu0 %v3826
      %3910 = vmatprep.subr.mxu0 0.0
      %3911 = vmatpush1.xpose.msra.mxu0 %v3828
      %3912 = vmatprep.subr.mxu0 0.0
      %3913 = vmatpush1.xpose.msra.mxu0 %v3830
      %3914 = vmatprep.subr.mxu0 0.0
      %3915 = vmatpush1.xpose.msra.mxu0 %v3832
      %3916 = vmatprep.subr.mxu0 0.0
      %3917 = vmatpush1.xpose.msra.mxu0 %v3834
      %3918 = vmatprep.subr.mxu0 0.0
      %3919 = vmatpush1.xpose.msra.mxu0 %v3836
      %3920 = vmatprep.subr.mxu0 0.0
      %3921 = vmatpush1.xpose.msra.mxu0 %v3838
      %3922 = vmatprep.subr.mxu0 0.0
      %3923 = vmatpush1.xpose.msra.mxu0 %v3840
      %3924 = vmatprep.subr.mxu0 0.0
      %3925 = vmatpush1.xpose.msra.mxu0 %v3842
      %3926 = vmatprep.mubr.f32.mxu0 0.0
      %3927 = vmatmul.mubr.f32.gmra.mrb[0].mxu0 %v3778
      %v3928 = vpop.f32.mrb[0].mxu0
      %v3929 = vadd.f32 %v3086, %v3928
      %v3930 = vpop.f32.mrb[0].mxu0
      %v3931 = vadd.f32 %v3086, %v3930
      %3932 = vdwg.mxu0
      %3933 = vmatprep.subr.mxu0 0.0
      %3934 = vmatpush1.xpose.msra.mxu0 %v3844
      %3935 = vmatprep.subr.mxu0 0.0
      %3936 = vmatpush1.xpose.msra.mxu0 %v3846
      %3937 = vmatprep.subr.mxu0 0.0
      %3938 = vmatpush1.xpose.msra.mxu0 %v3848
      %3939 = vmatprep.subr.mxu0 0.0
      %3940 = vmatpush1.xpose.msra.mxu0 %v3850
      %3941 = vmatprep.subr.mxu0 0.0
      %3942 = vmatpush1.xpose.msra.mxu0 %v3852
      %3943 = vmatprep.subr.mxu0 0.0
      %3944 = vmatpush1.xpose.msra.mxu0 %v3854
      %3945 = vmatprep.subr.mxu0 0.0
      %3946 = vmatpush1.xpose.msra.mxu0 %v3856
      %3947 = vmatprep.subr.mxu0 0.0
      %3948 = vmatpush1.xpose.msra.mxu0 %v3858
      %3949 = vmatprep.subr.mxu0 0.0
      %3950 = vmatpush1.xpose.msra.mxu0 %v3860
      %3951 = vmatprep.subr.mxu0 0.0
      %3952 = vmatpush1.xpose.msra.mxu0 0.0
      %3953 = vmatprep.subr.mxu0 0.0
      %3954 = vmatpush1.xpose.msra.mxu0 0.0
      %3955 = vmatprep.subr.mxu0 0.0
      %3956 = vmatpush1.xpose.msra.mxu0 0.0
      %3957 = vmatprep.subr.mxu0 0.0
      %3958 = vmatpush1.xpose.msra.mxu0 0.0
      %3959 = vmatprep.subr.mxu0 0.0
      %3960 = vmatpush1.xpose.msra.mxu0 0.0
      %3961 = vmatprep.subr.mxu0 0.0
      %3962 = vmatpush1.xpose.msra.mxu0 0.0
      %3963 = vmatprep.subr.mxu0 0.0
      %3964 = vmatpush1.xpose.msra.mxu0 0.0
      %3965 = vmatprep.subr.mxu0 0.0
      %3966 = vmatpush1.xpose.msra.mxu0 0.0
      %3967 = vmatprep.subr.mxu0 0.0
      %3968 = vmatpush1.xpose.msra.mxu0 0.0
      %3969 = vmatprep.subr.mxu0 0.0
      %3970 = vmatpush1.xpose.msra.mxu0 0.0
      %3971 = vmatprep.subr.mxu0 0.0
      %3972 = vmatpush1.xpose.msra.mxu0 0.0
      %3973 = vmatprep.subr.mxu0 0.0
      %3974 = vmatpush1.xpose.msra.mxu0 0.0
      %3975 = vmatprep.subr.mxu0 0.0
      %3976 = vmatpush1.xpose.msra.mxu0 0.0
      %3977 = vmatprep.subr.mxu0 0.0
      %3978 = vmatpush1.xpose.msra.mxu0 0.0
      %3979 = vmatprep.subr.mxu0 0.0
      %3980 = vmatpush1.xpose.msra.mxu0 0.0
      %3981 = vmatprep.subr.mxu0 0.0
      %3982 = vmatpush1.xpose.msra.mxu0 0.0
      %3983 = vmatprep.subr.mxu0 0.0
      %3984 = vmatpush1.xpose.msra.mxu0 0.0
      %3985 = vmatprep.subr.mxu0 0.0
      %3986 = vmatpush1.xpose.msra.mxu0 0.0
      %3987 = vmatprep.subr.mxu0 0.0
      %3988 = vmatpush1.xpose.msra.mxu0 0.0
      %3989 = vmatprep.subr.mxu0 0.0
      %3990 = vmatpush1.xpose.msra.mxu0 0.0
      %3991 = vmatprep.subr.mxu0 0.0
      %3992 = vmatpush1.xpose.msra.mxu0 0.0
      %3993 = vmatprep.subr.mxu0 0.0
      %3994 = vmatpush1.xpose.msra.mxu0 0.0
      %3995 = vmatprep.subr.mxu0 0.0
      %3996 = vmatpush1.xpose.msra.mxu0 0.0
      %3997 = vmatprep.mubr.f32.mxu0 0.0
      %3998 = vmatmul.mubr.f32.gmra.mrb[0].mxu0 %v3778
      %v3999 = vpop.f32.mrb[0].mxu0
      %v4000 = vadd.f32 %v3086, %v3999
      %v4001 = vpop.f32.mrb[0].mxu0
      %4002 = vdwg.mxu0
      %4003 = vxpose.xlu0.b32.start [1/16] %v3929, 128
      %4004 = vxpose.xlu0.b32.cont [2/16] 0.0, 128
      %4005 = vxpose.xlu0.b32.cont [3/16] 0.0, 128
      %4006 = vxpose.xlu0.b32.cont [4/16] 0.0, 128
      %4007 = vxpose.xlu0.b32.cont [5/16] 0.0, 128
      %4008 = vxpose.xlu0.b32.cont [6/16] 0.0, 128
      %4009 = vxpose.xlu0.b32.cont [7/16] 0.0, 128
      %4010 = vxpose.xlu0.b32.cont [8/16] 0.0, 128
      %4011 = vxpose.xlu0.b32.cont [9/16] 0.0, 128
      %4012 = vxpose.xlu0.b32.cont [10/16] 0.0, 128
      %4013 = vxpose.xlu0.b32.cont [11/16] 0.0, 128
      %4014 = vxpose.xlu0.b32.cont [12/16] 0.0, 128
      %4015 = vxpose.xlu0.b32.cont [13/16] 0.0, 128
      %4016 = vxpose.xlu0.b32.cont [14/16] 0.0, 128
      %4017 = vxpose.xlu0.b32.cont [15/16] 0.0, 128
      %4018 = vxpose.xlu0.b32.end [16/16] 0.0, 128
      %v4019 = vpop.trf.xlu0
      %v4020 = vpop.trf.xlu0
      %v4021 = vpop.trf.xlu0
      %v4022 = vpop.trf.xlu0
      %v4023 = vpop.trf.xlu0
      %v4024 = vpop.trf.xlu0
      %v4025 = vpop.trf.xlu0
      %v4026 = vpop.trf.xlu0
      %v4027 = vpop.trf.xlu0
      %v4028 = vpop.trf.xlu0
      %v4029 = vpop.trf.xlu0
      %v4030 = vpop.trf.xlu0
      %v4031 = vpop.trf.xlu0
      %v4032 = vpop.trf.xlu0
      %v4033 = vpop.trf.xlu0
      %v4034 = vpop.trf.xlu0
      %4035 = vxpose.xlu0.b32.start [1/16] %v3931, 128
      %4036 = vxpose.xlu0.b32.cont [2/16] 0.0, 128
      %4037 = vxpose.xlu0.b32.cont [3/16] 0.0, 128
      %4038 = vxpose.xlu0.b32.cont [4/16] 0.0, 128
      %4039 = vxpose.xlu0.b32.cont [5/16] 0.0, 128
      %4040 = vxpose.xlu0.b32.cont [6/16] 0.0, 128
      %4041 = vxpose.xlu0.b32.cont [7/16] 0.0, 128
      %4042 = vxpose.xlu0.b32.cont [8/16] 0.0, 128
      %4043 = vxpose.xlu0.b32.cont [9/16] 0.0, 128
      %4044 = vxpose.xlu0.b32.cont [10/16] 0.0, 128
      %4045 = vxpose.xlu0.b32.cont [11/16] 0.0, 128
      %4046 = vxpose.xlu0.b32.cont [12/16] 0.0, 128
      %4047 = vxpose.xlu0.b32.cont [13/16] 0.0, 128
      %4048 = vxpose.xlu0.b32.cont [14/16] 0.0, 128
      %4049 = vxpose.xlu0.b32.cont [15/16] 0.0, 128
      %4050 = vxpose.xlu0.b32.end [16/16] 0.0, 128
      %v4051 = vpop.trf.xlu0
      %v4052 = vpop.trf.xlu0
      %v4053 = vpop.trf.xlu0
      %v4054 = vpop.trf.xlu0
      %v4055 = vpop.trf.xlu0
      %v4056 = vpop.trf.xlu0
      %v4057 = vpop.trf.xlu0
      %v4058 = vpop.trf.xlu0
      %v4059 = vpop.trf.xlu0
      %v4060 = vpop.trf.xlu0
      %v4061 = vpop.trf.xlu0
      %v4062 = vpop.trf.xlu0
      %v4063 = vpop.trf.xlu0
      %v4064 = vpop.trf.xlu0
      %v4065 = vpop.trf.xlu0
      %v4066 = vpop.trf.xlu0
      %4067 = vxpose.xlu0.b32.start [1/16] %v4000, 128
      %4068 = vxpose.xlu0.b32.cont [2/16] 0.0, 128
      %4069 = vxpose.xlu0.b32.cont [3/16] 0.0, 128
      %4070 = vxpose.xlu0.b32.cont [4/16] 0.0, 128
      %4071 = vxpose.xlu0.b32.cont [5/16] 0.0, 128
      %4072 = vxpose.xlu0.b32.cont [6/16] 0.0, 128
      %4073 = vxpose.xlu0.b32.cont [7/16] 0.0, 128
      %4074 = vxpose.xlu0.b32.cont [8/16] 0.0, 128
      %4075 = vxpose.xlu0.b32.cont [9/16] 0.0, 128
      %4076 = vxpose.xlu0.b32.cont [10/16] 0.0, 128
      %4077 = vxpose.xlu0.b32.cont [11/16] 0.0, 128
      %4078 = vxpose.xlu0.b32.cont [12/16] 0.0, 128
      %4079 = vxpose.xlu0.b32.cont [13/16] 0.0, 128
      %4080 = vxpose.xlu0.b32.cont [14/16] 0.0, 128
      %4081 = vxpose.xlu0.b32.cont [15/16] 0.0, 128
      %4082 = vxpose.xlu0.b32.end [16/16] 0.0, 128
      %v4083 = vpop.trf.xlu0
      %v4084 = vpop.trf.xlu0
      %v4085 = vpop.trf.xlu0
      %v4086 = vpop.trf.xlu0
      %v4087 = vpop.trf.xlu0
      %v4088 = vpop.trf.xlu0
      %v4089 = vpop.trf.xlu0
      %v4090 = vpop.trf.xlu0
      %v4091 = vpop.trf.xlu0
      %v4092 = vpop.trf.xlu0
      %v4093 = vpop.trf.xlu0
      %v4094 = vpop.trf.xlu0
      %v4095 = vpop.trf.xlu0
      %v4096 = vpop.trf.xlu0
      %v4097 = vpop.trf.xlu0
      %v4098 = vpop.trf.xlu0
      %v4140 = vcombine.high %v4019, %v4019
      %v4142 = vunpack.c.l.s4 1983009808
      %v4143 = vunpack.c.0.s8 %v4142
      %v4144 = vlaneseq
      %v4145 = vshrl.u32 %v4144, 7
      %v4146 = vsub.s32 %v4143, %v4145
      %v4147 = vrot.slane %v4019, %v4146
      %v4149 = vunpack.c.l.s4 1983009808
      %v4150 = vunpack.c.0.s8 %v4149
      %v4151 = vlaneseq
      %v4152 = vshrl.u32 %v4151, 7
      %v4153 = vsub.s32 %v4150, %v4152
      %v4154 = vrot.slane %v4140, %v4153
      %v4155 = vcombine.high %v4147, %v4147
      %v4156 = vcombine.high %v4154, %v4154
      %v4157 = vcombine.high %v4020, %v4020
      %v4159 = vunpack.c.l.s4 1983009808
      %v4160 = vunpack.c.0.s8 %v4159
      %v4161 = vlaneseq
      %v4162 = vshrl.u32 %v4161, 7
      %v4163 = vsub.s32 %v4160, %v4162
      %v4164 = vrot.slane %v4020, %v4163
      %v4166 = vunpack.c.l.s4 1983009808
      %v4167 = vunpack.c.0.s8 %v4166
      %v4168 = vlaneseq
      %v4169 = vshrl.u32 %v4168, 7
      %v4170 = vsub.s32 %v4167, %v4169
      %v4171 = vrot.slane %v4157, %v4170
      %v4172 = vcombine.high %v4164, %v4164
      %v4173 = vcombine.high %v4171, %v4171
      %v4174 = vcombine.high %v4021, %v4021
      %v4176 = vunpack.c.l.s4 1983009808
      %v4177 = vunpack.c.0.s8 %v4176
      %v4178 = vlaneseq
      %v4179 = vshrl.u32 %v4178, 7
      %v4180 = vsub.s32 %v4177, %v4179
      %v4181 = vrot.slane %v4021, %v4180
      %v4183 = vunpack.c.l.s4 1983009808
      %v4184 = vunpack.c.0.s8 %v4183
      %v4185 = vlaneseq
      %v4186 = vshrl.u32 %v4185, 7
      %v4187 = vsub.s32 %v4184, %v4186
      %v4188 = vrot.slane %v4174, %v4187
      %v4189 = vcombine.high %v4181, %v4181
      %v4190 = vcombine.high %v4188, %v4188
      %v4191 = vcombine.high %v4022, %v4022
      %v4193 = vunpack.c.l.s4 1983009808
      %v4194 = vunpack.c.0.s8 %v4193
      %v4195 = vlaneseq
      %v4196 = vshrl.u32 %v4195, 7
      %v4197 = vsub.s32 %v4194, %v4196
      %v4198 = vrot.slane %v4022, %v4197
      %v4200 = vunpack.c.l.s4 1983009808
      %v4201 = vunpack.c.0.s8 %v4200
      %v4202 = vlaneseq
      %v4203 = vshrl.u32 %v4202, 7
      %v4204 = vsub.s32 %v4201, %v4203
      %v4205 = vrot.slane %v4191, %v4204
      %v4206 = vcombine.high %v4198, %v4198
      %v4207 = vcombine.high %v4205, %v4205
      %v4208 = vcombine.high %v4023, %v4023
      %v4210 = vunpack.c.l.s4 1983009808
      %v4211 = vunpack.c.0.s8 %v4210
      %v4212 = vlaneseq
      %v4213 = vshrl.u32 %v4212, 7
      %v4214 = vsub.s32 %v4211, %v4213
      %v4215 = vrot.slane %v4023, %v4214
      %v4217 = vunpack.c.l.s4 1983009808
      %v4218 = vunpack.c.0.s8 %v4217
      %v4219 = vlaneseq
      %v4220 = vshrl.u32 %v4219, 7
      %v4221 = vsub.s32 %v4218, %v4220
      %v4222 = vrot.slane %v4208, %v4221
      %v4223 = vcombine.high %v4215, %v4215
      %v4224 = vcombine.high %v4222, %v4222
      %v4225 = vcombine.high %v4024, %v4024
      %v4227 = vunpack.c.l.s4 1983009808
      %v4228 = vunpack.c.0.s8 %v4227
      %v4229 = vlaneseq
      %v4230 = vshrl.u32 %v4229, 7
      %v4231 = vsub.s32 %v4228, %v4230
      %v4232 = vrot.slane %v4024, %v4231
      %v4234 = vunpack.c.l.s4 1983009808
      %v4235 = vunpack.c.0.s8 %v4234
      %v4236 = vlaneseq
      %v4237 = vshrl.u32 %v4236, 7
      %v4238 = vsub.s32 %v4235, %v4237
      %v4239 = vrot.slane %v4225, %v4238
      %v4240 = vcombine.high %v4232, %v4232
      %v4241 = vcombine.high %v4239, %v4239
      %v4242 = vcombine.high %v4025, %v4025
      %v4244 = vunpack.c.l.s4 1983009808
      %v4245 = vunpack.c.0.s8 %v4244
      %v4246 = vlaneseq
      %v4247 = vshrl.u32 %v4246, 7
      %v4248 = vsub.s32 %v4245, %v4247
      %v4249 = vrot.slane %v4025, %v4248
      %v4251 = vunpack.c.l.s4 1983009808
      %v4252 = vunpack.c.0.s8 %v4251
      %v4253 = vlaneseq
      %v4254 = vshrl.u32 %v4253, 7
      %v4255 = vsub.s32 %v4252, %v4254
      %v4256 = vrot.slane %v4242, %v4255
      %v4257 = vcombine.high %v4249, %v4249
      %v4258 = vcombine.high %v4256, %v4256
      %v4259 = vcombine.high %v4026, %v4026
      %v4261 = vunpack.c.l.s4 1983009808
      %v4262 = vunpack.c.0.s8 %v4261
      %v4263 = vlaneseq
      %v4264 = vshrl.u32 %v4263, 7
      %v4265 = vsub.s32 %v4262, %v4264
      %v4266 = vrot.slane %v4026, %v4265
      %v4268 = vunpack.c.l.s4 1983009808
      %v4269 = vunpack.c.0.s8 %v4268
      %v4270 = vlaneseq
      %v4271 = vshrl.u32 %v4270, 7
      %v4272 = vsub.s32 %v4269, %v4271
      %v4273 = vrot.slane %v4259, %v4272
      %v4274 = vcombine.high %v4266, %v4266
      %v4275 = vcombine.high %v4273, %v4273
      %v4276 = vcombine.high %v4027, %v4027
      %v4278 = vunpack.c.l.s4 1983009808
      %v4279 = vunpack.c.0.s8 %v4278
      %v4280 = vlaneseq
      %v4281 = vshrl.u32 %v4280, 7
      %v4282 = vsub.s32 %v4279, %v4281
      %v4283 = vrot.slane %v4027, %v4282
      %v4285 = vunpack.c.l.s4 1983009808
      %v4286 = vunpack.c.0.s8 %v4285
      %v4287 = vlaneseq
      %v4288 = vshrl.u32 %v4287, 7
      %v4289 = vsub.s32 %v4286, %v4288
      %v4290 = vrot.slane %v4276, %v4289
      %v4291 = vcombine.high %v4283, %v4283
      %v4292 = vcombine.high %v4290, %v4290
      %v4293 = vcombine.high %v4028, %v4028
      %v4295 = vunpack.c.l.s4 1983009808
      %v4296 = vunpack.c.0.s8 %v4295
      %v4297 = vlaneseq
      %v4298 = vshrl.u32 %v4297, 7
      %v4299 = vsub.s32 %v4296, %v4298
      %v4300 = vrot.slane %v4028, %v4299
      %v4302 = vunpack.c.l.s4 1983009808
      %v4303 = vunpack.c.0.s8 %v4302
      %v4304 = vlaneseq
      %v4305 = vshrl.u32 %v4304, 7
      %v4306 = vsub.s32 %v4303, %v4305
      %v4307 = vrot.slane %v4293, %v4306
      %v4308 = vcombine.high %v4300, %v4300
      %v4309 = vcombine.high %v4307, %v4307
      %v4310 = vcombine.high %v4029, %v4029
      %v4312 = vunpack.c.l.s4 1983009808
      %v4313 = vunpack.c.0.s8 %v4312
      %v4314 = vlaneseq
      %v4315 = vshrl.u32 %v4314, 7
      %v4316 = vsub.s32 %v4313, %v4315
      %v4317 = vrot.slane %v4029, %v4316
      %v4319 = vunpack.c.l.s4 1983009808
      %v4320 = vunpack.c.0.s8 %v4319
      %v4321 = vlaneseq
      %v4322 = vshrl.u32 %v4321, 7
      %v4323 = vsub.s32 %v4320, %v4322
      %v4324 = vrot.slane %v4310, %v4323
      %v4325 = vcombine.high %v4317, %v4317
      %v4326 = vcombine.high %v4324, %v4324
      %v4327 = vcombine.high %v4030, %v4030
      %v4329 = vunpack.c.l.s4 1983009808
      %v4330 = vunpack.c.0.s8 %v4329
      %v4331 = vlaneseq
      %v4332 = vshrl.u32 %v4331, 7
      %v4333 = vsub.s32 %v4330, %v4332
      %v4334 = vrot.slane %v4030, %v4333
      %v4336 = vunpack.c.l.s4 1983009808
      %v4337 = vunpack.c.0.s8 %v4336
      %v4338 = vlaneseq
      %v4339 = vshrl.u32 %v4338, 7
      %v4340 = vsub.s32 %v4337, %v4339
      %v4341 = vrot.slane %v4327, %v4340
      %v4342 = vcombine.high %v4334, %v4334
      %v4343 = vcombine.high %v4341, %v4341
      %v4344 = vcombine.high %v4031, %v4031
      %v4346 = vunpack.c.l.s4 1983009808
      %v4347 = vunpack.c.0.s8 %v4346
      %v4348 = vlaneseq
      %v4349 = vshrl.u32 %v4348, 7
      %v4350 = vsub.s32 %v4347, %v4349
      %v4351 = vrot.slane %v4031, %v4350
      %v4353 = vunpack.c.l.s4 1983009808
      %v4354 = vunpack.c.0.s8 %v4353
      %v4355 = vlaneseq
      %v4356 = vshrl.u32 %v4355, 7
      %v4357 = vsub.s32 %v4354, %v4356
      %v4358 = vrot.slane %v4344, %v4357
      %v4359 = vcombine.high %v4351, %v4351
      %v4360 = vcombine.high %v4358, %v4358
      %v4361 = vcombine.high %v4032, %v4032
      %v4363 = vunpack.c.l.s4 1983009808
      %v4364 = vunpack.c.0.s8 %v4363
      %v4365 = vlaneseq
      %v4366 = vshrl.u32 %v4365, 7
      %v4367 = vsub.s32 %v4364, %v4366
      %v4368 = vrot.slane %v4032, %v4367
      %v4370 = vunpack.c.l.s4 1983009808
      %v4371 = vunpack.c.0.s8 %v4370
      %v4372 = vlaneseq
      %v4373 = vshrl.u32 %v4372, 7
      %v4374 = vsub.s32 %v4371, %v4373
      %v4375 = vrot.slane %v4361, %v4374
      %v4376 = vcombine.high %v4368, %v4368
      %v4377 = vcombine.high %v4375, %v4375
      %v4378 = vcombine.high %v4033, %v4033
      %v4380 = vunpack.c.l.s4 1983009808
      %v4381 = vunpack.c.0.s8 %v4380
      %v4382 = vlaneseq
      %v4383 = vshrl.u32 %v4382, 7
      %v4384 = vsub.s32 %v4381, %v4383
      %v4385 = vrot.slane %v4033, %v4384
      %v4387 = vunpack.c.l.s4 1983009808
      %v4388 = vunpack.c.0.s8 %v4387
      %v4389 = vlaneseq
      %v4390 = vshrl.u32 %v4389, 7
      %v4391 = vsub.s32 %v4388, %v4390
      %v4392 = vrot.slane %v4378, %v4391
      %v4393 = vcombine.high %v4385, %v4385
      %v4394 = vcombine.high %v4392, %v4392
      %v4395 = vcombine.high %v4034, %v4034
      %v4397 = vunpack.c.l.s4 1983009808
      %v4398 = vunpack.c.0.s8 %v4397
      %v4399 = vlaneseq
      %v4400 = vshrl.u32 %v4399, 7
      %v4401 = vsub.s32 %v4398, %v4400
      %v4402 = vrot.slane %v4034, %v4401
      %v4404 = vunpack.c.l.s4 1983009808
      %v4405 = vunpack.c.0.s8 %v4404
      %v4406 = vlaneseq
      %v4407 = vshrl.u32 %v4406, 7
      %v4408 = vsub.s32 %v4405, %v4407
      %v4409 = vrot.slane %v4395, %v4408
      %v4410 = vcombine.high %v4402, %v4402
      %v4411 = vcombine.high %v4409, %v4409
      %v4412 = vcombine.high %v4051, %v4051
      %v4414 = vunpack.c.l.s4 1983009808
      %v4415 = vunpack.c.0.s8 %v4414
      %v4416 = vlaneseq
      %v4417 = vshrl.u32 %v4416, 7
      %v4418 = vsub.s32 %v4415, %v4417
      %v4419 = vrot.slane %v4051, %v4418
      %v4421 = vunpack.c.l.s4 1983009808
      %v4422 = vunpack.c.0.s8 %v4421
      %v4423 = vlaneseq
      %v4424 = vshrl.u32 %v4423, 7
      %v4425 = vsub.s32 %v4422, %v4424
      %v4426 = vrot.slane %v4412, %v4425
      %v4427 = vcombine.high %v4419, %v4419
      %v4428 = vcombine.high %v4426, %v4426
      %v4429 = vcombine.high %v4052, %v4052
      %v4431 = vunpack.c.l.s4 1983009808
      %v4432 = vunpack.c.0.s8 %v4431
      %v4433 = vlaneseq
      %v4434 = vshrl.u32 %v4433, 7
      %v4435 = vsub.s32 %v4432, %v4434
      %v4436 = vrot.slane %v4052, %v4435
      %v4438 = vunpack.c.l.s4 1983009808
      %v4439 = vunpack.c.0.s8 %v4438
      %v4440 = vlaneseq
      %v4441 = vshrl.u32 %v4440, 7
      %v4442 = vsub.s32 %v4439, %v4441
      %v4443 = vrot.slane %v4429, %v4442
      %v4444 = vcombine.high %v4436, %v4436
      %v4445 = vcombine.high %v4443, %v4443
      %v4446 = vcombine.high %v4053, %v4053
      %v4448 = vunpack.c.l.s4 1983009808
      %v4449 = vunpack.c.0.s8 %v4448
      %v4450 = vlaneseq
      %v4451 = vshrl.u32 %v4450, 7
      %v4452 = vsub.s32 %v4449, %v4451
      %v4453 = vrot.slane %v4053, %v4452
      %v4455 = vunpack.c.l.s4 1983009808
      %v4456 = vunpack.c.0.s8 %v4455
      %v4457 = vlaneseq
      %v4458 = vshrl.u32 %v4457, 7
      %v4459 = vsub.s32 %v4456, %v4458
      %v4460 = vrot.slane %v4446, %v4459
      %v4461 = vcombine.high %v4453, %v4453
      %v4462 = vcombine.high %v4460, %v4460
      %v4463 = vcombine.high %v4054, %v4054
      %v4465 = vunpack.c.l.s4 1983009808
      %v4466 = vunpack.c.0.s8 %v4465
      %v4467 = vlaneseq
      %v4468 = vshrl.u32 %v4467, 7
      %v4469 = vsub.s32 %v4466, %v4468
      %v4470 = vrot.slane %v4054, %v4469
      %v4472 = vunpack.c.l.s4 1983009808
      %v4473 = vunpack.c.0.s8 %v4472
      %v4474 = vlaneseq
      %v4475 = vshrl.u32 %v4474, 7
      %v4476 = vsub.s32 %v4473, %v4475
      %v4477 = vrot.slane %v4463, %v4476
      %v4478 = vcombine.high %v4470, %v4470
      %v4479 = vcombine.high %v4477, %v4477
      %v4480 = vcombine.high %v4055, %v4055
      %v4482 = vunpack.c.l.s4 1983009808
      %v4483 = vunpack.c.0.s8 %v4482
      %v4484 = vlaneseq
      %v4485 = vshrl.u32 %v4484, 7
      %v4486 = vsub.s32 %v4483, %v4485
      %v4487 = vrot.slane %v4055, %v4486
      %v4489 = vunpack.c.l.s4 1983009808
      %v4490 = vunpack.c.0.s8 %v4489
      %v4491 = vlaneseq
      %v4492 = vshrl.u32 %v4491, 7
      %v4493 = vsub.s32 %v4490, %v4492
      %v4494 = vrot.slane %v4480, %v4493
      %v4495 = vcombine.high %v4487, %v4487
      %v4496 = vcombine.high %v4494, %v4494
      %v4497 = vcombine.high %v4056, %v4056
      %v4499 = vunpack.c.l.s4 1983009808
      %v4500 = vunpack.c.0.s8 %v4499
      %v4501 = vlaneseq
      %v4502 = vshrl.u32 %v4501, 7
      %v4503 = vsub.s32 %v4500, %v4502
      %v4504 = vrot.slane %v4056, %v4503
      %v4506 = vunpack.c.l.s4 1983009808
      %v4507 = vunpack.c.0.s8 %v4506
      %v4508 = vlaneseq
      %v4509 = vshrl.u32 %v4508, 7
      %v4510 = vsub.s32 %v4507, %v4509
      %v4511 = vrot.slane %v4497, %v4510
      %v4512 = vcombine.high %v4504, %v4504
      %v4513 = vcombine.high %v4511, %v4511
      %v4514 = vcombine.high %v4057, %v4057
      %v4516 = vunpack.c.l.s4 1983009808
      %v4517 = vunpack.c.0.s8 %v4516
      %v4518 = vlaneseq
      %v4519 = vshrl.u32 %v4518, 7
      %v4520 = vsub.s32 %v4517, %v4519
      %v4521 = vrot.slane %v4057, %v4520
      %v4523 = vunpack.c.l.s4 1983009808
      %v4524 = vunpack.c.0.s8 %v4523
      %v4525 = vlaneseq
      %v4526 = vshrl.u32 %v4525, 7
      %v4527 = vsub.s32 %v4524, %v4526
      %v4528 = vrot.slane %v4514, %v4527
      %v4529 = vcombine.high %v4521, %v4521
      %v4530 = vcombine.high %v4528, %v4528
      %v4531 = vcombine.high %v4058, %v4058
      %v4533 = vunpack.c.l.s4 1983009808
      %v4534 = vunpack.c.0.s8 %v4533
      %v4535 = vlaneseq
      %v4536 = vshrl.u32 %v4535, 7
      %v4537 = vsub.s32 %v4534, %v4536
      %v4538 = vrot.slane %v4058, %v4537
      %v4540 = vunpack.c.l.s4 1983009808
      %v4541 = vunpack.c.0.s8 %v4540
      %v4542 = vlaneseq
      %v4543 = vshrl.u32 %v4542, 7
      %v4544 = vsub.s32 %v4541, %v4543
      %v4545 = vrot.slane %v4531, %v4544
      %v4546 = vcombine.high %v4538, %v4538
      %v4547 = vcombine.high %v4545, %v4545
      %v4548 = vcombine.high %v4059, %v4059
      %v4550 = vunpack.c.l.s4 1983009808
      %v4551 = vunpack.c.0.s8 %v4550
      %v4552 = vlaneseq
      %v4553 = vshrl.u32 %v4552, 7
      %v4554 = vsub.s32 %v4551, %v4553
      %v4555 = vrot.slane %v4059, %v4554
      %v4557 = vunpack.c.l.s4 1983009808
      %v4558 = vunpack.c.0.s8 %v4557
      %v4559 = vlaneseq
      %v4560 = vshrl.u32 %v4559, 7
      %v4561 = vsub.s32 %v4558, %v4560
      %v4562 = vrot.slane %v4548, %v4561
      %v4563 = vcombine.high %v4555, %v4555
      %v4564 = vcombine.high %v4562, %v4562
      %v4565 = vcombine.high %v4060, %v4060
      %v4567 = vunpack.c.l.s4 1983009808
      %v4568 = vunpack.c.0.s8 %v4567
      %v4569 = vlaneseq
      %v4570 = vshrl.u32 %v4569, 7
      %v4571 = vsub.s32 %v4568, %v4570
      %v4572 = vrot.slane %v4060, %v4571
      %v4574 = vunpack.c.l.s4 1983009808
      %v4575 = vunpack.c.0.s8 %v4574
      %v4576 = vlaneseq
      %v4577 = vshrl.u32 %v4576, 7
      %v4578 = vsub.s32 %v4575, %v4577
      %v4579 = vrot.slane %v4565, %v4578
      %v4580 = vcombine.high %v4572, %v4572
      %v4581 = vcombine.high %v4579, %v4579
      %v4582 = vcombine.high %v4061, %v4061
      %v4584 = vunpack.c.l.s4 1983009808
      %v4585 = vunpack.c.0.s8 %v4584
      %v4586 = vlaneseq
      %v4587 = vshrl.u32 %v4586, 7
      %v4588 = vsub.s32 %v4585, %v4587
      %v4589 = vrot.slane %v4061, %v4588
      %v4591 = vunpack.c.l.s4 1983009808
      %v4592 = vunpack.c.0.s8 %v4591
      %v4593 = vlaneseq
      %v4594 = vshrl.u32 %v4593, 7
      %v4595 = vsub.s32 %v4592, %v4594
      %v4596 = vrot.slane %v4582, %v4595
      %v4597 = vcombine.high %v4589, %v4589
      %v4598 = vcombine.high %v4596, %v4596
      %v4599 = vcombine.high %v4062, %v4062
      %v4601 = vunpack.c.l.s4 1983009808
      %v4602 = vunpack.c.0.s8 %v4601
      %v4603 = vlaneseq
      %v4604 = vshrl.u32 %v4603, 7
      %v4605 = vsub.s32 %v4602, %v4604
      %v4606 = vrot.slane %v4062, %v4605
      %v4608 = vunpack.c.l.s4 1983009808
      %v4609 = vunpack.c.0.s8 %v4608
      %v4610 = vlaneseq
      %v4611 = vshrl.u32 %v4610, 7
      %v4612 = vsub.s32 %v4609, %v4611
      %v4613 = vrot.slane %v4599, %v4612
      %v4614 = vcombine.high %v4606, %v4606
      %v4615 = vcombine.high %v4613, %v4613
      %v4616 = vcombine.high %v4063, %v4063
      %v4618 = vunpack.c.l.s4 1983009808
      %v4619 = vunpack.c.0.s8 %v4618
      %v4620 = vlaneseq
      %v4621 = vshrl.u32 %v4620, 7
      %v4622 = vsub.s32 %v4619, %v4621
      %v4623 = vrot.slane %v4063, %v4622
      %v4625 = vunpack.c.l.s4 1983009808
      %v4626 = vunpack.c.0.s8 %v4625
      %v4627 = vlaneseq
      %v4628 = vshrl.u32 %v4627, 7
      %v4629 = vsub.s32 %v4626, %v4628
      %v4630 = vrot.slane %v4616, %v4629
      %v4631 = vcombine.high %v4623, %v4623
      %v4632 = vcombine.high %v4630, %v4630
      %v4633 = vcombine.high %v4064, %v4064
      %v4635 = vunpack.c.l.s4 1983009808
      %v4636 = vunpack.c.0.s8 %v4635
      %v4637 = vlaneseq
      %v4638 = vshrl.u32 %v4637, 7
      %v4639 = vsub.s32 %v4636, %v4638
      %v4640 = vrot.slane %v4064, %v4639
      %v4642 = vunpack.c.l.s4 1983009808
      %v4643 = vunpack.c.0.s8 %v4642
      %v4644 = vlaneseq
      %v4645 = vshrl.u32 %v4644, 7
      %v4646 = vsub.s32 %v4643, %v4645
      %v4647 = vrot.slane %v4633, %v4646
      %v4648 = vcombine.high %v4640, %v4640
      %v4649 = vcombine.high %v4647, %v4647
      %v4650 = vcombine.high %v4065, %v4065
      %v4652 = vunpack.c.l.s4 1983009808
      %v4653 = vunpack.c.0.s8 %v4652
      %v4654 = vlaneseq
      %v4655 = vshrl.u32 %v4654, 7
      %v4656 = vsub.s32 %v4653, %v4655
      %v4657 = vrot.slane %v4065, %v4656
      %v4659 = vunpack.c.l.s4 1983009808
      %v4660 = vunpack.c.0.s8 %v4659
      %v4661 = vlaneseq
      %v4662 = vshrl.u32 %v4661, 7
      %v4663 = vsub.s32 %v4660, %v4662
      %v4664 = vrot.slane %v4650, %v4663
      %v4665 = vcombine.high %v4657, %v4657
      %v4666 = vcombine.high %v4664, %v4664
      %v4667 = vcombine.high %v4066, %v4066
      %v4669 = vunpack.c.l.s4 1983009808
      %v4670 = vunpack.c.0.s8 %v4669
      %v4671 = vlaneseq
      %v4672 = vshrl.u32 %v4671, 7
      %v4673 = vsub.s32 %v4670, %v4672
      %v4674 = vrot.slane %v4066, %v4673
      %v4676 = vunpack.c.l.s4 1983009808
      %v4677 = vunpack.c.0.s8 %v4676
      %v4678 = vlaneseq
      %v4679 = vshrl.u32 %v4678, 7
      %v4680 = vsub.s32 %v4677, %v4679
      %v4681 = vrot.slane %v4667, %v4680
      %v4682 = vcombine.high %v4674, %v4674
      %v4683 = vcombine.high %v4681, %v4681
      %v4684 = vcombine.high %v4083, %v4083
      %v4686 = vunpack.c.l.s4 1983009808
      %v4687 = vunpack.c.0.s8 %v4686
      %v4688 = vlaneseq
      %v4689 = vshrl.u32 %v4688, 7
      %v4690 = vsub.s32 %v4687, %v4689
      %v4691 = vrot.slane %v4083, %v4690
      %v4693 = vunpack.c.l.s4 1983009808
      %v4694 = vunpack.c.0.s8 %v4693
      %v4695 = vlaneseq
      %v4696 = vshrl.u32 %v4695, 7
      %v4697 = vsub.s32 %v4694, %v4696
      %v4698 = vrot.slane %v4684, %v4697
      %v4699 = vcombine.high %v4691, %v4691
      %v4700 = vcombine.high %v4698, %v4698
      %v4701 = vcombine.high %v4084, %v4084
      %v4703 = vunpack.c.l.s4 1983009808
      %v4704 = vunpack.c.0.s8 %v4703
      %v4705 = vlaneseq
      %v4706 = vshrl.u32 %v4705, 7
      %v4707 = vsub.s32 %v4704, %v4706
      %v4708 = vrot.slane %v4084, %v4707
      %v4710 = vunpack.c.l.s4 1983009808
      %v4711 = vunpack.c.0.s8 %v4710
      %v4712 = vlaneseq
      %v4713 = vshrl.u32 %v4712, 7
      %v4714 = vsub.s32 %v4711, %v4713
      %v4715 = vrot.slane %v4701, %v4714
      %v4716 = vcombine.high %v4708, %v4708
      %v4717 = vcombine.high %v4715, %v4715
      %v4718 = vcombine.high %v4085, %v4085
      %v4720 = vunpack.c.l.s4 1983009808
      %v4721 = vunpack.c.0.s8 %v4720
      %v4722 = vlaneseq
      %v4723 = vshrl.u32 %v4722, 7
      %v4724 = vsub.s32 %v4721, %v4723
      %v4725 = vrot.slane %v4085, %v4724
      %v4727 = vunpack.c.l.s4 1983009808
      %v4728 = vunpack.c.0.s8 %v4727
      %v4729 = vlaneseq
      %v4730 = vshrl.u32 %v4729, 7
      %v4731 = vsub.s32 %v4728, %v4730
      %v4732 = vrot.slane %v4718, %v4731
      %v4733 = vcombine.high %v4725, %v4725
      %v4734 = vcombine.high %v4732, %v4732
      %v4735 = vcombine.high %v4086, %v4086
      %v4737 = vunpack.c.l.s4 1983009808
      %v4738 = vunpack.c.0.s8 %v4737
      %v4739 = vlaneseq
      %v4740 = vshrl.u32 %v4739, 7
      %v4741 = vsub.s32 %v4738, %v4740
      %v4742 = vrot.slane %v4086, %v4741
      %v4744 = vunpack.c.l.s4 1983009808
      %v4745 = vunpack.c.0.s8 %v4744
      %v4746 = vlaneseq
      %v4747 = vshrl.u32 %v4746, 7
      %v4748 = vsub.s32 %v4745, %v4747
      %v4749 = vrot.slane %v4735, %v4748
      %v4750 = vcombine.high %v4742, %v4742
      %v4751 = vcombine.high %v4749, %v4749
      %v4752 = vcombine.high %v4087, %v4087
      %v4754 = vunpack.c.l.s4 1983009808
      %v4755 = vunpack.c.0.s8 %v4754
      %v4756 = vlaneseq
      %v4757 = vshrl.u32 %v4756, 7
      %v4758 = vsub.s32 %v4755, %v4757
      %v4759 = vrot.slane %v4087, %v4758
      %v4761 = vunpack.c.l.s4 1983009808
      %v4762 = vunpack.c.0.s8 %v4761
      %v4763 = vlaneseq
      %v4764 = vshrl.u32 %v4763, 7
      %v4765 = vsub.s32 %v4762, %v4764
      %v4766 = vrot.slane %v4752, %v4765
      %v4767 = vcombine.high %v4759, %v4759
      %v4768 = vcombine.high %v4766, %v4766
      %v4769 = vcombine.high %v4088, %v4088
      %v4771 = vunpack.c.l.s4 1983009808
      %v4772 = vunpack.c.0.s8 %v4771
      %v4773 = vlaneseq
      %v4774 = vshrl.u32 %v4773, 7
      %v4775 = vsub.s32 %v4772, %v4774
      %v4776 = vrot.slane %v4088, %v4775
      %v4778 = vunpack.c.l.s4 1983009808
      %v4779 = vunpack.c.0.s8 %v4778
      %v4780 = vlaneseq
      %v4781 = vshrl.u32 %v4780, 7
      %v4782 = vsub.s32 %v4779, %v4781
      %v4783 = vrot.slane %v4769, %v4782
      %v4784 = vcombine.high %v4776, %v4776
      %v4785 = vcombine.high %v4783, %v4783
      %v4786 = vcombine.high %v4089, %v4089
      %v4788 = vunpack.c.l.s4 1983009808
      %v4789 = vunpack.c.0.s8 %v4788
      %v4790 = vlaneseq
      %v4791 = vshrl.u32 %v4790, 7
      %v4792 = vsub.s32 %v4789, %v4791
      %v4793 = vrot.slane %v4089, %v4792
      %v4795 = vunpack.c.l.s4 1983009808
      %v4796 = vunpack.c.0.s8 %v4795
      %v4797 = vlaneseq
      %v4798 = vshrl.u32 %v4797, 7
      %v4799 = vsub.s32 %v4796, %v4798
      %v4800 = vrot.slane %v4786, %v4799
      %v4801 = vcombine.high %v4793, %v4793
      %v4802 = vcombine.high %v4800, %v4800
      %v4803 = vcombine.high %v4090, %v4090
      %v4805 = vunpack.c.l.s4 1983009808
      %v4806 = vunpack.c.0.s8 %v4805
      %v4807 = vlaneseq
      %v4808 = vshrl.u32 %v4807, 7
      %v4809 = vsub.s32 %v4806, %v4808
      %v4810 = vrot.slane %v4090, %v4809
      %v4812 = vunpack.c.l.s4 1983009808
      %v4813 = vunpack.c.0.s8 %v4812
      %v4814 = vlaneseq
      %v4815 = vshrl.u32 %v4814, 7
      %v4816 = vsub.s32 %v4813, %v4815
      %v4817 = vrot.slane %v4803, %v4816
      %v4818 = vcombine.high %v4810, %v4810
      %v4819 = vcombine.high %v4817, %v4817
      %v4821 = vunpack.c.l.s4 1983009808
      %v4822 = vunpack.c.0.s8 %v4821
      %v4823 = vlaneseq
      %v4824 = vshrl.u32 %v4823, 7
      %v4825 = vsub.s32 %v4822, %v4824
      %v4826 = vrot.slane %v4091, %v4825
      %v4827 = vcombine.high %v4826, %v4826
      %v4828 = vcombine.low %v4147, %v4155
      %v4829 = vcombine.low %v4154, %v4156
      %v4831 = vunpack.c.l.s4 1983009808
      %v4832 = vunpack.c.0.s8 %v4831
      %v4833 = vlaneseq
      %v4834 = vshrl.u32 %v4833, 7
      %v4835 = vsub.s32 %v4832, %v4834
      %v4836 = vrot.slane %v4828, %v4835
      %v4838 = vunpack.c.l.s4 1983009808
      %v4839 = vunpack.c.0.s8 %v4838
      %v4840 = vlaneseq
      %v4841 = vshrl.u32 %v4840, 7
      %v4842 = vsub.s32 %v4839, %v4841
      %v4843 = vrot.slane %v4829, %v4842
      %v4844 = vcombine.low %v4836, %v4843
      %v4845 = vcombine.low %v4164, %v4172
      %v4846 = vcombine.low %v4171, %v4173
      %v4848 = vunpack.c.l.s4 1983009808
      %v4849 = vunpack.c.0.s8 %v4848
      %v4850 = vlaneseq
      %v4851 = vshrl.u32 %v4850, 7
      %v4852 = vsub.s32 %v4849, %v4851
      %v4853 = vrot.slane %v4845, %v4852
      %v4855 = vunpack.c.l.s4 1983009808
      %v4856 = vunpack.c.0.s8 %v4855
      %v4857 = vlaneseq
      %v4858 = vshrl.u32 %v4857, 7
      %v4859 = vsub.s32 %v4856, %v4858
      %v4860 = vrot.slane %v4846, %v4859
      %v4861 = vcombine.low %v4853, %v4860
      %v4863 = vunpack.c.l.s4 1983009808
      %v4864 = vunpack.c.0.s8 %v4863
      %v4865 = vlaneseq
      %v4866 = vshrl.u32 %v4865, 7
      %v4867 = vsub.s32 %v4864, %v4866
      %v4868 = vrot.slane %v4181, %v4867
      %v4869 = vcombine.low %v4189, %v4188
      %v4870 = vcombine.low %v4190, %v4198
      %v4872 = vunpack.c.l.s4 1983009808
      %v4873 = vunpack.c.0.s8 %v4872
      %v4874 = vlaneseq
      %v4875 = vshrl.u32 %v4874, 7
      %v4876 = vsub.s32 %v4873, %v4875
      %v4877 = vrot.slane %v4869, %v4876
      %v4879 = vunpack.c.l.s4 1983009808
      %v4880 = vunpack.c.0.s8 %v4879
      %v4881 = vlaneseq
      %v4882 = vshrl.u32 %v4881, 7
      %v4883 = vsub.s32 %v4880, %v4882
      %v4884 = vrot.slane %v4870, %v4883
      %v4885 = vcombine.low %v4877, %v4884
      %v4886 = vcombine.low %v4206, %v4205
      %v4887 = vcombine.low %v4207, %v4215
      %v4889 = vunpack.c.l.s4 1983009808
      %v4890 = vunpack.c.0.s8 %v4889
      %v4891 = vlaneseq
      %v4892 = vshrl.u32 %v4891, 7
      %v4893 = vsub.s32 %v4890, %v4892
      %v4894 = vrot.slane %v4886, %v4893
      %v4896 = vunpack.c.l.s4 1983009808
      %v4897 = vunpack.c.0.s8 %v4896
      %v4898 = vlaneseq
      %v4899 = vshrl.u32 %v4898, 7
      %v4900 = vsub.s32 %v4897, %v4899
      %v4901 = vrot.slane %v4887, %v4900
      %v4902 = vcombine.low %v4894, %v4901
      %v4904 = vunpack.c.l.s4 1983009808
      %v4905 = vunpack.c.0.s8 %v4904
      %v4906 = vlaneseq
      %v4907 = vshrl.u32 %v4906, 7
      %v4908 = vsub.s32 %v4905, %v4907
      %v4909 = vrot.slane %v4223, %v4908
      %v4910 = vcombine.low %v4222, %v4224
      %v4911 = vcombine.low %v4232, %v4240
      %v4913 = vunpack.c.l.s4 1983009808
      %v4914 = vunpack.c.0.s8 %v4913
      %v4915 = vlaneseq
      %v4916 = vshrl.u32 %v4915, 7
      %v4917 = vsub.s32 %v4914, %v4916
      %v4918 = vrot.slane %v4910, %v4917
      %v4920 = vunpack.c.l.s4 1983009808
      %v4921 = vunpack.c.0.s8 %v4920
      %v4922 = vlaneseq
      %v4923 = vshrl.u32 %v4922, 7
      %v4924 = vsub.s32 %v4921, %v4923
      %v4925 = vrot.slane %v4911, %v4924
      %v4926 = vcombine.low %v4918, %v4925
      %v4927 = vcombine.low %v4239, %v4241
      %v4928 = vcombine.low %v4249, %v4257
      %v4930 = vunpack.c.l.s4 1983009808
      %v4931 = vunpack.c.0.s8 %v4930
      %v4932 = vlaneseq
      %v4933 = vshrl.u32 %v4932, 7
      %v4934 = vsub.s32 %v4931, %v4933
      %v4935 = vrot.slane %v4927, %v4934
      %v4937 = vunpack.c.l.s4 1983009808
      %v4938 = vunpack.c.0.s8 %v4937
      %v4939 = vlaneseq
      %v4940 = vshrl.u32 %v4939, 7
      %v4941 = vsub.s32 %v4938, %v4940
      %v4942 = vrot.slane %v4928, %v4941
      %v4943 = vcombine.low %v4935, %v4942
      %v4945 = vunpack.c.l.s4 1983009808
      %v4946 = vunpack.c.0.s8 %v4945
      %v4947 = vlaneseq
      %v4948 = vshrl.u32 %v4947, 7
      %v4949 = vsub.s32 %v4946, %v4948
      %v4950 = vrot.slane %v4256, %v4949
      %v4951 = vcombine.low %v4258, %v4266
      %v4952 = vcombine.low %v4274, %v4273
      %v4954 = vunpack.c.l.s4 1983009808
      %v4955 = vunpack.c.0.s8 %v4954
      %v4956 = vlaneseq
      %v4957 = vshrl.u32 %v4956, 7
      %v4958 = vsub.s32 %v4955, %v4957
      %v4959 = vrot.slane %v4951, %v4958
      %v4961 = vunpack.c.l.s4 1983009808
      %v4962 = vunpack.c.0.s8 %v4961
      %v4963 = vlaneseq
      %v4964 = vshrl.u32 %v4963, 7
      %v4965 = vsub.s32 %v4962, %v4964
      %v4966 = vrot.slane %v4952, %v4965
      %v4967 = vcombine.low %v4959, %v4966
      %v4968 = vcombine.low %v4275, %v4283
      %v4969 = vcombine.low %v4291, %v4290
      %v4971 = vunpack.c.l.s4 1983009808
      %v4972 = vunpack.c.0.s8 %v4971
      %v4973 = vlaneseq
      %v4974 = vshrl.u32 %v4973, 7
      %v4975 = vsub.s32 %v4972, %v4974
      %v4976 = vrot.slane %v4968, %v4975
      %v4978 = vunpack.c.l.s4 1983009808
      %v4979 = vunpack.c.0.s8 %v4978
      %v4980 = vlaneseq
      %v4981 = vshrl.u32 %v4980, 7
      %v4982 = vsub.s32 %v4979, %v4981
      %v4983 = vrot.slane %v4969, %v4982
      %v4984 = vcombine.low %v4976, %v4983
      %v4986 = vunpack.c.l.s4 1983009808
      %v4987 = vunpack.c.0.s8 %v4986
      %v4988 = vlaneseq
      %v4989 = vshrl.u32 %v4988, 7
      %v4990 = vsub.s32 %v4987, %v4989
      %v4991 = vrot.slane %v4292, %v4990
      %v4992 = vcombine.low %v4300, %v4308
      %v4993 = vcombine.low %v4307, %v4309
      %v4995 = vunpack.c.l.s4 1983009808
      %v4996 = vunpack.c.0.s8 %v4995
      %v4997 = vlaneseq
      %v4998 = vshrl.u32 %v4997, 7
      %v4999 = vsub.s32 %v4996, %v4998
      %v5000 = vrot.slane %v4992, %v4999
      %v5002 = vunpack.c.l.s4 1983009808
      %v5003 = vunpack.c.0.s8 %v5002
      %v5004 = vlaneseq
      %v5005 = vshrl.u32 %v5004, 7
      %v5006 = vsub.s32 %v5003, %v5005
      %v5007 = vrot.slane %v4993, %v5006
      %v5008 = vcombine.low %v5000, %v5007
      %v5009 = vcombine.low %v4317, %v4325
      %v5010 = vcombine.low %v4324, %v4326
      %v5012 = vunpack.c.l.s4 1983009808
      %v5013 = vunpack.c.0.s8 %v5012
      %v5014 = vlaneseq
      %v5015 = vshrl.u32 %v5014, 7
      %v5016 = vsub.s32 %v5013, %v5015
      %v5017 = vrot.slane %v5009, %v5016
      %v5019 = vunpack.c.l.s4 1983009808
      %v5020 = vunpack.c.0.s8 %v5019
      %v5021 = vlaneseq
      %v5022 = vshrl.u32 %v5021, 7
      %v5023 = vsub.s32 %v5020, %v5022
      %v5024 = vrot.slane %v5010, %v5023
      %v5025 = vcombine.low %v5017, %v5024
      %v5027 = vunpack.c.l.s4 1983009808
      %v5028 = vunpack.c.0.s8 %v5027
      %v5029 = vlaneseq
      %v5030 = vshrl.u32 %v5029, 7
      %v5031 = vsub.s32 %v5028, %v5030
      %v5032 = vrot.slane %v4334, %v5031
      %v5033 = vcombine.low %v4342, %v4341
      %v5034 = vcombine.low %v4343, %v4351
      %v5036 = vunpack.c.l.s4 1983009808
      %v5037 = vunpack.c.0.s8 %v5036
      %v5038 = vlaneseq
      %v5039 = vshrl.u32 %v5038, 7
      %v5040 = vsub.s32 %v5037, %v5039
      %v5041 = vrot.slane %v5033, %v5040
      %v5043 = vunpack.c.l.s4 1983009808
      %v5044 = vunpack.c.0.s8 %v5043
      %v5045 = vlaneseq
      %v5046 = vshrl.u32 %v5045, 7
      %v5047 = vsub.s32 %v5044, %v5046
      %v5048 = vrot.slane %v5034, %v5047
      %v5049 = vcombine.low %v5041, %v5048
      %v5050 = vcombine.low %v4359, %v4358
      %v5051 = vcombine.low %v4360, %v4368
      %v5053 = vunpack.c.l.s4 1983009808
      %v5054 = vunpack.c.0.s8 %v5053
      %v5055 = vlaneseq
      %v5056 = vshrl.u32 %v5055, 7
      %v5057 = vsub.s32 %v5054, %v5056
      %v5058 = vrot.slane %v5050, %v5057
      %v5060 = vunpack.c.l.s4 1983009808
      %v5061 = vunpack.c.0.s8 %v5060
      %v5062 = vlaneseq
      %v5063 = vshrl.u32 %v5062, 7
      %v5064 = vsub.s32 %v5061, %v5063
      %v5065 = vrot.slane %v5051, %v5064
      %v5066 = vcombine.low %v5058, %v5065
      %v5068 = vunpack.c.l.s4 1983009808
      %v5069 = vunpack.c.0.s8 %v5068
      %v5070 = vlaneseq
      %v5071 = vshrl.u32 %v5070, 7
      %v5072 = vsub.s32 %v5069, %v5071
      %v5073 = vrot.slane %v4376, %v5072
      %v5074 = vcombine.low %v4375, %v4377
      %v5075 = vcombine.low %v4385, %v4393
      %v5077 = vunpack.c.l.s4 1983009808
      %v5078 = vunpack.c.0.s8 %v5077
      %v5079 = vlaneseq
      %v5080 = vshrl.u32 %v5079, 7
      %v5081 = vsub.s32 %v5078, %v5080
      %v5082 = vrot.slane %v5074, %v5081
      %v5084 = vunpack.c.l.s4 1983009808
      %v5085 = vunpack.c.0.s8 %v5084
      %v5086 = vlaneseq
      %v5087 = vshrl.u32 %v5086, 7
      %v5088 = vsub.s32 %v5085, %v5087
      %v5089 = vrot.slane %v5075, %v5088
      %v5090 = vcombine.low %v5082, %v5089
      %v5091 = vcombine.low %v4392, %v4394
      %v5092 = vcombine.low %v4402, %v4410
      %v5094 = vunpack.c.l.s4 1983009808
      %v5095 = vunpack.c.0.s8 %v5094
      %v5096 = vlaneseq
      %v5097 = vshrl.u32 %v5096, 7
      %v5098 = vsub.s32 %v5095, %v5097
      %v5099 = vrot.slane %v5091, %v5098
      %v5101 = vunpack.c.l.s4 1983009808
      %v5102 = vunpack.c.0.s8 %v5101
      %v5103 = vlaneseq
      %v5104 = vshrl.u32 %v5103, 7
      %v5105 = vsub.s32 %v5102, %v5104
      %v5106 = vrot.slane %v5092, %v5105
      %v5107 = vcombine.low %v5099, %v5106
      %v5109 = vunpack.c.l.s4 1983009808
      %v5110 = vunpack.c.0.s8 %v5109
      %v5111 = vlaneseq
      %v5112 = vshrl.u32 %v5111, 7
      %v5113 = vsub.s32 %v5110, %v5112
      %v5114 = vrot.slane %v4409, %v5113
      %v5115 = vcombine.low %v4411, %v4419
      %v5116 = vcombine.low %v4427, %v4426
      %v5118 = vunpack.c.l.s4 1983009808
      %v5119 = vunpack.c.0.s8 %v5118
      %v5120 = vlaneseq
      %v5121 = vshrl.u32 %v5120, 7
      %v5122 = vsub.s32 %v5119, %v5121
      %v5123 = vrot.slane %v5115, %v5122
      %v5125 = vunpack.c.l.s4 1983009808
      %v5126 = vunpack.c.0.s8 %v5125
      %v5127 = vlaneseq
      %v5128 = vshrl.u32 %v5127, 7
      %v5129 = vsub.s32 %v5126, %v5128
      %v5130 = vrot.slane %v5116, %v5129
      %v5131 = vcombine.low %v5123, %v5130
      %v5132 = vcombine.low %v4428, %v4436
      %v5133 = vcombine.low %v4444, %v4443
      %v5135 = vunpack.c.l.s4 1983009808
      %v5136 = vunpack.c.0.s8 %v5135
      %v5137 = vlaneseq
      %v5138 = vshrl.u32 %v5137, 7
      %v5139 = vsub.s32 %v5136, %v5138
      %v5140 = vrot.slane %v5132, %v5139
      %v5142 = vunpack.c.l.s4 1983009808
      %v5143 = vunpack.c.0.s8 %v5142
      %v5144 = vlaneseq
      %v5145 = vshrl.u32 %v5144, 7
      %v5146 = vsub.s32 %v5143, %v5145
      %v5147 = vrot.slane %v5133, %v5146
      %v5148 = vcombine.low %v5140, %v5147
      %v5150 = vunpack.c.l.s4 1983009808
      %v5151 = vunpack.c.0.s8 %v5150
      %v5152 = vlaneseq
      %v5153 = vshrl.u32 %v5152, 7
      %v5154 = vsub.s32 %v5151, %v5153
      %v5155 = vrot.slane %v4445, %v5154
      %v5156 = vcombine.low %v4453, %v4461
      %v5157 = vcombine.low %v4460, %v4462
      %v5159 = vunpack.c.l.s4 1983009808
      %v5160 = vunpack.c.0.s8 %v5159
      %v5161 = vlaneseq
      %v5162 = vshrl.u32 %v5161, 7
      %v5163 = vsub.s32 %v5160, %v5162
      %v5164 = vrot.slane %v5156, %v5163
      %v5166 = vunpack.c.l.s4 1983009808
      %v5167 = vunpack.c.0.s8 %v5166
      %v5168 = vlaneseq
      %v5169 = vshrl.u32 %v5168, 7
      %v5170 = vsub.s32 %v5167, %v5169
      %v5171 = vrot.slane %v5157, %v5170
      %v5172 = vcombine.low %v5164, %v5171
      %v5173 = vcombine.low %v4470, %v4478
      %v5174 = vcombine.low %v4477, %v4479
      %v5176 = vunpack.c.l.s4 1983009808
      %v5177 = vunpack.c.0.s8 %v5176
      %v5178 = vlaneseq
      %v5179 = vshrl.u32 %v5178, 7
      %v5180 = vsub.s32 %v5177, %v5179
      %v5181 = vrot.slane %v5173, %v5180
      %v5183 = vunpack.c.l.s4 1983009808
      %v5184 = vunpack.c.0.s8 %v5183
      %v5185 = vlaneseq
      %v5186 = vshrl.u32 %v5185, 7
      %v5187 = vsub.s32 %v5184, %v5186
      %v5188 = vrot.slane %v5174, %v5187
      %v5189 = vcombine.low %v5181, %v5188
      %v5191 = vunpack.c.l.s4 1983009808
      %v5192 = vunpack.c.0.s8 %v5191
      %v5193 = vlaneseq
      %v5194 = vshrl.u32 %v5193, 7
      %v5195 = vsub.s32 %v5192, %v5194
      %v5196 = vrot.slane %v4487, %v5195
      %v5197 = vcombine.low %v4495, %v4494
      %v5198 = vcombine.low %v4496, %v4504
      %v5200 = vunpack.c.l.s4 1983009808
      %v5201 = vunpack.c.0.s8 %v5200
      %v5202 = vlaneseq
      %v5203 = vshrl.u32 %v5202, 7
      %v5204 = vsub.s32 %v5201, %v5203
      %v5205 = vrot.slane %v5197, %v5204
      %v5207 = vunpack.c.l.s4 1983009808
      %v5208 = vunpack.c.0.s8 %v5207
      %v5209 = vlaneseq
      %v5210 = vshrl.u32 %v5209, 7
      %v5211 = vsub.s32 %v5208, %v5210
      %v5212 = vrot.slane %v5198, %v5211
      %v5213 = vcombine.low %v5205, %v5212
      %v5214 = vcombine.low %v4512, %v4511
      %v5215 = vcombine.low %v4513, %v4521
      %v5217 = vunpack.c.l.s4 1983009808
      %v5218 = vunpack.c.0.s8 %v5217
      %v5219 = vlaneseq
      %v5220 = vshrl.u32 %v5219, 7
      %v5221 = vsub.s32 %v5218, %v5220
      %v5222 = vrot.slane %v5214, %v5221
      %v5224 = vunpack.c.l.s4 1983009808
      %v5225 = vunpack.c.0.s8 %v5224
      %v5226 = vlaneseq
      %v5227 = vshrl.u32 %v5226, 7
      %v5228 = vsub.s32 %v5225, %v5227
      %v5229 = vrot.slane %v5215, %v5228
      %v5230 = vcombine.low %v5222, %v5229
      %v5232 = vunpack.c.l.s4 1983009808
      %v5233 = vunpack.c.0.s8 %v5232
      %v5234 = vlaneseq
      %v5235 = vshrl.u32 %v5234, 7
      %v5236 = vsub.s32 %v5233, %v5235
      %v5237 = vrot.slane %v4529, %v5236
      %v5238 = vcombine.low %v4528, %v4530
      %v5239 = vcombine.low %v4538, %v4546
      %v5241 = vunpack.c.l.s4 1983009808
      %v5242 = vunpack.c.0.s8 %v5241
      %v5243 = vlaneseq
      %v5244 = vshrl.u32 %v5243, 7
      %v5245 = vsub.s32 %v5242, %v5244
      %v5246 = vrot.slane %v5238, %v5245
      %v5248 = vunpack.c.l.s4 1983009808
      %v5249 = vunpack.c.0.s8 %v5248
      %v5250 = vlaneseq
      %v5251 = vshrl.u32 %v5250, 7
      %v5252 = vsub.s32 %v5249, %v5251
      %v5253 = vrot.slane %v5239, %v5252
      %v5254 = vcombine.low %v5246, %v5253
      %v5255 = vcombine.low %v4545, %v4547
      %v5256 = vcombine.low %v4555, %v4563
      %v5258 = vunpack.c.l.s4 1983009808
      %v5259 = vunpack.c.0.s8 %v5258
      %v5260 = vlaneseq
      %v5261 = vshrl.u32 %v5260, 7
      %v5262 = vsub.s32 %v5259, %v5261
      %v5263 = vrot.slane %v5255, %v5262
      %v5265 = vunpack.c.l.s4 1983009808
      %v5266 = vunpack.c.0.s8 %v5265
      %v5267 = vlaneseq
      %v5268 = vshrl.u32 %v5267, 7
      %v5269 = vsub.s32 %v5266, %v5268
      %v5270 = vrot.slane %v5256, %v5269
      %v5271 = vcombine.low %v5263, %v5270
      %v5273 = vunpack.c.l.s4 1983009808
      %v5274 = vunpack.c.0.s8 %v5273
      %v5275 = vlaneseq
      %v5276 = vshrl.u32 %v5275, 7
      %v5277 = vsub.s32 %v5274, %v5276
      %v5278 = vrot.slane %v4562, %v5277
      %v5279 = vcombine.low %v4564, %v4572
      %v5280 = vcombine.low %v4580, %v4579
      %v5282 = vunpack.c.l.s4 1983009808
      %v5283 = vunpack.c.0.s8 %v5282
      %v5284 = vlaneseq
      %v5285 = vshrl.u32 %v5284, 7
      %v5286 = vsub.s32 %v5283, %v5285
      %v5287 = vrot.slane %v5279, %v5286
      %v5289 = vunpack.c.l.s4 1983009808
      %v5290 = vunpack.c.0.s8 %v5289
      %v5291 = vlaneseq
      %v5292 = vshrl.u32 %v5291, 7
      %v5293 = vsub.s32 %v5290, %v5292
      %v5294 = vrot.slane %v5280, %v5293
      %v5295 = vcombine.low %v5287, %v5294
      %v5296 = vcombine.low %v4581, %v4589
      %v5297 = vcombine.low %v4597, %v4596
      %v5299 = vunpack.c.l.s4 1983009808
      %v5300 = vunpack.c.0.s8 %v5299
      %v5301 = vlaneseq
      %v5302 = vshrl.u32 %v5301, 7
      %v5303 = vsub.s32 %v5300, %v5302
      %v5304 = vrot.slane %v5296, %v5303
      %v5306 = vunpack.c.l.s4 1983009808
      %v5307 = vunpack.c.0.s8 %v5306
      %v5308 = vlaneseq
      %v5309 = vshrl.u32 %v5308, 7
      %v5310 = vsub.s32 %v5307, %v5309
      %v5311 = vrot.slane %v5297, %v5310
      %v5312 = vcombine.low %v5304, %v5311
      %v5314 = vunpack.c.l.s4 1983009808
      %v5315 = vunpack.c.0.s8 %v5314
      %v5316 = vlaneseq
      %v5317 = vshrl.u32 %v5316, 7
      %v5318 = vsub.s32 %v5315, %v5317
      %v5319 = vrot.slane %v4598, %v5318
      %v5320 = vcombine.low %v4606, %v4614
      %v5321 = vcombine.low %v4613, %v4615
      %v5323 = vunpack.c.l.s4 1983009808
      %v5324 = vunpack.c.0.s8 %v5323
      %v5325 = vlaneseq
      %v5326 = vshrl.u32 %v5325, 7
      %v5327 = vsub.s32 %v5324, %v5326
      %v5328 = vrot.slane %v5320, %v5327
      %v5330 = vunpack.c.l.s4 1983009808
      %v5331 = vunpack.c.0.s8 %v5330
      %v5332 = vlaneseq
      %v5333 = vshrl.u32 %v5332, 7
      %v5334 = vsub.s32 %v5331, %v5333
      %v5335 = vrot.slane %v5321, %v5334
      %v5336 = vcombine.low %v5328, %v5335
      %v5337 = vcombine.low %v4623, %v4631
      %v5338 = vcombine.low %v4630, %v4632
      %v5340 = vunpack.c.l.s4 1983009808
      %v5341 = vunpack.c.0.s8 %v5340
      %v5342 = vlaneseq
      %v5343 = vshrl.u32 %v5342, 7
      %v5344 = vsub.s32 %v5341, %v5343
      %v5345 = vrot.slane %v5337, %v5344
      %v5347 = vunpack.c.l.s4 1983009808
      %v5348 = vunpack.c.0.s8 %v5347
      %v5349 = vlaneseq
      %v5350 = vshrl.u32 %v5349, 7
      %v5351 = vsub.s32 %v5348, %v5350
      %v5352 = vrot.slane %v5338, %v5351
      %v5353 = vcombine.low %v5345, %v5352
      %v5355 = vunpack.c.l.s4 1983009808
      %v5356 = vunpack.c.0.s8 %v5355
      %v5357 = vlaneseq
      %v5358 = vshrl.u32 %v5357, 7
      %v5359 = vsub.s32 %v5356, %v5358
      %v5360 = vrot.slane %v4640, %v5359
      %v5361 = vcombine.low %v4648, %v4647
      %v5362 = vcombine.low %v4649, %v4657
      %v5364 = vunpack.c.l.s4 1983009808
      %v5365 = vunpack.c.0.s8 %v5364
      %v5366 = vlaneseq
      %v5367 = vshrl.u32 %v5366, 7
      %v5368 = vsub.s32 %v5365, %v5367
      %v5369 = vrot.slane %v5361, %v5368
      %v5371 = vunpack.c.l.s4 1983009808
      %v5372 = vunpack.c.0.s8 %v5371
      %v5373 = vlaneseq
      %v5374 = vshrl.u32 %v5373, 7
      %v5375 = vsub.s32 %v5372, %v5374
      %v5376 = vrot.slane %v5362, %v5375
      %v5377 = vcombine.low %v5369, %v5376
      %v5378 = vcombine.low %v4665, %v4664
      %v5379 = vcombine.low %v4666, %v4674
      %v5381 = vunpack.c.l.s4 1983009808
      %v5382 = vunpack.c.0.s8 %v5381
      %v5383 = vlaneseq
      %v5384 = vshrl.u32 %v5383, 7
      %v5385 = vsub.s32 %v5382, %v5384
      %v5386 = vrot.slane %v5378, %v5385
      %v5388 = vunpack.c.l.s4 1983009808
      %v5389 = vunpack.c.0.s8 %v5388
      %v5390 = vlaneseq
      %v5391 = vshrl.u32 %v5390, 7
      %v5392 = vsub.s32 %v5389, %v5391
      %v5393 = vrot.slane %v5379, %v5392
      %v5394 = vcombine.low %v5386, %v5393
      %v5396 = vunpack.c.l.s4 1983009808
      %v5397 = vunpack.c.0.s8 %v5396
      %v5398 = vlaneseq
      %v5399 = vshrl.u32 %v5398, 7
      %v5400 = vsub.s32 %v5397, %v5399
      %v5401 = vrot.slane %v4682, %v5400
      %v5402 = vcombine.low %v4681, %v4683
      %v5403 = vcombine.low %v4691, %v4699
      %v5405 = vunpack.c.l.s4 1983009808
      %v5406 = vunpack.c.0.s8 %v5405
      %v5407 = vlaneseq
      %v5408 = vshrl.u32 %v5407, 7
      %v5409 = vsub.s32 %v5406, %v5408
      %v5410 = vrot.slane %v5402, %v5409
      %v5412 = vunpack.c.l.s4 1983009808
      %v5413 = vunpack.c.0.s8 %v5412
      %v5414 = vlaneseq
      %v5415 = vshrl.u32 %v5414, 7
      %v5416 = vsub.s32 %v5413, %v5415
      %v5417 = vrot.slane %v5403, %v5416
      %v5418 = vcombine.low %v5410, %v5417
      %v5419 = vcombine.low %v4698, %v4700
      %v5420 = vcombine.low %v4708, %v4716
      %v5422 = vunpack.c.l.s4 1983009808
      %v5423 = vunpack.c.0.s8 %v5422
      %v5424 = vlaneseq
      %v5425 = vshrl.u32 %v5424, 7
      %v5426 = vsub.s32 %v5423, %v5425
      %v5427 = vrot.slane %v5419, %v5426
      %v5429 = vunpack.c.l.s4 1983009808
      %v5430 = vunpack.c.0.s8 %v5429
      %v5431 = vlaneseq
      %v5432 = vshrl.u32 %v5431, 7
      %v5433 = vsub.s32 %v5430, %v5432
      %v5434 = vrot.slane %v5420, %v5433
      %v5435 = vcombine.low %v5427, %v5434
      %v5437 = vunpack.c.l.s4 1983009808
      %v5438 = vunpack.c.0.s8 %v5437
      %v5439 = vlaneseq
      %v5440 = vshrl.u32 %v5439, 7
      %v5441 = vsub.s32 %v5438, %v5440
      %v5442 = vrot.slane %v4715, %v5441
      %v5443 = vcombine.low %v4717, %v4725
      %v5444 = vcombine.low %v4733, %v4732
      %v5446 = vunpack.c.l.s4 1983009808
      %v5447 = vunpack.c.0.s8 %v5446
      %v5448 = vlaneseq
      %v5449 = vshrl.u32 %v5448, 7
      %v5450 = vsub.s32 %v5447, %v5449
      %v5451 = vrot.slane %v5443, %v5450
      %v5453 = vunpack.c.l.s4 1983009808
      %v5454 = vunpack.c.0.s8 %v5453
      %v5455 = vlaneseq
      %v5456 = vshrl.u32 %v5455, 7
      %v5457 = vsub.s32 %v5454, %v5456
      %v5458 = vrot.slane %v5444, %v5457
      %v5459 = vcombine.low %v5451, %v5458
      %v5460 = vcombine.low %v4734, %v4742
      %v5461 = vcombine.low %v4750, %v4749
      %v5463 = vunpack.c.l.s4 1983009808
      %v5464 = vunpack.c.0.s8 %v5463
      %v5465 = vlaneseq
      %v5466 = vshrl.u32 %v5465, 7
      %v5467 = vsub.s32 %v5464, %v5466
      %v5468 = vrot.slane %v5460, %v5467
      %v5470 = vunpack.c.l.s4 1983009808
      %v5471 = vunpack.c.0.s8 %v5470
      %v5472 = vlaneseq
      %v5473 = vshrl.u32 %v5472, 7
      %v5474 = vsub.s32 %v5471, %v5473
      %v5475 = vrot.slane %v5461, %v5474
      %v5476 = vcombine.low %v5468, %v5475
      %v5478 = vunpack.c.l.s4 1983009808
      %v5479 = vunpack.c.0.s8 %v5478
      %v5480 = vlaneseq
      %v5481 = vshrl.u32 %v5480, 7
      %v5482 = vsub.s32 %v5479, %v5481
      %v5483 = vrot.slane %v4751, %v5482
      %v5484 = vcombine.low %v4759, %v4767
      %v5485 = vcombine.low %v4766, %v4768
      %v5487 = vunpack.c.l.s4 1983009808
      %v5488 = vunpack.c.0.s8 %v5487
      %v5489 = vlaneseq
      %v5490 = vshrl.u32 %v5489, 7
      %v5491 = vsub.s32 %v5488, %v5490
      %v5492 = vrot.slane %v5484, %v5491
      %v5494 = vunpack.c.l.s4 1983009808
      %v5495 = vunpack.c.0.s8 %v5494
      %v5496 = vlaneseq
      %v5497 = vshrl.u32 %v5496, 7
      %v5498 = vsub.s32 %v5495, %v5497
      %v5499 = vrot.slane %v5485, %v5498
      %v5500 = vcombine.low %v5492, %v5499
      %v5501 = vcombine.low %v4776, %v4784
      %v5502 = vcombine.low %v4783, %v4785
      %v5504 = vunpack.c.l.s4 1983009808
      %v5505 = vunpack.c.0.s8 %v5504
      %v5506 = vlaneseq
      %v5507 = vshrl.u32 %v5506, 7
      %v5508 = vsub.s32 %v5505, %v5507
      %v5509 = vrot.slane %v5501, %v5508
      %v5511 = vunpack.c.l.s4 1983009808
      %v5512 = vunpack.c.0.s8 %v5511
      %v5513 = vlaneseq
      %v5514 = vshrl.u32 %v5513, 7
      %v5515 = vsub.s32 %v5512, %v5514
      %v5516 = vrot.slane %v5502, %v5515
      %v5517 = vcombine.low %v5509, %v5516
      %v5519 = vunpack.c.l.s4 1983009808
      %v5520 = vunpack.c.0.s8 %v5519
      %v5521 = vlaneseq
      %v5522 = vshrl.u32 %v5521, 7
      %v5523 = vsub.s32 %v5520, %v5522
      %v5524 = vrot.slane %v4793, %v5523
      %v5525 = vcombine.low %v4801, %v4800
      %v5526 = vcombine.low %v4802, %v4810
      %v5528 = vunpack.c.l.s4 1983009808
      %v5529 = vunpack.c.0.s8 %v5528
      %v5530 = vlaneseq
      %v5531 = vshrl.u32 %v5530, 7
      %v5532 = vsub.s32 %v5529, %v5531
      %v5533 = vrot.slane %v5525, %v5532
      %v5535 = vunpack.c.l.s4 1983009808
      %v5536 = vunpack.c.0.s8 %v5535
      %v5537 = vlaneseq
      %v5538 = vshrl.u32 %v5537, 7
      %v5539 = vsub.s32 %v5536, %v5538
      %v5540 = vrot.slane %v5526, %v5539
      %v5541 = vcombine.low %v5533, %v5540
      %v5542 = vcombine.low %v4818, %v4817
      %v5543 = vcombine.low %v4819, %v4826
      %v5545 = vunpack.c.l.s4 1983009808
      %v5546 = vunpack.c.0.s8 %v5545
      %v5547 = vlaneseq
      %v5548 = vshrl.u32 %v5547, 7
      %v5549 = vsub.s32 %v5546, %v5548
      %v5550 = vrot.slane %v5542, %v5549
      %v5552 = vunpack.c.l.s4 1983009808
      %v5553 = vunpack.c.0.s8 %v5552
      %v5554 = vlaneseq
      %v5555 = vshrl.u32 %v5554, 7
      %v5556 = vsub.s32 %v5553, %v5555
      %v5557 = vrot.slane %v5543, %v5556
      %v5558 = vcombine.low %v5550, %v5557
      %v5560 = vunpack.c.l.s4 1983009808
      %v5561 = vunpack.c.0.s8 %v5560
      %v5562 = vlaneseq
      %v5563 = vshrl.u32 %v5562, 7
      %v5564 = vsub.s32 %v5561, %v5563
      %v5565 = vrot.slane %v4827, %v5564
      %v5566 = vrot.slane %v4844, 6
      %v5567 = vrot.slane %v4861, 6
      %v5568 = vsel %vm290, %v5566, %v5567
      %v5569 = vrot.slane %v4868, 6
      %v5570 = vsel %vm290, %v5567, %v5569
      %v5571 = vrot.slane %v4885, 6
      %v5572 = vrot.slane %v4902, 6
      %v5573 = vsel %vm290, %v5571, %v5572
      %v5574 = vrot.slane %v4909, 6
      %v5575 = vsel %vm290, %v5572, %v5574
      %v5576 = vrot.slane %v4926, 6
      %v5577 = vrot.slane %v4943, 6
      %v5578 = vsel %vm290, %v5576, %v5577
      %v5579 = vrot.slane %v4950, 6
      %v5580 = vsel %vm290, %v5577, %v5579
      %v5581 = vrot.slane %v4967, 6
      %v5582 = vrot.slane %v4984, 6
      %v5583 = vsel %vm290, %v5581, %v5582
      %v5584 = vrot.slane %v4991, 6
      %v5585 = vsel %vm290, %v5582, %v5584
      %v5586 = vrot.slane %v5008, 6
      %v5587 = vrot.slane %v5025, 6
      %v5588 = vsel %vm290, %v5586, %v5587
      %v5589 = vrot.slane %v5032, 6
      %v5590 = vsel %vm290, %v5587, %v5589
      %v5591 = vrot.slane %v5049, 6
      %v5592 = vrot.slane %v5066, 6
      %v5593 = vsel %vm290, %v5591, %v5592
      %v5594 = vrot.slane %v5073, 6
      %v5595 = vsel %vm290, %v5592, %v5594
      %v5596 = vrot.slane %v5090, 6
      %v5597 = vrot.slane %v5107, 6
      %v5598 = vsel %vm290, %v5596, %v5597
      %v5599 = vrot.slane %v5114, 6
      %v5600 = vsel %vm290, %v5597, %v5599
      %v5601 = vrot.slane %v5131, 6
      %v5602 = vrot.slane %v5148, 6
      %v5603 = vsel %vm290, %v5601, %v5602
      %v5604 = vrot.slane %v5155, 6
      %v5605 = vsel %vm290, %v5602, %v5604
      %v5606 = vrot.slane %v5172, 6
      %v5607 = vrot.slane %v5189, 6
      %v5608 = vsel %vm290, %v5606, %v5607
      %v5609 = vrot.slane %v5196, 6
      %v5610 = vsel %vm290, %v5607, %v5609
      %v5611 = vrot.slane %v5213, 6
      %v5612 = vrot.slane %v5230, 6
      %v5613 = vsel %vm290, %v5611, %v5612
      %v5614 = vrot.slane %v5237, 6
      %v5615 = vsel %vm290, %v5612, %v5614
      %v5616 = vrot.slane %v5254, 6
      %v5617 = vrot.slane %v5271, 6
      %v5618 = vsel %vm290, %v5616, %v5617
      %v5619 = vrot.slane %v5278, 6
      %v5620 = vsel %vm290, %v5617, %v5619
      %v5621 = vrot.slane %v5295, 6
      %v5622 = vrot.slane %v5312, 6
      %v5623 = vsel %vm290, %v5621, %v5622
      %v5624 = vrot.slane %v5319, 6
      %v5625 = vsel %vm290, %v5622, %v5624
      %v5626 = vrot.slane %v5336, 6
      %v5627 = vrot.slane %v5353, 6
      %v5628 = vsel %vm290, %v5626, %v5627
      %v5629 = vrot.slane %v5360, 6
      %v5630 = vsel %vm290, %v5627, %v5629
      %v5631 = vrot.slane %v5377, 6
      %v5632 = vrot.slane %v5394, 6
      %v5633 = vsel %vm290, %v5631, %v5632
      %v5634 = vrot.slane %v5401, 6
      %v5635 = vsel %vm290, %v5632, %v5634
      %v5636 = vrot.slane %v5418, 6
      %v5637 = vrot.slane %v5435, 6
      %v5638 = vsel %vm290, %v5636, %v5637
      %v5639 = vrot.slane %v5442, 6
      %v5640 = vsel %vm290, %v5637, %v5639
      %v5641 = vrot.slane %v5459, 6
      %v5642 = vrot.slane %v5476, 6
      %v5643 = vsel %vm290, %v5641, %v5642
      %v5644 = vrot.slane %v5483, 6
      %v5645 = vsel %vm290, %v5642, %v5644
      %v5646 = vrot.slane %v5500, 6
      %v5647 = vrot.slane %v5517, 6
      %v5648 = vsel %vm290, %v5646, %v5647
      %v5649 = vrot.slane %v5524, 6
      %v5650 = vsel %vm290, %v5647, %v5649
      %v5651 = vrot.slane %v5541, 6
      %v5652 = vrot.slane %v5558, 6
      %v5653 = vsel %vm290, %v5651, %v5652
      %v5654 = vrot.slane %v5565, 6
      %v5655 = vsel %vm290, %v5652, %v5654
      %v5710 = vsel %vm290, 0.0, %v5566
      %v5711 = vsel %vm290, 0.0, %v5571
      %v5712 = vsel %vm290, 0.0, %v5576
      %v5713 = vsel %vm290, 0.0, %v5581
      %v5714 = vsel %vm290, 0.0, %v5586
      %v5715 = vsel %vm290, 0.0, %v5591
      %v5716 = vsel %vm290, 0.0, %v5596
      %v5717 = vsel %vm290, 0.0, %v5601
      %v5718 = vsel %vm290, 0.0, %v5606
      %v5719 = vsel %vm290, 0.0, %v5611
      %v5720 = vsel %vm290, 0.0, %v5616
      %v5721 = vsel %vm290, 0.0, %v5621
      %v5722 = vsel %vm290, 0.0, %v5626
      %v5723 = vsel %vm290, 0.0, %v5631
      %v5724 = vsel %vm290, 0.0, %v5636
      %v5725 = vsel %vm290, 0.0, %v5641
      %v5726 = vsel %vm290, 0.0, %v5646
      %v5727 = vsel %vm290, 0.0, %v5651
      %vm5728 = vcmask 1043456
      %v5729 = vsel %vm5728, %v292, 0.0
      %v5730 = vsel %vm5728, %v5570, 0.0
      %v5731 = vsel %vm5728, %v5575, 0.0
      %v5732 = vsel %vm5728, %v5580, 0.0
      %v5733 = vsel %vm5728, %v5585, 0.0
      %v5734 = vsel %vm5728, %v5590, 0.0
      %v5735 = vsel %vm5728, %v5595, 0.0
      %v5736 = vsel %vm5728, %v5600, 0.0
      %v5737 = vsel %vm5728, %v5605, 0.0
      %v5738 = vsel %vm5728, %v5610, 0.0
      %v5739 = vsel %vm5728, %v5615, 0.0
      %v5740 = vsel %vm5728, %v5620, 0.0
      %v5741 = vsel %vm5728, %v5625, 0.0
      %v5742 = vsel %vm5728, %v5630, 0.0
      %v5743 = vsel %vm5728, %v5635, 0.0
      %v5744 = vsel %vm5728, %v5640, 0.0
      %v5745 = vsel %vm5728, %v5645, 0.0
      %v5746 = vsel %vm5728, %v5650, 0.0
      %v5747 = vsel %vm5728, %v5655, 0.0
      %v5748 = vld [vmem:[%s3] sm:$0xff]
      %v5749 = vld [vmem:[%s4] sm:$0xff]
      %v5787 = vrot.slane %v5729, 1
      %v5788 = vsel %vm461, %v463, %v5787
      %v5789 = vrot.slane %v5710, 1
      %v5790 = vrot.slane %v5568, 1
      %v5791 = vsel %vm461, %v5789, %v5790
      %v5792 = vrot.slane %v5730, 1
      %v5793 = vsel %vm461, %v5790, %v5792
      %v5794 = vrot.slane %v5711, 1
      %v5795 = vrot.slane %v5573, 1
      %v5796 = vsel %vm461, %v5794, %v5795
      %v5797 = vrot.slane %v5731, 1
      %v5798 = vsel %vm461, %v5795, %v5797
      %v5799 = vrot.slane %v5712, 1
      %v5800 = vrot.slane %v5578, 1
      %v5801 = vsel %vm461, %v5799, %v5800
      %v5802 = vrot.slane %v5732, 1
      %v5803 = vsel %vm461, %v5800, %v5802
      %v5804 = vrot.slane %v5713, 1
      %v5805 = vrot.slane %v5583, 1
      %v5806 = vsel %vm461, %v5804, %v5805
      %v5807 = vrot.slane %v5733, 1
      %v5808 = vsel %vm461, %v5805, %v5807
      %v5809 = vrot.slane %v5714, 1
      %v5810 = vrot.slane %v5588, 1
      %v5811 = vsel %vm461, %v5809, %v5810
      %v5812 = vrot.slane %v5734, 1
      %v5813 = vsel %vm461, %v5810, %v5812
      %v5814 = vrot.slane %v5715, 1
      %v5815 = vrot.slane %v5593, 1
      %v5816 = vsel %vm461, %v5814, %v5815
      %v5817 = vrot.slane %v5735, 1
      %v5818 = vsel %vm461, %v5815, %v5817
      %v5819 = vrot.slane %v5716, 1
      %v5820 = vrot.slane %v5598, 1
      %v5821 = vsel %vm461, %v5819, %v5820
      %v5822 = vrot.slane %v5736, 1
      %v5823 = vsel %vm461, %v5820, %v5822
      %v5824 = vrot.slane %v5717, 1
      %v5825 = vrot.slane %v5603, 1
      %v5826 = vsel %vm461, %v5824, %v5825
      %v5827 = vrot.slane %v5737, 1
      %v5828 = vsel %vm461, %v5825, %v5827
      %v5829 = vrot.slane %v5718, 1
      %v5830 = vrot.slane %v5608, 1
      %v5831 = vsel %vm461, %v5829, %v5830
      %v5832 = vrot.slane %v5738, 1
      %v5833 = vsel %vm461, %v5830, %v5832
      %v5834 = vrot.slane %v5719, 1
      %v5835 = vrot.slane %v5613, 1
      %v5836 = vsel %vm461, %v5834, %v5835
      %v5837 = vrot.slane %v5739, 1
      %v5838 = vsel %vm461, %v5835, %v5837
      %v5839 = vrot.slane %v5720, 1
      %v5840 = vrot.slane %v5618, 1
      %v5841 = vsel %vm461, %v5839, %v5840
      %v5842 = vrot.slane %v5740, 1
      %v5843 = vsel %vm461, %v5840, %v5842
      %v5844 = vrot.slane %v5721, 1
      %v5845 = vrot.slane %v5623, 1
      %v5846 = vsel %vm461, %v5844, %v5845
      %v5847 = vrot.slane %v5741, 1
      %v5848 = vsel %vm461, %v5845, %v5847
      %v5849 = vrot.slane %v5722, 1
      %v5850 = vrot.slane %v5628, 1
      %v5851 = vsel %vm461, %v5849, %v5850
      %v5852 = vrot.slane %v5742, 1
      %v5853 = vsel %vm461, %v5850, %v5852
      %v5854 = vrot.slane %v5723, 1
      %v5855 = vrot.slane %v5633, 1
      %v5856 = vsel %vm461, %v5854, %v5855
      %v5857 = vrot.slane %v5743, 1
      %v5858 = vsel %vm461, %v5855, %v5857
      %v5859 = vrot.slane %v5724, 1
      %v5860 = vrot.slane %v5638, 1
      %v5861 = vsel %vm461, %v5859, %v5860
      %v5862 = vrot.slane %v5744, 1
      %v5863 = vsel %vm461, %v5860, %v5862
      %v5864 = vrot.slane %v5725, 1
      %v5865 = vrot.slane %v5643, 1
      %v5866 = vsel %vm461, %v5864, %v5865
      %v5867 = vrot.slane %v5745, 1
      %v5868 = vsel %vm461, %v5865, %v5867
      %v5869 = vrot.slane %v5726, 1
      %v5870 = vrot.slane %v5648, 1
      %v5871 = vsel %vm461, %v5869, %v5870
      %v5872 = vrot.slane %v5746, 1
      %v5873 = vsel %vm461, %v5870, %v5872
      %v5874 = vrot.slane %v5727, 1
      %v5875 = vrot.slane %v5653, 1
      %v5876 = vsel %vm461, %v5874, %v5875
      %v5877 = vrot.slane %v5747, 1
      %v5878 = vsel %vm461, %v5875, %v5877
      %5879 = vrot.lane.b32.xlu0 %v464, 8
      %v5880 = vpop.permute.xlu0 %5879
      %5881 = vrot.lane.b32.xlu0 %v5788, 8
      %v5882 = vpop.permute.xlu0 %5881
      %5883 = vrot.lane.b32.xlu0 %v5787, 8
      %v5884 = vpop.permute.xlu0 %5883
      %5885 = vrot.lane.b32.xlu0 %v5791, 8
      %v5886 = vpop.permute.xlu0 %5885
      %5887 = vrot.lane.b32.xlu0 %v5793, 8
      %v5888 = vpop.permute.xlu0 %5887
      %5889 = vrot.lane.b32.xlu0 %v5792, 8
      %v5890 = vpop.permute.xlu0 %5889
      %5891 = vrot.lane.b32.xlu0 %v5796, 8
      %v5892 = vpop.permute.xlu0 %5891
      %5893 = vrot.lane.b32.xlu0 %v5798, 8
      %v5894 = vpop.permute.xlu0 %5893
      %5895 = vrot.lane.b32.xlu0 %v5797, 8
      %v5896 = vpop.permute.xlu0 %5895
      %5897 = vrot.lane.b32.xlu0 %v5801, 8
      %v5898 = vpop.permute.xlu0 %5897
      %5899 = vrot.lane.b32.xlu0 %v5803, 8
      %v5900 = vpop.permute.xlu0 %5899
      %5901 = vrot.lane.b32.xlu0 %v5802, 8
      %v5902 = vpop.permute.xlu0 %5901
      %5903 = vrot.lane.b32.xlu0 %v5806, 8
      %v5904 = vpop.permute.xlu0 %5903
      %5905 = vrot.lane.b32.xlu0 %v5808, 8
      %v5906 = vpop.permute.xlu0 %5905
      %5907 = vrot.lane.b32.xlu0 %v5807, 8
      %v5908 = vpop.permute.xlu0 %5907
      %5909 = vrot.lane.b32.xlu0 %v5811, 8
      %v5910 = vpop.permute.xlu0 %5909
      %5911 = vrot.lane.b32.xlu0 %v5813, 8
      %v5912 = vpop.permute.xlu0 %5911
      %5913 = vrot.lane.b32.xlu0 %v5812, 8
      %v5914 = vpop.permute.xlu0 %5913
      %5915 = vrot.lane.b32.xlu0 %v5816, 8
      %v5916 = vpop.permute.xlu0 %5915
      %5917 = vrot.lane.b32.xlu0 %v5818, 8
      %v5918 = vpop.permute.xlu0 %5917
      %5919 = vrot.lane.b32.xlu0 %v5817, 8
      %v5920 = vpop.permute.xlu0 %5919
      %5921 = vrot.lane.b32.xlu0 %v5821, 8
      %v5922 = vpop.permute.xlu0 %5921
      %5923 = vrot.lane.b32.xlu0 %v5823, 8
      %v5924 = vpop.permute.xlu0 %5923
      %5925 = vrot.lane.b32.xlu0 %v5822, 8
      %v5926 = vpop.permute.xlu0 %5925
      %5927 = vrot.lane.b32.xlu0 %v5826, 8
      %v5928 = vpop.permute.xlu0 %5927
      %5929 = vrot.lane.b32.xlu0 %v5828, 8
      %v5930 = vpop.permute.xlu0 %5929
      %5931 = vrot.lane.b32.xlu0 %v5827, 8
      %v5932 = vpop.permute.xlu0 %5931
      %5933 = vrot.lane.b32.xlu0 %v5831, 8
      %v5934 = vpop.permute.xlu0 %5933
      %5935 = vrot.lane.b32.xlu0 %v5833, 8
      %v5936 = vpop.permute.xlu0 %5935
      %5937 = vrot.lane.b32.xlu0 %v5832, 8
      %v5938 = vpop.permute.xlu0 %5937
      %5939 = vrot.lane.b32.xlu0 %v5836, 8
      %v5940 = vpop.permute.xlu0 %5939
      %5941 = vrot.lane.b32.xlu0 %v5838, 8
      %v5942 = vpop.permute.xlu0 %5941
      %5943 = vrot.lane.b32.xlu0 %v5837, 8
      %v5944 = vpop.permute.xlu0 %5943
      %5945 = vrot.lane.b32.xlu0 %v5841, 8
      %v5946 = vpop.permute.xlu0 %5945
      %5947 = vrot.lane.b32.xlu0 %v5843, 8
      %v5948 = vpop.permute.xlu0 %5947
      %5949 = vrot.lane.b32.xlu0 %v5842, 8
      %v5950 = vpop.permute.xlu0 %5949
      %5951 = vrot.lane.b32.xlu0 %v5846, 8
      %v5952 = vpop.permute.xlu0 %5951
      %5953 = vrot.lane.b32.xlu0 %v5848, 8
      %v5954 = vpop.permute.xlu0 %5953
      %5955 = vrot.lane.b32.xlu0 %v5847, 8
      %v5956 = vpop.permute.xlu0 %5955
      %5957 = vrot.lane.b32.xlu0 %v5851, 8
      %v5958 = vpop.permute.xlu0 %5957
      %5959 = vrot.lane.b32.xlu0 %v5853, 8
      %v5960 = vpop.permute.xlu0 %5959
      %5961 = vrot.lane.b32.xlu0 %v5852, 8
      %v5962 = vpop.permute.xlu0 %5961
      %5963 = vrot.lane.b32.xlu0 %v5856, 8
      %v5964 = vpop.permute.xlu0 %5963
      %5965 = vrot.lane.b32.xlu0 %v5858, 8
      %v5966 = vpop.permute.xlu0 %5965
      %5967 = vrot.lane.b32.xlu0 %v5857, 8
      %v5968 = vpop.permute.xlu0 %5967
      %5969 = vrot.lane.b32.xlu0 %v5861, 8
      %v5970 = vpop.permute.xlu0 %5969
      %5971 = vrot.lane.b32.xlu0 %v5863, 8
      %v5972 = vpop.permute.xlu0 %5971
      %5973 = vrot.lane.b32.xlu0 %v5862, 8
      %v5974 = vpop.permute.xlu0 %5973
      %5975 = vrot.lane.b32.xlu0 %v5866, 8
      %v5976 = vpop.permute.xlu0 %5975
      %5977 = vrot.lane.b32.xlu0 %v5868, 8
      %v5978 = vpop.permute.xlu0 %5977
      %5979 = vrot.lane.b32.xlu0 %v5867, 8
      %v5980 = vpop.permute.xlu0 %5979
      %5981 = vrot.lane.b32.xlu0 %v5871, 8
      %v5982 = vpop.permute.xlu0 %5981
      %5983 = vrot.lane.b32.xlu0 %v5873, 8
      %v5984 = vpop.permute.xlu0 %5983
      %5985 = vrot.lane.b32.xlu0 %v5872, 8
      %v5986 = vpop.permute.xlu0 %5985
      %5987 = vrot.lane.b32.xlu0 %v5876, 8
      %v5988 = vpop.permute.xlu0 %5987
      %5989 = vrot.lane.b32.xlu0 %v5878, 8
      %v5990 = vpop.permute.xlu0 %5989
      %5991 = vrot.lane.b32.xlu0 %v5877, 8
      %v5992 = vpop.permute.xlu0 %5991
      %v6050 = vrot.slane %v5729, 2
      %v6051 = vsel %vm700, %v702, %v6050
      %v6052 = vrot.slane %v5710, 2
      %v6053 = vrot.slane %v5568, 2
      %v6054 = vsel %vm700, %v6052, %v6053
      %v6055 = vrot.slane %v5730, 2
      %v6056 = vsel %vm700, %v6053, %v6055
      %v6057 = vrot.slane %v5711, 2
      %v6058 = vrot.slane %v5573, 2
      %v6059 = vsel %vm700, %v6057, %v6058
      %v6060 = vrot.slane %v5731, 2
      %v6061 = vsel %vm700, %v6058, %v6060
      %v6062 = vrot.slane %v5712, 2
      %v6063 = vrot.slane %v5578, 2
      %v6064 = vsel %vm700, %v6062, %v6063
      %v6065 = vrot.slane %v5732, 2
      %v6066 = vsel %vm700, %v6063, %v6065
      %v6067 = vrot.slane %v5713, 2
      %v6068 = vrot.slane %v5583, 2
      %v6069 = vsel %vm700, %v6067, %v6068
      %v6070 = vrot.slane %v5733, 2
      %v6071 = vsel %vm700, %v6068, %v6070
      %v6072 = vrot.slane %v5714, 2
      %v6073 = vrot.slane %v5588, 2
      %v6074 = vsel %vm700, %v6072, %v6073
      %v6075 = vrot.slane %v5734, 2
      %v6076 = vsel %vm700, %v6073, %v6075
      %v6077 = vrot.slane %v5715, 2
      %v6078 = vrot.slane %v5593, 2
      %v6079 = vsel %vm700, %v6077, %v6078
      %v6080 = vrot.slane %v5735, 2
      %v6081 = vsel %vm700, %v6078, %v6080
      %v6082 = vrot.slane %v5716, 2
      %v6083 = vrot.slane %v5598, 2
      %v6084 = vsel %vm700, %v6082, %v6083
      %v6085 = vrot.slane %v5736, 2
      %v6086 = vsel %vm700, %v6083, %v6085
      %v6087 = vrot.slane %v5717, 2
      %v6088 = vrot.slane %v5603, 2
      %v6089 = vsel %vm700, %v6087, %v6088
      %v6090 = vrot.slane %v5737, 2
      %v6091 = vsel %vm700, %v6088, %v6090
      %v6092 = vrot.slane %v5718, 2
      %v6093 = vrot.slane %v5608, 2
      %v6094 = vsel %vm700, %v6092, %v6093
      %v6095 = vrot.slane %v5738, 2
      %v6096 = vsel %vm700, %v6093, %v6095
      %v6097 = vrot.slane %v5719, 2
      %v6098 = vrot.slane %v5613, 2
      %v6099 = vsel %vm700, %v6097, %v6098
      %v6100 = vrot.slane %v5739, 2
      %v6101 = vsel %vm700, %v6098, %v6100
      %v6102 = vrot.slane %v5720, 2
      %v6103 = vrot.slane %v5618, 2
      %v6104 = vsel %vm700, %v6102, %v6103
      %v6105 = vrot.slane %v5740, 2
      %v6106 = vsel %vm700, %v6103, %v6105
      %v6107 = vrot.slane %v5721, 2
      %v6108 = vrot.slane %v5623, 2
      %v6109 = vsel %vm700, %v6107, %v6108
      %v6110 = vrot.slane %v5741, 2
      %v6111 = vsel %vm700, %v6108, %v6110
      %v6112 = vrot.slane %v5722, 2
      %v6113 = vrot.slane %v5628, 2
      %v6114 = vsel %vm700, %v6112, %v6113
      %v6115 = vrot.slane %v5742, 2
      %v6116 = vsel %vm700, %v6113, %v6115
      %v6117 = vrot.slane %v5723, 2
      %v6118 = vrot.slane %v5633, 2
      %v6119 = vsel %vm700, %v6117, %v6118
      %v6120 = vrot.slane %v5743, 2
      %v6121 = vsel %vm700, %v6118, %v6120
      %v6122 = vrot.slane %v5724, 2
      %v6123 = vrot.slane %v5638, 2
      %v6124 = vsel %vm700, %v6122, %v6123
      %v6125 = vrot.slane %v5744, 2
      %v6126 = vsel %vm700, %v6123, %v6125
      %v6127 = vrot.slane %v5725, 2
      %v6128 = vrot.slane %v5643, 2
      %v6129 = vsel %vm700, %v6127, %v6128
      %v6130 = vrot.slane %v5745, 2
      %v6131 = vsel %vm700, %v6128, %v6130
      %v6132 = vrot.slane %v5726, 2
      %v6133 = vrot.slane %v5648, 2
      %v6134 = vsel %vm700, %v6132, %v6133
      %v6135 = vrot.slane %v5746, 2
      %v6136 = vsel %vm700, %v6133, %v6135
      %v6137 = vrot.slane %v5727, 2
      %v6138 = vrot.slane %v5653, 2
      %v6139 = vsel %vm700, %v6137, %v6138
      %v6140 = vrot.slane %v5747, 2
      %v6141 = vsel %vm700, %v6138, %v6140
      %6142 = vrot.lane.b32.xlu0 %v703, 16
      %v6143 = vpop.permute.xlu0 %6142
      %6144 = vrot.lane.b32.xlu0 %v6051, 16
      %v6145 = vpop.permute.xlu0 %6144
      %6146 = vrot.lane.b32.xlu0 %v6050, 16
      %v6147 = vpop.permute.xlu0 %6146
      %6148 = vrot.lane.b32.xlu0 %v6054, 16
      %v6149 = vpop.permute.xlu0 %6148
      %6150 = vrot.lane.b32.xlu0 %v6056, 16
      %v6151 = vpop.permute.xlu0 %6150
      %6152 = vrot.lane.b32.xlu0 %v6055, 16
      %v6153 = vpop.permute.xlu0 %6152
      %6154 = vrot.lane.b32.xlu0 %v6059, 16
      %v6155 = vpop.permute.xlu0 %6154
      %6156 = vrot.lane.b32.xlu0 %v6061, 16
      %v6157 = vpop.permute.xlu0 %6156
      %6158 = vrot.lane.b32.xlu0 %v6060, 16
      %v6159 = vpop.permute.xlu0 %6158
      %6160 = vrot.lane.b32.xlu0 %v6064, 16
      %v6161 = vpop.permute.xlu0 %6160
      %6162 = vrot.lane.b32.xlu0 %v6066, 16
      %v6163 = vpop.permute.xlu0 %6162
      %6164 = vrot.lane.b32.xlu0 %v6065, 16
      %v6165 = vpop.permute.xlu0 %6164
      %6166 = vrot.lane.b32.xlu0 %v6069, 16
      %v6167 = vpop.permute.xlu0 %6166
      %6168 = vrot.lane.b32.xlu0 %v6071, 16
      %v6169 = vpop.permute.xlu0 %6168
      %6170 = vrot.lane.b32.xlu0 %v6070, 16
      %v6171 = vpop.permute.xlu0 %6170
      %6172 = vrot.lane.b32.xlu0 %v6074, 16
      %v6173 = vpop.permute.xlu0 %6172
      %6174 = vrot.lane.b32.xlu0 %v6076, 16
      %v6175 = vpop.permute.xlu0 %6174
      %6176 = vrot.lane.b32.xlu0 %v6075, 16
      %v6177 = vpop.permute.xlu0 %6176
      %6178 = vrot.lane.b32.xlu0 %v6079, 16
      %v6179 = vpop.permute.xlu0 %6178
      %6180 = vrot.lane.b32.xlu0 %v6081, 16
      %v6181 = vpop.permute.xlu0 %6180
      %6182 = vrot.lane.b32.xlu0 %v6080, 16
      %v6183 = vpop.permute.xlu0 %6182
      %6184 = vrot.lane.b32.xlu0 %v6084, 16
      %v6185 = vpop.permute.xlu0 %6184
      %6186 = vrot.lane.b32.xlu0 %v6086, 16
      %v6187 = vpop.permute.xlu0 %6186
      %6188 = vrot.lane.b32.xlu0 %v6085, 16
      %v6189 = vpop.permute.xlu0 %6188
      %6190 = vrot.lane.b32.xlu0 %v6089, 16
      %v6191 = vpop.permute.xlu0 %6190
      %6192 = vrot.lane.b32.xlu0 %v6091, 16
      %v6193 = vpop.permute.xlu0 %6192
      %6194 = vrot.lane.b32.xlu0 %v6090, 16
      %v6195 = vpop.permute.xlu0 %6194
      %6196 = vrot.lane.b32.xlu0 %v6094, 16
      %v6197 = vpop.permute.xlu0 %6196
      %6198 = vrot.lane.b32.xlu0 %v6096, 16
      %v6199 = vpop.permute.xlu0 %6198
      %6200 = vrot.lane.b32.xlu0 %v6095, 16
      %v6201 = vpop.permute.xlu0 %6200
      %6202 = vrot.lane.b32.xlu0 %v6099, 16
      %v6203 = vpop.permute.xlu0 %6202
      %6204 = vrot.lane.b32.xlu0 %v6101, 16
      %v6205 = vpop.permute.xlu0 %6204
      %6206 = vrot.lane.b32.xlu0 %v6100, 16
      %v6207 = vpop.permute.xlu0 %6206
      %6208 = vrot.lane.b32.xlu0 %v6104, 16
      %v6209 = vpop.permute.xlu0 %6208
      %6210 = vrot.lane.b32.xlu0 %v6106, 16
      %v6211 = vpop.permute.xlu0 %6210
      %6212 = vrot.lane.b32.xlu0 %v6105, 16
      %v6213 = vpop.permute.xlu0 %6212
      %6214 = vrot.lane.b32.xlu0 %v6109, 16
      %v6215 = vpop.permute.xlu0 %6214
      %6216 = vrot.lane.b32.xlu0 %v6111, 16
      %v6217 = vpop.permute.xlu0 %6216
      %6218 = vrot.lane.b32.xlu0 %v6110, 16
      %v6219 = vpop.permute.xlu0 %6218
      %6220 = vrot.lane.b32.xlu0 %v6114, 16
      %v6221 = vpop.permute.xlu0 %6220
      %6222 = vrot.lane.b32.xlu0 %v6116, 16
      %v6223 = vpop.permute.xlu0 %6222
      %6224 = vrot.lane.b32.xlu0 %v6115, 16
      %v6225 = vpop.permute.xlu0 %6224
      %6226 = vrot.lane.b32.xlu0 %v6119, 16
      %v6227 = vpop.permute.xlu0 %6226
      %6228 = vrot.lane.b32.xlu0 %v6121, 16
      %v6229 = vpop.permute.xlu0 %6228
      %6230 = vrot.lane.b32.xlu0 %v6120, 16
      %v6231 = vpop.permute.xlu0 %6230
      %6232 = vrot.lane.b32.xlu0 %v6124, 16
      %v6233 = vpop.permute.xlu0 %6232
      %6234 = vrot.lane.b32.xlu0 %v6126, 16
      %v6235 = vpop.permute.xlu0 %6234
      %6236 = vrot.lane.b32.xlu0 %v6125, 16
      %v6237 = vpop.permute.xlu0 %6236
      %6238 = vrot.lane.b32.xlu0 %v6129, 16
      %v6239 = vpop.permute.xlu0 %6238
      %6240 = vrot.lane.b32.xlu0 %v6131, 16
      %v6241 = vpop.permute.xlu0 %6240
      %6242 = vrot.lane.b32.xlu0 %v6130, 16
      %v6243 = vpop.permute.xlu0 %6242
      %6244 = vrot.lane.b32.xlu0 %v6134, 16
      %v6245 = vpop.permute.xlu0 %6244
      %6246 = vrot.lane.b32.xlu0 %v6136, 16
      %v6247 = vpop.permute.xlu0 %6246
      %6248 = vrot.lane.b32.xlu0 %v6135, 16
      %v6249 = vpop.permute.xlu0 %6248
      %6250 = vrot.lane.b32.xlu0 %v6139, 16
      %v6251 = vpop.permute.xlu0 %6250
      %6252 = vrot.lane.b32.xlu0 %v6141, 16
      %v6253 = vpop.permute.xlu0 %6252
      %6254 = vrot.lane.b32.xlu0 %v6140, 16
      %v6255 = vpop.permute.xlu0 %6254
      %6313 = vrot.lane.b32.xlu0 %v5729, 24
      %v6314 = vpop.permute.xlu0 %6313
      %6315 = vrot.lane.b32.xlu0 %v5710, 24
      %v6316 = vpop.permute.xlu0 %6315
      %6317 = vrot.lane.b32.xlu0 %v5568, 24
      %v6318 = vpop.permute.xlu0 %6317
      %6319 = vrot.lane.b32.xlu0 %v5730, 24
      %v6320 = vpop.permute.xlu0 %6319
      %6321 = vrot.lane.b32.xlu0 %v5711, 24
      %v6322 = vpop.permute.xlu0 %6321
      %6323 = vrot.lane.b32.xlu0 %v5573, 24
      %v6324 = vpop.permute.xlu0 %6323
      %6325 = vrot.lane.b32.xlu0 %v5731, 24
      %v6326 = vpop.permute.xlu0 %6325
      %6327 = vrot.lane.b32.xlu0 %v5712, 24
      %v6328 = vpop.permute.xlu0 %6327
      %6329 = vrot.lane.b32.xlu0 %v5578, 24
      %v6330 = vpop.permute.xlu0 %6329
      %6331 = vrot.lane.b32.xlu0 %v5732, 24
      %v6332 = vpop.permute.xlu0 %6331
      %6333 = vrot.lane.b32.xlu0 %v5713, 24
      %v6334 = vpop.permute.xlu0 %6333
      %6335 = vrot.lane.b32.xlu0 %v5583, 24
      %v6336 = vpop.permute.xlu0 %6335
      %6337 = vrot.lane.b32.xlu0 %v5733, 24
      %v6338 = vpop.permute.xlu0 %6337
      %6339 = vrot.lane.b32.xlu0 %v5714, 24
      %v6340 = vpop.permute.xlu0 %6339
      %6341 = vrot.lane.b32.xlu0 %v5588, 24
      %v6342 = vpop.permute.xlu0 %6341
      %6343 = vrot.lane.b32.xlu0 %v5734, 24
      %v6344 = vpop.permute.xlu0 %6343
      %6345 = vrot.lane.b32.xlu0 %v5715, 24
      %v6346 = vpop.permute.xlu0 %6345
      %6347 = vrot.lane.b32.xlu0 %v5593, 24
      %v6348 = vpop.permute.xlu0 %6347
      %6349 = vrot.lane.b32.xlu0 %v5735, 24
      %v6350 = vpop.permute.xlu0 %6349
      %6351 = vrot.lane.b32.xlu0 %v5716, 24
      %v6352 = vpop.permute.xlu0 %6351
      %6353 = vrot.lane.b32.xlu0 %v5598, 24
      %v6354 = vpop.permute.xlu0 %6353
      %6355 = vrot.lane.b32.xlu0 %v5736, 24
      %v6356 = vpop.permute.xlu0 %6355
      %6357 = vrot.lane.b32.xlu0 %v5717, 24
      %v6358 = vpop.permute.xlu0 %6357
      %6359 = vrot.lane.b32.xlu0 %v5603, 24
      %v6360 = vpop.permute.xlu0 %6359
      %6361 = vrot.lane.b32.xlu0 %v5737, 24
      %v6362 = vpop.permute.xlu0 %6361
      %6363 = vrot.lane.b32.xlu0 %v5718, 24
      %v6364 = vpop.permute.xlu0 %6363
      %6365 = vrot.lane.b32.xlu0 %v5608, 24
      %v6366 = vpop.permute.xlu0 %6365
      %6367 = vrot.lane.b32.xlu0 %v5738, 24
      %v6368 = vpop.permute.xlu0 %6367
      %6369 = vrot.lane.b32.xlu0 %v5719, 24
      %v6370 = vpop.permute.xlu0 %6369
      %6371 = vrot.lane.b32.xlu0 %v5613, 24
      %v6372 = vpop.permute.xlu0 %6371
      %6373 = vrot.lane.b32.xlu0 %v5739, 24
      %v6374 = vpop.permute.xlu0 %6373
      %6375 = vrot.lane.b32.xlu0 %v5720, 24
      %v6376 = vpop.permute.xlu0 %6375
      %6377 = vrot.lane.b32.xlu0 %v5618, 24
      %v6378 = vpop.permute.xlu0 %6377
      %6379 = vrot.lane.b32.xlu0 %v5740, 24
      %v6380 = vpop.permute.xlu0 %6379
      %6381 = vrot.lane.b32.xlu0 %v5721, 24
      %v6382 = vpop.permute.xlu0 %6381
      %6383 = vrot.lane.b32.xlu0 %v5623, 24
      %v6384 = vpop.permute.xlu0 %6383
      %6385 = vrot.lane.b32.xlu0 %v5741, 24
      %v6386 = vpop.permute.xlu0 %6385
      %6387 = vrot.lane.b32.xlu0 %v5722, 24
      %v6388 = vpop.permute.xlu0 %6387
      %6389 = vrot.lane.b32.xlu0 %v5628, 24
      %v6390 = vpop.permute.xlu0 %6389
      %6391 = vrot.lane.b32.xlu0 %v5742, 24
      %v6392 = vpop.permute.xlu0 %6391
      %6393 = vrot.lane.b32.xlu0 %v5723, 24
      %v6394 = vpop.permute.xlu0 %6393
      %6395 = vrot.lane.b32.xlu0 %v5633, 24
      %v6396 = vpop.permute.xlu0 %6395
      %6397 = vrot.lane.b32.xlu0 %v5743, 24
      %v6398 = vpop.permute.xlu0 %6397
      %6399 = vrot.lane.b32.xlu0 %v5724, 24
      %v6400 = vpop.permute.xlu0 %6399
      %6401 = vrot.lane.b32.xlu0 %v5638, 24
      %v6402 = vpop.permute.xlu0 %6401
      %6403 = vrot.lane.b32.xlu0 %v5744, 24
      %v6404 = vpop.permute.xlu0 %6403
      %6405 = vrot.lane.b32.xlu0 %v5725, 24
      %v6406 = vpop.permute.xlu0 %6405
      %6407 = vrot.lane.b32.xlu0 %v5643, 24
      %v6408 = vpop.permute.xlu0 %6407
      %6409 = vrot.lane.b32.xlu0 %v5745, 24
      %v6410 = vpop.permute.xlu0 %6409
      %6411 = vrot.lane.b32.xlu0 %v5726, 24
      %v6412 = vpop.permute.xlu0 %6411
      %6413 = vrot.lane.b32.xlu0 %v5648, 24
      %v6414 = vpop.permute.xlu0 %6413
      %6415 = vrot.lane.b32.xlu0 %v5746, 24
      %v6416 = vpop.permute.xlu0 %6415
      %6417 = vrot.lane.b32.xlu0 %v5727, 24
      %v6418 = vpop.permute.xlu0 %6417
      %6419 = vrot.lane.b32.xlu0 %v5653, 24
      %v6420 = vpop.permute.xlu0 %6419
      %6421 = vrot.lane.b32.xlu0 %v5747, 24
      %v6422 = vpop.permute.xlu0 %6421
      %6478 = vrot.lane.b32.xlu0 %v464, 32
      %v6479 = vpop.permute.xlu0 %6478
      %6480 = vrot.lane.b32.xlu0 %v5788, 32
      %v6481 = vpop.permute.xlu0 %6480
      %6482 = vrot.lane.b32.xlu0 %v5787, 32
      %v6483 = vpop.permute.xlu0 %6482
      %6484 = vrot.lane.b32.xlu0 %v5791, 32
      %v6485 = vpop.permute.xlu0 %6484
      %6486 = vrot.lane.b32.xlu0 %v5793, 32
      %v6487 = vpop.permute.xlu0 %6486
      %6488 = vrot.lane.b32.xlu0 %v5792, 32
      %v6489 = vpop.permute.xlu0 %6488
      %6490 = vrot.lane.b32.xlu0 %v5796, 32
      %v6491 = vpop.permute.xlu0 %6490
      %6492 = vrot.lane.b32.xlu0 %v5798, 32
      %v6493 = vpop.permute.xlu0 %6492
      %6494 = vrot.lane.b32.xlu0 %v5797, 32
      %v6495 = vpop.permute.xlu0 %6494
      %6496 = vrot.lane.b32.xlu0 %v5801, 32
      %v6497 = vpop.permute.xlu0 %6496
      %6498 = vrot.lane.b32.xlu0 %v5803, 32
      %v6499 = vpop.permute.xlu0 %6498
      %6500 = vrot.lane.b32.xlu0 %v5802, 32
      %v6501 = vpop.permute.xlu0 %6500
      %6502 = vrot.lane.b32.xlu0 %v5806, 32
      %v6503 = vpop.permute.xlu0 %6502
      %6504 = vrot.lane.b32.xlu0 %v5808, 32
      %v6505 = vpop.permute.xlu0 %6504
      %6506 = vrot.lane.b32.xlu0 %v5807, 32
      %v6507 = vpop.permute.xlu0 %6506
      %6508 = vrot.lane.b32.xlu0 %v5811, 32
      %v6509 = vpop.permute.xlu0 %6508
      %6510 = vrot.lane.b32.xlu0 %v5813, 32
      %v6511 = vpop.permute.xlu0 %6510
      %6512 = vrot.lane.b32.xlu0 %v5812, 32
      %v6513 = vpop.permute.xlu0 %6512
      %6514 = vrot.lane.b32.xlu0 %v5816, 32
      %v6515 = vpop.permute.xlu0 %6514
      %6516 = vrot.lane.b32.xlu0 %v5818, 32
      %v6517 = vpop.permute.xlu0 %6516
      %6518 = vrot.lane.b32.xlu0 %v5817, 32
      %v6519 = vpop.permute.xlu0 %6518
      %6520 = vrot.lane.b32.xlu0 %v5821, 32
      %v6521 = vpop.permute.xlu0 %6520
      %6522 = vrot.lane.b32.xlu0 %v5823, 32
      %v6523 = vpop.permute.xlu0 %6522
      %6524 = vrot.lane.b32.xlu0 %v5822, 32
      %v6525 = vpop.permute.xlu0 %6524
      %6526 = vrot.lane.b32.xlu0 %v5826, 32
      %v6527 = vpop.permute.xlu0 %6526
      %6528 = vrot.lane.b32.xlu0 %v5828, 32
      %v6529 = vpop.permute.xlu0 %6528
      %6530 = vrot.lane.b32.xlu0 %v5827, 32
      %v6531 = vpop.permute.xlu0 %6530
      %6532 = vrot.lane.b32.xlu0 %v5831, 32
      %v6533 = vpop.permute.xlu0 %6532
      %6534 = vrot.lane.b32.xlu0 %v5833, 32
      %v6535 = vpop.permute.xlu0 %6534
      %6536 = vrot.lane.b32.xlu0 %v5832, 32
      %v6537 = vpop.permute.xlu0 %6536
      %6538 = vrot.lane.b32.xlu0 %v5836, 32
      %v6539 = vpop.permute.xlu0 %6538
      %6540 = vrot.lane.b32.xlu0 %v5838, 32
      %v6541 = vpop.permute.xlu0 %6540
      %6542 = vrot.lane.b32.xlu0 %v5837, 32
      %v6543 = vpop.permute.xlu0 %6542
      %6544 = vrot.lane.b32.xlu0 %v5841, 32
      %v6545 = vpop.permute.xlu0 %6544
      %6546 = vrot.lane.b32.xlu0 %v5843, 32
      %v6547 = vpop.permute.xlu0 %6546
      %6548 = vrot.lane.b32.xlu0 %v5842, 32
      %v6549 = vpop.permute.xlu0 %6548
      %6550 = vrot.lane.b32.xlu0 %v5846, 32
      %v6551 = vpop.permute.xlu0 %6550
      %6552 = vrot.lane.b32.xlu0 %v5848, 32
      %v6553 = vpop.permute.xlu0 %6552
      %6554 = vrot.lane.b32.xlu0 %v5847, 32
      %v6555 = vpop.permute.xlu0 %6554
      %6556 = vrot.lane.b32.xlu0 %v5851, 32
      %v6557 = vpop.permute.xlu0 %6556
      %6558 = vrot.lane.b32.xlu0 %v5853, 32
      %v6559 = vpop.permute.xlu0 %6558
      %6560 = vrot.lane.b32.xlu0 %v5852, 32
      %v6561 = vpop.permute.xlu0 %6560
      %6562 = vrot.lane.b32.xlu0 %v5856, 32
      %v6563 = vpop.permute.xlu0 %6562
      %6564 = vrot.lane.b32.xlu0 %v5858, 32
      %v6565 = vpop.permute.xlu0 %6564
      %6566 = vrot.lane.b32.xlu0 %v5857, 32
      %v6567 = vpop.permute.xlu0 %6566
      %6568 = vrot.lane.b32.xlu0 %v5861, 32
      %v6569 = vpop.permute.xlu0 %6568
      %6570 = vrot.lane.b32.xlu0 %v5863, 32
      %v6571 = vpop.permute.xlu0 %6570
      %6572 = vrot.lane.b32.xlu0 %v5862, 32
      %v6573 = vpop.permute.xlu0 %6572
      %6574 = vrot.lane.b32.xlu0 %v5866, 32
      %v6575 = vpop.permute.xlu0 %6574
      %6576 = vrot.lane.b32.xlu0 %v5868, 32
      %v6577 = vpop.permute.xlu0 %6576
      %6578 = vrot.lane.b32.xlu0 %v5867, 32
      %v6579 = vpop.permute.xlu0 %6578
      %6580 = vrot.lane.b32.xlu0 %v5871, 32
      %v6581 = vpop.permute.xlu0 %6580
      %6582 = vrot.lane.b32.xlu0 %v5873, 32
      %v6583 = vpop.permute.xlu0 %6582
      %6584 = vrot.lane.b32.xlu0 %v5872, 32
      %v6585 = vpop.permute.xlu0 %6584
      %6586 = vrot.lane.b32.xlu0 %v5876, 32
      %v6587 = vpop.permute.xlu0 %6586
      %6588 = vrot.lane.b32.xlu0 %v5878, 32
      %v6589 = vpop.permute.xlu0 %6588
      %6590 = vrot.lane.b32.xlu0 %v5877, 32
      %v6591 = vpop.permute.xlu0 %6590
      %6649 = vrot.lane.b32.xlu0 %v703, 40
      %v6650 = vpop.permute.xlu0 %6649
      %6651 = vrot.lane.b32.xlu0 %v6051, 40
      %v6652 = vpop.permute.xlu0 %6651
      %6653 = vrot.lane.b32.xlu0 %v6050, 40
      %v6654 = vpop.permute.xlu0 %6653
      %6655 = vrot.lane.b32.xlu0 %v6054, 40
      %v6656 = vpop.permute.xlu0 %6655
      %6657 = vrot.lane.b32.xlu0 %v6056, 40
      %v6658 = vpop.permute.xlu0 %6657
      %6659 = vrot.lane.b32.xlu0 %v6055, 40
      %v6660 = vpop.permute.xlu0 %6659
      %6661 = vrot.lane.b32.xlu0 %v6059, 40
      %v6662 = vpop.permute.xlu0 %6661
      %6663 = vrot.lane.b32.xlu0 %v6061, 40
      %v6664 = vpop.permute.xlu0 %6663
      %6665 = vrot.lane.b32.xlu0 %v6060, 40
      %v6666 = vpop.permute.xlu0 %6665
      %6667 = vrot.lane.b32.xlu0 %v6064, 40
      %v6668 = vpop.permute.xlu0 %6667
      %6669 = vrot.lane.b32.xlu0 %v6066, 40
      %v6670 = vpop.permute.xlu0 %6669
      %6671 = vrot.lane.b32.xlu0 %v6065, 40
      %v6672 = vpop.permute.xlu0 %6671
      %6673 = vrot.lane.b32.xlu0 %v6069, 40
      %v6674 = vpop.permute.xlu0 %6673
      %6675 = vrot.lane.b32.xlu0 %v6071, 40
      %v6676 = vpop.permute.xlu0 %6675
      %6677 = vrot.lane.b32.xlu0 %v6070, 40
      %v6678 = vpop.permute.xlu0 %6677
      %6679 = vrot.lane.b32.xlu0 %v6074, 40
      %v6680 = vpop.permute.xlu0 %6679
      %6681 = vrot.lane.b32.xlu0 %v6076, 40
      %v6682 = vpop.permute.xlu0 %6681
      %6683 = vrot.lane.b32.xlu0 %v6075, 40
      %v6684 = vpop.permute.xlu0 %6683
      %6685 = vrot.lane.b32.xlu0 %v6079, 40
      %v6686 = vpop.permute.xlu0 %6685
      %6687 = vrot.lane.b32.xlu0 %v6081, 40
      %v6688 = vpop.permute.xlu0 %6687
      %6689 = vrot.lane.b32.xlu0 %v6080, 40
      %v6690 = vpop.permute.xlu0 %6689
      %6691 = vrot.lane.b32.xlu0 %v6084, 40
      %v6692 = vpop.permute.xlu0 %6691
      %6693 = vrot.lane.b32.xlu0 %v6086, 40
      %v6694 = vpop.permute.xlu0 %6693
      %6695 = vrot.lane.b32.xlu0 %v6085, 40
      %v6696 = vpop.permute.xlu0 %6695
      %6697 = vrot.lane.b32.xlu0 %v6089, 40
      %v6698 = vpop.permute.xlu0 %6697
      %6699 = vrot.lane.b32.xlu0 %v6091, 40
      %v6700 = vpop.permute.xlu0 %6699
      %6701 = vrot.lane.b32.xlu0 %v6090, 40
      %v6702 = vpop.permute.xlu0 %6701
      %6703 = vrot.lane.b32.xlu0 %v6094, 40
      %v6704 = vpop.permute.xlu0 %6703
      %6705 = vrot.lane.b32.xlu0 %v6096, 40
      %v6706 = vpop.permute.xlu0 %6705
      %6707 = vrot.lane.b32.xlu0 %v6095, 40
      %v6708 = vpop.permute.xlu0 %6707
      %6709 = vrot.lane.b32.xlu0 %v6099, 40
      %v6710 = vpop.permute.xlu0 %6709
      %6711 = vrot.lane.b32.xlu0 %v6101, 40
      %v6712 = vpop.permute.xlu0 %6711
      %6713 = vrot.lane.b32.xlu0 %v6100, 40
      %v6714 = vpop.permute.xlu0 %6713
      %6715 = vrot.lane.b32.xlu0 %v6104, 40
      %v6716 = vpop.permute.xlu0 %6715
      %6717 = vrot.lane.b32.xlu0 %v6106, 40
      %v6718 = vpop.permute.xlu0 %6717
      %6719 = vrot.lane.b32.xlu0 %v6105, 40
      %v6720 = vpop.permute.xlu0 %6719
      %6721 = vrot.lane.b32.xlu0 %v6109, 40
      %v6722 = vpop.permute.xlu0 %6721
      %6723 = vrot.lane.b32.xlu0 %v6111, 40
      %v6724 = vpop.permute.xlu0 %6723
      %6725 = vrot.lane.b32.xlu0 %v6110, 40
      %v6726 = vpop.permute.xlu0 %6725
      %6727 = vrot.lane.b32.xlu0 %v6114, 40
      %v6728 = vpop.permute.xlu0 %6727
      %6729 = vrot.lane.b32.xlu0 %v6116, 40
      %v6730 = vpop.permute.xlu0 %6729
      %6731 = vrot.lane.b32.xlu0 %v6115, 40
      %v6732 = vpop.permute.xlu0 %6731
      %6733 = vrot.lane.b32.xlu0 %v6119, 40
      %v6734 = vpop.permute.xlu0 %6733
      %6735 = vrot.lane.b32.xlu0 %v6121, 40
      %v6736 = vpop.permute.xlu0 %6735
      %6737 = vrot.lane.b32.xlu0 %v6120, 40
      %v6738 = vpop.permute.xlu0 %6737
      %6739 = vrot.lane.b32.xlu0 %v6124, 40
      %v6740 = vpop.permute.xlu0 %6739
      %6741 = vrot.lane.b32.xlu0 %v6126, 40
      %v6742 = vpop.permute.xlu0 %6741
      %6743 = vrot.lane.b32.xlu0 %v6125, 40
      %v6744 = vpop.permute.xlu0 %6743
      %6745 = vrot.lane.b32.xlu0 %v6129, 40
      %v6746 = vpop.permute.xlu0 %6745
      %6747 = vrot.lane.b32.xlu0 %v6131, 40
      %v6748 = vpop.permute.xlu0 %6747
      %6749 = vrot.lane.b32.xlu0 %v6130, 40
      %v6750 = vpop.permute.xlu0 %6749
      %6751 = vrot.lane.b32.xlu0 %v6134, 40
      %v6752 = vpop.permute.xlu0 %6751
      %6753 = vrot.lane.b32.xlu0 %v6136, 40
      %v6754 = vpop.permute.xlu0 %6753
      %6755 = vrot.lane.b32.xlu0 %v6135, 40
      %v6756 = vpop.permute.xlu0 %6755
      %6757 = vrot.lane.b32.xlu0 %v6139, 40
      %v6758 = vpop.permute.xlu0 %6757
      %6759 = vrot.lane.b32.xlu0 %v6141, 40
      %v6760 = vpop.permute.xlu0 %6759
      %6761 = vrot.lane.b32.xlu0 %v6140, 40
      %v6762 = vpop.permute.xlu0 %6761
      %6820 = vrot.lane.b32.xlu0 %v5710, 48
      %v6821 = vpop.permute.xlu0 %6820
      %6822 = vrot.lane.b32.xlu0 %v5568, 48
      %v6823 = vpop.permute.xlu0 %6822
      %6824 = vrot.lane.b32.xlu0 %v5730, 48
      %v6825 = vpop.permute.xlu0 %6824
      %6826 = vrot.lane.b32.xlu0 %v5711, 48
      %v6827 = vpop.permute.xlu0 %6826
      %6828 = vrot.lane.b32.xlu0 %v5573, 48
      %v6829 = vpop.permute.xlu0 %6828
      %6830 = vrot.lane.b32.xlu0 %v5731, 48
      %v6831 = vpop.permute.xlu0 %6830
      %6832 = vrot.lane.b32.xlu0 %v5712, 48
      %v6833 = vpop.permute.xlu0 %6832
      %6834 = vrot.lane.b32.xlu0 %v5578, 48
      %v6835 = vpop.permute.xlu0 %6834
      %6836 = vrot.lane.b32.xlu0 %v5732, 48
      %v6837 = vpop.permute.xlu0 %6836
      %6838 = vrot.lane.b32.xlu0 %v5713, 48
      %v6839 = vpop.permute.xlu0 %6838
      %6840 = vrot.lane.b32.xlu0 %v5583, 48
      %v6841 = vpop.permute.xlu0 %6840
      %6842 = vrot.lane.b32.xlu0 %v5733, 48
      %v6843 = vpop.permute.xlu0 %6842
      %6844 = vrot.lane.b32.xlu0 %v5714, 48
      %v6845 = vpop.permute.xlu0 %6844
      %6846 = vrot.lane.b32.xlu0 %v5588, 48
      %v6847 = vpop.permute.xlu0 %6846
      %6848 = vrot.lane.b32.xlu0 %v5734, 48
      %v6849 = vpop.permute.xlu0 %6848
      %6850 = vrot.lane.b32.xlu0 %v5715, 48
      %v6851 = vpop.permute.xlu0 %6850
      %6852 = vrot.lane.b32.xlu0 %v5593, 48
      %v6853 = vpop.permute.xlu0 %6852
      %6854 = vrot.lane.b32.xlu0 %v5735, 48
      %v6855 = vpop.permute.xlu0 %6854
      %6856 = vrot.lane.b32.xlu0 %v5716, 48
      %v6857 = vpop.permute.xlu0 %6856
      %6858 = vrot.lane.b32.xlu0 %v5598, 48
      %v6859 = vpop.permute.xlu0 %6858
      %6860 = vrot.lane.b32.xlu0 %v5736, 48
      %v6861 = vpop.permute.xlu0 %6860
      %6862 = vrot.lane.b32.xlu0 %v5717, 48
      %v6863 = vpop.permute.xlu0 %6862
      %6864 = vrot.lane.b32.xlu0 %v5603, 48
      %v6865 = vpop.permute.xlu0 %6864
      %6866 = vrot.lane.b32.xlu0 %v5737, 48
      %v6867 = vpop.permute.xlu0 %6866
      %6868 = vrot.lane.b32.xlu0 %v5718, 48
      %v6869 = vpop.permute.xlu0 %6868
      %6870 = vrot.lane.b32.xlu0 %v5608, 48
      %v6871 = vpop.permute.xlu0 %6870
      %6872 = vrot.lane.b32.xlu0 %v5738, 48
      %v6873 = vpop.permute.xlu0 %6872
      %6874 = vrot.lane.b32.xlu0 %v5719, 48
      %v6875 = vpop.permute.xlu0 %6874
      %6876 = vrot.lane.b32.xlu0 %v5613, 48
      %v6877 = vpop.permute.xlu0 %6876
      %6878 = vrot.lane.b32.xlu0 %v5739, 48
      %v6879 = vpop.permute.xlu0 %6878
      %6880 = vrot.lane.b32.xlu0 %v5720, 48
      %v6881 = vpop.permute.xlu0 %6880
      %6882 = vrot.lane.b32.xlu0 %v5618, 48
      %v6883 = vpop.permute.xlu0 %6882
      %6884 = vrot.lane.b32.xlu0 %v5740, 48
      %v6885 = vpop.permute.xlu0 %6884
      %6886 = vrot.lane.b32.xlu0 %v5721, 48
      %v6887 = vpop.permute.xlu0 %6886
      %6888 = vrot.lane.b32.xlu0 %v5623, 48
      %v6889 = vpop.permute.xlu0 %6888
      %6890 = vrot.lane.b32.xlu0 %v5741, 48
      %v6891 = vpop.permute.xlu0 %6890
      %6892 = vrot.lane.b32.xlu0 %v5722, 48
      %v6893 = vpop.permute.xlu0 %6892
      %6894 = vrot.lane.b32.xlu0 %v5628, 48
      %v6895 = vpop.permute.xlu0 %6894
      %6896 = vrot.lane.b32.xlu0 %v5742, 48
      %v6897 = vpop.permute.xlu0 %6896
      %6898 = vrot.lane.b32.xlu0 %v5723, 48
      %v6899 = vpop.permute.xlu0 %6898
      %6900 = vrot.lane.b32.xlu0 %v5633, 48
      %v6901 = vpop.permute.xlu0 %6900
      %6902 = vrot.lane.b32.xlu0 %v5743, 48
      %v6903 = vpop.permute.xlu0 %6902
      %6904 = vrot.lane.b32.xlu0 %v5724, 48
      %v6905 = vpop.permute.xlu0 %6904
      %6906 = vrot.lane.b32.xlu0 %v5638, 48
      %v6907 = vpop.permute.xlu0 %6906
      %6908 = vrot.lane.b32.xlu0 %v5744, 48
      %v6909 = vpop.permute.xlu0 %6908
      %6910 = vrot.lane.b32.xlu0 %v5725, 48
      %v6911 = vpop.permute.xlu0 %6910
      %6912 = vrot.lane.b32.xlu0 %v5643, 48
      %v6913 = vpop.permute.xlu0 %6912
      %6914 = vrot.lane.b32.xlu0 %v5745, 48
      %v6915 = vpop.permute.xlu0 %6914
      %6916 = vrot.lane.b32.xlu0 %v5726, 48
      %v6917 = vpop.permute.xlu0 %6916
      %6918 = vrot.lane.b32.xlu0 %v5648, 48
      %v6919 = vpop.permute.xlu0 %6918
      %6920 = vrot.lane.b32.xlu0 %v5746, 48
      %v6921 = vpop.permute.xlu0 %6920
      %6922 = vrot.lane.b32.xlu0 %v5727, 48
      %v6923 = vpop.permute.xlu0 %6922
      %6924 = vrot.lane.b32.xlu0 %v5653, 48
      %v6925 = vpop.permute.xlu0 %6924
      %6926 = vrot.lane.b32.xlu0 %v5747, 48
      %v6927 = vpop.permute.xlu0 %6926
      %6928 = vrot.lane.b32.xlu0 %v391, 48
      %v6929 = vpop.permute.xlu0 %6928
      %6930 = vrot.lane.b32.xlu0 %v292, 48
      %v6931 = vpop.permute.xlu0 %6930
      %6932 = vrot.lane.b32.xlu0 %v5729, 48
      %v6933 = vpop.permute.xlu0 %6932
      %6991 = vrot.lane.b32.xlu0 %v5791, 56
      %v6992 = vpop.permute.xlu0 %6991
      %6993 = vrot.lane.b32.xlu0 %v5793, 56
      %v6994 = vpop.permute.xlu0 %6993
      %6995 = vrot.lane.b32.xlu0 %v5792, 56
      %v6996 = vpop.permute.xlu0 %6995
      %6997 = vrot.lane.b32.xlu0 %v5796, 56
      %v6998 = vpop.permute.xlu0 %6997
      %6999 = vrot.lane.b32.xlu0 %v5798, 56
      %v7000 = vpop.permute.xlu0 %6999
      %7001 = vrot.lane.b32.xlu0 %v5797, 56
      %v7002 = vpop.permute.xlu0 %7001
      %7003 = vrot.lane.b32.xlu0 %v5801, 56
      %v7004 = vpop.permute.xlu0 %7003
      %7005 = vrot.lane.b32.xlu0 %v5803, 56
      %v7006 = vpop.permute.xlu0 %7005
      %7007 = vrot.lane.b32.xlu0 %v5802, 56
      %v7008 = vpop.permute.xlu0 %7007
      %7009 = vrot.lane.b32.xlu0 %v5806, 56
      %v7010 = vpop.permute.xlu0 %7009
      %7011 = vrot.lane.b32.xlu0 %v5808, 56
      %v7012 = vpop.permute.xlu0 %7011
      %7013 = vrot.lane.b32.xlu0 %v5807, 56
      %v7014 = vpop.permute.xlu0 %7013
      %7015 = vrot.lane.b32.xlu0 %v5811, 56
      %v7016 = vpop.permute.xlu0 %7015
      %7017 = vrot.lane.b32.xlu0 %v5813, 56
      %v7018 = vpop.permute.xlu0 %7017
      %7019 = vrot.lane.b32.xlu0 %v5812, 56
      %v7020 = vpop.permute.xlu0 %7019
      %7021 = vrot.lane.b32.xlu0 %v5816, 56
      %v7022 = vpop.permute.xlu0 %7021
      %7023 = vrot.lane.b32.xlu0 %v5818, 56
      %v7024 = vpop.permute.xlu0 %7023
      %7025 = vrot.lane.b32.xlu0 %v5817, 56
      %v7026 = vpop.permute.xlu0 %7025
      %7027 = vrot.lane.b32.xlu0 %v5821, 56
      %v7028 = vpop.permute.xlu0 %7027
      %7029 = vrot.lane.b32.xlu0 %v5823, 56
      %v7030 = vpop.permute.xlu0 %7029
      %7031 = vrot.lane.b32.xlu0 %v5822, 56
      %v7032 = vpop.permute.xlu0 %7031
      %7033 = vrot.lane.b32.xlu0 %v5826, 56
      %v7034 = vpop.permute.xlu0 %7033
      %7035 = vrot.lane.b32.xlu0 %v5828, 56
      %v7036 = vpop.permute.xlu0 %7035
      %7037 = vrot.lane.b32.xlu0 %v5827, 56
      %v7038 = vpop.permute.xlu0 %7037
      %7039 = vrot.lane.b32.xlu0 %v5831, 56
      %v7040 = vpop.permute.xlu0 %7039
      %7041 = vrot.lane.b32.xlu0 %v5833, 56
      %v7042 = vpop.permute.xlu0 %7041
      %7043 = vrot.lane.b32.xlu0 %v5832, 56
      %v7044 = vpop.permute.xlu0 %7043
      %7045 = vrot.lane.b32.xlu0 %v5836, 56
      %v7046 = vpop.permute.xlu0 %7045
      %7047 = vrot.lane.b32.xlu0 %v5838, 56
      %v7048 = vpop.permute.xlu0 %7047
      %7049 = vrot.lane.b32.xlu0 %v5837, 56
      %v7050 = vpop.permute.xlu0 %7049
      %7051 = vrot.lane.b32.xlu0 %v5841, 56
      %v7052 = vpop.permute.xlu0 %7051
      %7053 = vrot.lane.b32.xlu0 %v5843, 56
      %v7054 = vpop.permute.xlu0 %7053
      %7055 = vrot.lane.b32.xlu0 %v5842, 56
      %v7056 = vpop.permute.xlu0 %7055
      %7057 = vrot.lane.b32.xlu0 %v5846, 56
      %v7058 = vpop.permute.xlu0 %7057
      %7059 = vrot.lane.b32.xlu0 %v5848, 56
      %v7060 = vpop.permute.xlu0 %7059
      %7061 = vrot.lane.b32.xlu0 %v5847, 56
      %v7062 = vpop.permute.xlu0 %7061
      %7063 = vrot.lane.b32.xlu0 %v5851, 56
      %v7064 = vpop.permute.xlu0 %7063
      %7065 = vrot.lane.b32.xlu0 %v5853, 56
      %v7066 = vpop.permute.xlu0 %7065
      %7067 = vrot.lane.b32.xlu0 %v5852, 56
      %v7068 = vpop.permute.xlu0 %7067
      %7069 = vrot.lane.b32.xlu0 %v5856, 56
      %v7070 = vpop.permute.xlu0 %7069
      %7071 = vrot.lane.b32.xlu0 %v5858, 56
      %v7072 = vpop.permute.xlu0 %7071
      %7073 = vrot.lane.b32.xlu0 %v5857, 56
      %v7074 = vpop.permute.xlu0 %7073
      %7075 = vrot.lane.b32.xlu0 %v5861, 56
      %v7076 = vpop.permute.xlu0 %7075
      %7077 = vrot.lane.b32.xlu0 %v5863, 56
      %v7078 = vpop.permute.xlu0 %7077
      %7079 = vrot.lane.b32.xlu0 %v5862, 56
      %v7080 = vpop.permute.xlu0 %7079
      %7081 = vrot.lane.b32.xlu0 %v5866, 56
      %v7082 = vpop.permute.xlu0 %7081
      %7083 = vrot.lane.b32.xlu0 %v5868, 56
      %v7084 = vpop.permute.xlu0 %7083
      %7085 = vrot.lane.b32.xlu0 %v5867, 56
      %v7086 = vpop.permute.xlu0 %7085
      %7087 = vrot.lane.b32.xlu0 %v5871, 56
      %v7088 = vpop.permute.xlu0 %7087
      %7089 = vrot.lane.b32.xlu0 %v5873, 56
      %v7090 = vpop.permute.xlu0 %7089
      %7091 = vrot.lane.b32.xlu0 %v5872, 56
      %v7092 = vpop.permute.xlu0 %7091
      %7093 = vrot.lane.b32.xlu0 %v5876, 56
      %v7094 = vpop.permute.xlu0 %7093
      %7095 = vrot.lane.b32.xlu0 %v5878, 56
      %v7096 = vpop.permute.xlu0 %7095
      %7097 = vrot.lane.b32.xlu0 %v5877, 56
      %v7098 = vpop.permute.xlu0 %7097
      %7099 = vrot.lane.b32.xlu0 %v464, 56
      %v7100 = vpop.permute.xlu0 %7099
      %7101 = vrot.lane.b32.xlu0 %v5788, 56
      %v7102 = vpop.permute.xlu0 %7101
      %7103 = vrot.lane.b32.xlu0 %v5787, 56
      %v7104 = vpop.permute.xlu0 %7103
      %7162 = vrot.lane.b32.xlu0 %v6054, 64
      %v7163 = vpop.permute.xlu0 %7162
      %7164 = vrot.lane.b32.xlu0 %v6056, 64
      %v7165 = vpop.permute.xlu0 %7164
      %7166 = vrot.lane.b32.xlu0 %v6055, 64
      %v7167 = vpop.permute.xlu0 %7166
      %7168 = vrot.lane.b32.xlu0 %v6059, 64
      %v7169 = vpop.permute.xlu0 %7168
      %7170 = vrot.lane.b32.xlu0 %v6061, 64
      %v7171 = vpop.permute.xlu0 %7170
      %7172 = vrot.lane.b32.xlu0 %v6060, 64
      %v7173 = vpop.permute.xlu0 %7172
      %7174 = vrot.lane.b32.xlu0 %v6064, 64
      %v7175 = vpop.permute.xlu0 %7174
      %7176 = vrot.lane.b32.xlu0 %v6066, 64
      %v7177 = vpop.permute.xlu0 %7176
      %7178 = vrot.lane.b32.xlu0 %v6065, 64
      %v7179 = vpop.permute.xlu0 %7178
      %7180 = vrot.lane.b32.xlu0 %v6069, 64
      %v7181 = vpop.permute.xlu0 %7180
      %7182 = vrot.lane.b32.xlu0 %v6071, 64
      %v7183 = vpop.permute.xlu0 %7182
      %7184 = vrot.lane.b32.xlu0 %v6070, 64
      %v7185 = vpop.permute.xlu0 %7184
      %7186 = vrot.lane.b32.xlu0 %v6074, 64
      %v7187 = vpop.permute.xlu0 %7186
      %7188 = vrot.lane.b32.xlu0 %v6076, 64
      %v7189 = vpop.permute.xlu0 %7188
      %7190 = vrot.lane.b32.xlu0 %v6075, 64
      %v7191 = vpop.permute.xlu0 %7190
      %7192 = vrot.lane.b32.xlu0 %v6079, 64
      %v7193 = vpop.permute.xlu0 %7192
      %7194 = vrot.lane.b32.xlu0 %v6081, 64
      %v7195 = vpop.permute.xlu0 %7194
      %7196 = vrot.lane.b32.xlu0 %v6080, 64
      %v7197 = vpop.permute.xlu0 %7196
      %7198 = vrot.lane.b32.xlu0 %v6084, 64
      %v7199 = vpop.permute.xlu0 %7198
      %7200 = vrot.lane.b32.xlu0 %v6086, 64
      %v7201 = vpop.permute.xlu0 %7200
      %7202 = vrot.lane.b32.xlu0 %v6085, 64
      %v7203 = vpop.permute.xlu0 %7202
      %7204 = vrot.lane.b32.xlu0 %v6089, 64
      %v7205 = vpop.permute.xlu0 %7204
      %7206 = vrot.lane.b32.xlu0 %v6091, 64
      %v7207 = vpop.permute.xlu0 %7206
      %7208 = vrot.lane.b32.xlu0 %v6090, 64
      %v7209 = vpop.permute.xlu0 %7208
      %7210 = vrot.lane.b32.xlu0 %v6094, 64
      %v7211 = vpop.permute.xlu0 %7210
      %7212 = vrot.lane.b32.xlu0 %v6096, 64
      %v7213 = vpop.permute.xlu0 %7212
      %7214 = vrot.lane.b32.xlu0 %v6095, 64
      %v7215 = vpop.permute.xlu0 %7214
      %7216 = vrot.lane.b32.xlu0 %v6099, 64
      %v7217 = vpop.permute.xlu0 %7216
      %7218 = vrot.lane.b32.xlu0 %v6101, 64
      %v7219 = vpop.permute.xlu0 %7218
      %7220 = vrot.lane.b32.xlu0 %v6100, 64
      %v7221 = vpop.permute.xlu0 %7220
      %7222 = vrot.lane.b32.xlu0 %v6104, 64
      %v7223 = vpop.permute.xlu0 %7222
      %7224 = vrot.lane.b32.xlu0 %v6106, 64
      %v7225 = vpop.permute.xlu0 %7224
      %7226 = vrot.lane.b32.xlu0 %v6105, 64
      %v7227 = vpop.permute.xlu0 %7226
      %7228 = vrot.lane.b32.xlu0 %v6109, 64
      %v7229 = vpop.permute.xlu0 %7228
      %7230 = vrot.lane.b32.xlu0 %v6111, 64
      %v7231 = vpop.permute.xlu0 %7230
      %7232 = vrot.lane.b32.xlu0 %v6110, 64
      %v7233 = vpop.permute.xlu0 %7232
      %7234 = vrot.lane.b32.xlu0 %v6114, 64
      %v7235 = vpop.permute.xlu0 %7234
      %7236 = vrot.lane.b32.xlu0 %v6116, 64
      %v7237 = vpop.permute.xlu0 %7236
      %7238 = vrot.lane.b32.xlu0 %v6115, 64
      %v7239 = vpop.permute.xlu0 %7238
      %7240 = vrot.lane.b32.xlu0 %v6119, 64
      %v7241 = vpop.permute.xlu0 %7240
      %7242 = vrot.lane.b32.xlu0 %v6121, 64
      %v7243 = vpop.permute.xlu0 %7242
      %7244 = vrot.lane.b32.xlu0 %v6120, 64
      %v7245 = vpop.permute.xlu0 %7244
      %7246 = vrot.lane.b32.xlu0 %v6124, 64
      %v7247 = vpop.permute.xlu0 %7246
      %7248 = vrot.lane.b32.xlu0 %v6126, 64
      %v7249 = vpop.permute.xlu0 %7248
      %7250 = vrot.lane.b32.xlu0 %v6125, 64
      %v7251 = vpop.permute.xlu0 %7250
      %7252 = vrot.lane.b32.xlu0 %v6129, 64
      %v7253 = vpop.permute.xlu0 %7252
      %7254 = vrot.lane.b32.xlu0 %v6131, 64
      %v7255 = vpop.permute.xlu0 %7254
      %7256 = vrot.lane.b32.xlu0 %v6130, 64
      %v7257 = vpop.permute.xlu0 %7256
      %7258 = vrot.lane.b32.xlu0 %v6134, 64
      %v7259 = vpop.permute.xlu0 %7258
      %7260 = vrot.lane.b32.xlu0 %v6136, 64
      %v7261 = vpop.permute.xlu0 %7260
      %7262 = vrot.lane.b32.xlu0 %v6135, 64
      %v7263 = vpop.permute.xlu0 %7262
      %7264 = vrot.lane.b32.xlu0 %v6139, 64
      %v7265 = vpop.permute.xlu0 %7264
      %7266 = vrot.lane.b32.xlu0 %v6141, 64
      %v7267 = vpop.permute.xlu0 %7266
      %7268 = vrot.lane.b32.xlu0 %v6140, 64
      %v7269 = vpop.permute.xlu0 %7268
      %7270 = vrot.lane.b32.xlu0 %v703, 64
      %v7271 = vpop.permute.xlu0 %7270
      %7272 = vrot.lane.b32.xlu0 %v6051, 64
      %v7273 = vpop.permute.xlu0 %7272
      %7274 = vrot.lane.b32.xlu0 %v6050, 64
      %v7275 = vpop.permute.xlu0 %7274
      %v7333 = vsel %vm1909, %v391, %v5880
      %v7334 = vsel %vm1909, %v292, %v5882
      %v7335 = vsel %vm1909, %v5729, %v5884
      %v7336 = vsel %vm1909, %v5710, %v5886
      %v7337 = vsel %vm1909, %v5568, %v5888
      %v7338 = vsel %vm1909, %v5730, %v5890
      %v7339 = vsel %vm1909, %v5711, %v5892
      %v7340 = vsel %vm1909, %v5573, %v5894
      %v7341 = vsel %vm1909, %v5731, %v5896
      %v7342 = vsel %vm1909, %v5712, %v5898
      %v7343 = vsel %vm1909, %v5578, %v5900
      %v7344 = vsel %vm1909, %v5732, %v5902
      %v7345 = vsel %vm1909, %v5713, %v5904
      %v7346 = vsel %vm1909, %v5583, %v5906
      %v7347 = vsel %vm1909, %v5733, %v5908
      %v7348 = vsel %vm1909, %v5714, %v5910
      %v7349 = vsel %vm1909, %v5588, %v5912
      %v7350 = vsel %vm1909, %v5734, %v5914
      %v7351 = vsel %vm1909, %v5715, %v5916
      %v7352 = vsel %vm1909, %v5593, %v5918
      %v7353 = vsel %vm1909, %v5735, %v5920
      %v7354 = vsel %vm1909, %v5716, %v5922
      %v7355 = vsel %vm1909, %v5598, %v5924
      %v7356 = vsel %vm1909, %v5736, %v5926
      %v7357 = vsel %vm1909, %v5717, %v5928
      %v7358 = vsel %vm1909, %v5603, %v5930
      %v7359 = vsel %vm1909, %v5737, %v5932
      %v7360 = vsel %vm1909, %v5718, %v5934
      %v7361 = vsel %vm1909, %v5608, %v5936
      %v7362 = vsel %vm1909, %v5738, %v5938
      %v7363 = vsel %vm1909, %v5719, %v5940
      %v7364 = vsel %vm1909, %v5613, %v5942
      %v7365 = vsel %vm1909, %v5739, %v5944
      %v7366 = vsel %vm1909, %v5720, %v5946
      %v7367 = vsel %vm1909, %v5618, %v5948
      %v7368 = vsel %vm1909, %v5740, %v5950
      %v7369 = vsel %vm1909, %v5721, %v5952
      %v7370 = vsel %vm1909, %v5623, %v5954
      %v7371 = vsel %vm1909, %v5741, %v5956
      %v7372 = vsel %vm1909, %v5722, %v5958
      %v7373 = vsel %vm1909, %v5628, %v5960
      %v7374 = vsel %vm1909, %v5742, %v5962
      %v7375 = vsel %vm1909, %v5723, %v5964
      %v7376 = vsel %vm1909, %v5633, %v5966
      %v7377 = vsel %vm1909, %v5743, %v5968
      %v7378 = vsel %vm1909, %v5724, %v5970
      %v7379 = vsel %vm1909, %v5638, %v5972
      %v7380 = vsel %vm1909, %v5744, %v5974
      %v7381 = vsel %vm1909, %v5725, %v5976
      %v7382 = vsel %vm1909, %v5643, %v5978
      %v7383 = vsel %vm1909, %v5745, %v5980
      %v7384 = vsel %vm1909, %v5726, %v5982
      %v7385 = vsel %vm1909, %v5648, %v5984
      %v7386 = vsel %vm1909, %v5746, %v5986
      %v7387 = vsel %vm1909, %v5727, %v5988
      %v7388 = vsel %vm1909, %v5653, %v5990
      %v7389 = vsel %vm1909, %v5747, %v5992
      %v7390 = vsel %vm2016, %v7333, %v6143
      %v7391 = vsel %vm2016, %v7334, %v6145
      %v7392 = vsel %vm2016, %v7335, %v6147
      %v7393 = vsel %vm2016, %v7336, %v6149
      %v7394 = vsel %vm2016, %v7337, %v6151
      %v7395 = vsel %vm2016, %v7338, %v6153
      %v7396 = vsel %vm2016, %v7339, %v6155
      %v7397 = vsel %vm2016, %v7340, %v6157
      %v7398 = vsel %vm2016, %v7341, %v6159
      %v7399 = vsel %vm2016, %v7342, %v6161
      %v7400 = vsel %vm2016, %v7343, %v6163
      %v7401 = vsel %vm2016, %v7344, %v6165
      %v7402 = vsel %vm2016, %v7345, %v6167
      %v7403 = vsel %vm2016, %v7346, %v6169
      %v7404 = vsel %vm2016, %v7347, %v6171
      %v7405 = vsel %vm2016, %v7348, %v6173
      %v7406 = vsel %vm2016, %v7349, %v6175
      %v7407 = vsel %vm2016, %v7350, %v6177
      %v7408 = vsel %vm2016, %v7351, %v6179
      %v7409 = vsel %vm2016, %v7352, %v6181
      %v7410 = vsel %vm2016, %v7353, %v6183
      %v7411 = vsel %vm2016, %v7354, %v6185
      %v7412 = vsel %vm2016, %v7355, %v6187
      %v7413 = vsel %vm2016, %v7356, %v6189
      %v7414 = vsel %vm2016, %v7357, %v6191
      %v7415 = vsel %vm2016, %v7358, %v6193
      %v7416 = vsel %vm2016, %v7359, %v6195
      %v7417 = vsel %vm2016, %v7360, %v6197
      %v7418 = vsel %vm2016, %v7361, %v6199
      %v7419 = vsel %vm2016, %v7362, %v6201
      %v7420 = vsel %vm2016, %v7363, %v6203
      %v7421 = vsel %vm2016, %v7364, %v6205
      %v7422 = vsel %vm2016, %v7365, %v6207
      %v7423 = vsel %vm2016, %v7366, %v6209
      %v7424 = vsel %vm2016, %v7367, %v6211
      %v7425 = vsel %vm2016, %v7368, %v6213
      %v7426 = vsel %vm2016, %v7369, %v6215
      %v7427 = vsel %vm2016, %v7370, %v6217
      %v7428 = vsel %vm2016, %v7371, %v6219
      %v7429 = vsel %vm2016, %v7372, %v6221
      %v7430 = vsel %vm2016, %v7373, %v6223
      %v7431 = vsel %vm2016, %v7374, %v6225
      %v7432 = vsel %vm2016, %v7375, %v6227
      %v7433 = vsel %vm2016, %v7376, %v6229
      %v7434 = vsel %vm2016, %v7377, %v6231
      %v7435 = vsel %vm2016, %v7378, %v6233
      %v7436 = vsel %vm2016, %v7379, %v6235
      %v7437 = vsel %vm2016, %v7380, %v6237
      %v7438 = vsel %vm2016, %v7381, %v6239
      %v7439 = vsel %vm2016, %v7382, %v6241
      %v7440 = vsel %vm2016, %v7383, %v6243
      %v7441 = vsel %vm2016, %v7384, %v6245
      %v7442 = vsel %vm2016, %v7385, %v6247
      %v7443 = vsel %vm2016, %v7386, %v6249
      %v7444 = vsel %vm2016, %v7387, %v6251
      %v7445 = vsel %vm2016, %v7388, %v6253
      %v7446 = vsel %vm2016, %v7389, %v6255
      %v7447 = vsel %vm2126, %v7390, %v1495
      %v7448 = vsel %vm2126, %v7391, %v1497
      %v7449 = vsel %vm2126, %v7392, %v6314
      %v7450 = vsel %vm2126, %v7390, %v6316
      %v7451 = vsel %vm2126, %v7391, %v6318
      %v7452 = vsel %vm2126, %v7392, %v6320
      %v7453 = vsel %vm2126, %v7393, %v6322
      %v7454 = vsel %vm2126, %v7394, %v6324
      %v7455 = vsel %vm2126, %v7395, %v6326
      %v7456 = vsel %vm2126, %v7396, %v6328
      %v7457 = vsel %vm2126, %v7397, %v6330
      %v7458 = vsel %vm2126, %v7398, %v6332
      %v7459 = vsel %vm2126, %v7399, %v6334
      %v7460 = vsel %vm2126, %v7400, %v6336
      %v7461 = vsel %vm2126, %v7401, %v6338
      %v7462 = vsel %vm2126, %v7402, %v6340
      %v7463 = vsel %vm2126, %v7403, %v6342
      %v7464 = vsel %vm2126, %v7404, %v6344
      %v7465 = vsel %vm2126, %v7405, %v6346
      %v7466 = vsel %vm2126, %v7406, %v6348
      %v7467 = vsel %vm2126, %v7407, %v6350
      %v7468 = vsel %vm2126, %v7408, %v6352
      %v7469 = vsel %vm2126, %v7409, %v6354
      %v7470 = vsel %vm2126, %v7410, %v6356
      %v7471 = vsel %vm2126, %v7411, %v6358
      %v7472 = vsel %vm2126, %v7412, %v6360
      %v7473 = vsel %vm2126, %v7413, %v6362
      %v7474 = vsel %vm2126, %v7414, %v6364
      %v7475 = vsel %vm2126, %v7415, %v6366
      %v7476 = vsel %vm2126, %v7416, %v6368
      %v7477 = vsel %vm2126, %v7417, %v6370
      %v7478 = vsel %vm2126, %v7418, %v6372
      %v7479 = vsel %vm2126, %v7419, %v6374
      %v7480 = vsel %vm2126, %v7420, %v6376
      %v7481 = vsel %vm2126, %v7421, %v6378
      %v7482 = vsel %vm2126, %v7422, %v6380
      %v7483 = vsel %vm2126, %v7423, %v6382
      %v7484 = vsel %vm2126, %v7424, %v6384
      %v7485 = vsel %vm2126, %v7425, %v6386
      %v7486 = vsel %vm2126, %v7426, %v6388
      %v7487 = vsel %vm2126, %v7427, %v6390
      %v7488 = vsel %vm2126, %v7428, %v6392
      %v7489 = vsel %vm2126, %v7429, %v6394
      %v7490 = vsel %vm2126, %v7430, %v6396
      %v7491 = vsel %vm2126, %v7431, %v6398
      %v7492 = vsel %vm2126, %v7432, %v6400
      %v7493 = vsel %vm2126, %v7433, %v6402
      %v7494 = vsel %vm2126, %v7434, %v6404
      %v7495 = vsel %vm2126, %v7435, %v6406
      %v7496 = vsel %vm2126, %v7436, %v6408
      %v7497 = vsel %vm2126, %v7437, %v6410
      %v7498 = vsel %vm2126, %v7438, %v6412
      %v7499 = vsel %vm2126, %v7439, %v6414
      %v7500 = vsel %vm2126, %v7440, %v6416
      %v7501 = vsel %vm2126, %v7441, %v6418
      %v7502 = vsel %vm2126, %v7442, %v6420
      %v7503 = vsel %vm2126, %v7443, %v6422
      %v7504 = vsel %vm2126, %v7444, %v1495
      %v7505 = vsel %vm2126, %v7445, %v1497
      %v7506 = vsel %vm2126, %v7446, %v6314
      %v7507 = vsel %vm2236, %v7447, %v6479
      %v7508 = vsel %vm2236, %v7448, %v6481
      %v7509 = vsel %vm2236, %v7449, %v6483
      %v7510 = vsel %vm2236, %v7450, %v6485
      %v7511 = vsel %vm2236, %v7451, %v6487
      %v7512 = vsel %vm2236, %v7452, %v6489
      %v7513 = vsel %vm2236, %v7453, %v6491
      %v7514 = vsel %vm2236, %v7454, %v6493
      %v7515 = vsel %vm2236, %v7455, %v6495
      %v7516 = vsel %vm2236, %v7456, %v6497
      %v7517 = vsel %vm2236, %v7457, %v6499
      %v7518 = vsel %vm2236, %v7458, %v6501
      %v7519 = vsel %vm2236, %v7459, %v6503
      %v7520 = vsel %vm2236, %v7460, %v6505
      %v7521 = vsel %vm2236, %v7461, %v6507
      %v7522 = vsel %vm2236, %v7462, %v6509
      %v7523 = vsel %vm2236, %v7463, %v6511
      %v7524 = vsel %vm2236, %v7464, %v6513
      %v7525 = vsel %vm2236, %v7465, %v6515
      %v7526 = vsel %vm2236, %v7466, %v6517
      %v7527 = vsel %vm2236, %v7467, %v6519
      %v7528 = vsel %vm2236, %v7468, %v6521
      %v7529 = vsel %vm2236, %v7469, %v6523
      %v7530 = vsel %vm2236, %v7470, %v6525
      %v7531 = vsel %vm2236, %v7471, %v6527
      %v7532 = vsel %vm2236, %v7472, %v6529
      %v7533 = vsel %vm2236, %v7473, %v6531
      %v7534 = vsel %vm2236, %v7474, %v6533
      %v7535 = vsel %vm2236, %v7475, %v6535
      %v7536 = vsel %vm2236, %v7476, %v6537
      %v7537 = vsel %vm2236, %v7477, %v6539
      %v7538 = vsel %vm2236, %v7478, %v6541
      %v7539 = vsel %vm2236, %v7479, %v6543
      %v7540 = vsel %vm2236, %v7480, %v6545
      %v7541 = vsel %vm2236, %v7481, %v6547
      %v7542 = vsel %vm2236, %v7482, %v6549
      %v7543 = vsel %vm2236, %v7483, %v6551
      %v7544 = vsel %vm2236, %v7484, %v6553
      %v7545 = vsel %vm2236, %v7485, %v6555
      %v7546 = vsel %vm2236, %v7486, %v6557
      %v7547 = vsel %vm2236, %v7487, %v6559
      %v7548 = vsel %vm2236, %v7488, %v6561
      %v7549 = vsel %vm2236, %v7489, %v6563
      %v7550 = vsel %vm2236, %v7490, %v6565
      %v7551 = vsel %vm2236, %v7491, %v6567
      %v7552 = vsel %vm2236, %v7492, %v6569
      %v7553 = vsel %vm2236, %v7493, %v6571
      %v7554 = vsel %vm2236, %v7494, %v6573
      %v7555 = vsel %vm2236, %v7495, %v6575
      %v7556 = vsel %vm2236, %v7496, %v6577
      %v7557 = vsel %vm2236, %v7497, %v6579
      %v7558 = vsel %vm2236, %v7498, %v6581
      %v7559 = vsel %vm2236, %v7499, %v6583
      %v7560 = vsel %vm2236, %v7500, %v6585
      %v7561 = vsel %vm2236, %v7501, %v6587
      %v7562 = vsel %vm2236, %v7502, %v6589
      %v7563 = vsel %vm2236, %v7503, %v6591
      %v7564 = vsel %vm2236, %v7504, %v6479
      %v7565 = vsel %vm2236, %v7505, %v6481
      %v7566 = vsel %vm2236, %v7506, %v6483
      %vm7567 = vcmask 326656
      %v7568 = vsel %vm7567, %v7507, %v6650
      %v7569 = vsel %vm7567, %v7508, %v6652
      %v7570 = vsel %vm7567, %v7509, %v6654
      %v7571 = vsel %vm7567, %v7510, %v6656
      %v7572 = vsel %vm7567, %v7511, %v6658
      %v7573 = vsel %vm7567, %v7512, %v6660
      %v7574 = vsel %vm7567, %v7513, %v6662
      %v7575 = vsel %vm7567, %v7514, %v6664
      %v7576 = vsel %vm7567, %v7515, %v6666
      %v7577 = vsel %vm7567, %v7516, %v6668
      %v7578 = vsel %vm7567, %v7517, %v6670
      %v7579 = vsel %vm7567, %v7518, %v6672
      %v7580 = vsel %vm7567, %v7519, %v6674
      %v7581 = vsel %vm7567, %v7520, %v6676
      %v7582 = vsel %vm7567, %v7521, %v6678
      %v7583 = vsel %vm7567, %v7522, %v6680
      %v7584 = vsel %vm7567, %v7523, %v6682
      %v7585 = vsel %vm7567, %v7524, %v6684
      %v7586 = vsel %vm7567, %v7525, %v6686
      %v7587 = vsel %vm7567, %v7526, %v6688
      %v7588 = vsel %vm7567, %v7527, %v6690
      %v7589 = vsel %vm7567, %v7528, %v6692
      %v7590 = vsel %vm7567, %v7529, %v6694
      %v7591 = vsel %vm7567, %v7530, %v6696
      %v7592 = vsel %vm7567, %v7531, %v6698
      %v7593 = vsel %vm7567, %v7532, %v6700
      %v7594 = vsel %vm7567, %v7533, %v6702
      %v7595 = vsel %vm7567, %v7534, %v6704
      %v7596 = vsel %vm7567, %v7535, %v6706
      %v7597 = vsel %vm7567, %v7536, %v6708
      %v7598 = vsel %vm7567, %v7537, %v6710
      %v7599 = vsel %vm7567, %v7538, %v6712
      %v7600 = vsel %vm7567, %v7539, %v6714
      %v7601 = vsel %vm7567, %v7540, %v6716
      %v7602 = vsel %vm7567, %v7541, %v6718
      %v7603 = vsel %vm7567, %v7542, %v6720
      %v7604 = vsel %vm7567, %v7543, %v6722
      %v7605 = vsel %vm7567, %v7544, %v6724
      %v7606 = vsel %vm7567, %v7545, %v6726
      %v7607 = vsel %vm7567, %v7546, %v6728
      %v7608 = vsel %vm7567, %v7547, %v6730
      %v7609 = vsel %vm7567, %v7548, %v6732
      %v7610 = vsel %vm7567, %v7549, %v6734
      %v7611 = vsel %vm7567, %v7550, %v6736
      %v7612 = vsel %vm7567, %v7551, %v6738
      %v7613 = vsel %vm7567, %v7552, %v6740
      %v7614 = vsel %vm7567, %v7553, %v6742
      %v7615 = vsel %vm7567, %v7554, %v6744
      %v7616 = vsel %vm7567, %v7555, %v6746
      %v7617 = vsel %vm7567, %v7556, %v6748
      %v7618 = vsel %vm7567, %v7557, %v6750
      %v7619 = vsel %vm7567, %v7558, %v6752
      %v7620 = vsel %vm7567, %v7559, %v6754
      %v7621 = vsel %vm7567, %v7560, %v6756
      %v7622 = vsel %vm7567, %v7561, %v6758
      %v7623 = vsel %vm7567, %v7562, %v6760
      %v7624 = vsel %vm7567, %v7563, %v6762
      %v7625 = vsel %vm7567, %v7564, %v6650
      %v7626 = vsel %vm7567, %v7565, %v6652
      %v7627 = vsel %vm7567, %v7566, %v6654
      %vm7628 = vcmask 392192
      %v7629 = vsel %vm7628, %v7568, %v6821
      %v7630 = vsel %vm7628, %v7569, %v6823
      %v7631 = vsel %vm7628, %v7570, %v6825
      %v7632 = vsel %vm7628, %v7571, %v6827
      %v7633 = vsel %vm7628, %v7572, %v6829
      %v7634 = vsel %vm7628, %v7573, %v6831
      %v7635 = vsel %vm7628, %v7574, %v6833
      %v7636 = vsel %vm7628, %v7575, %v6835
      %v7637 = vsel %vm7628, %v7576, %v6837
      %v7638 = vsel %vm7628, %v7577, %v6839
      %v7639 = vsel %vm7628, %v7578, %v6841
      %v7640 = vsel %vm7628, %v7579, %v6843
      %v7641 = vsel %vm7628, %v7580, %v6845
      %v7642 = vsel %vm7628, %v7581, %v6847
      %v7643 = vsel %vm7628, %v7582, %v6849
      %v7644 = vsel %vm7628, %v7583, %v6851
      %v7645 = vsel %vm7628, %v7584, %v6853
      %v7646 = vsel %vm7628, %v7585, %v6855
      %v7647 = vsel %vm7628, %v7586, %v6857
      %v7648 = vsel %vm7628, %v7587, %v6859
      %v7649 = vsel %vm7628, %v7588, %v6861
      %v7650 = vsel %vm7628, %v7589, %v6863
      %v7651 = vsel %vm7628, %v7590, %v6865
      %v7652 = vsel %vm7628, %v7591, %v6867
      %v7653 = vsel %vm7628, %v7592, %v6869
      %v7654 = vsel %vm7628, %v7593, %v6871
      %v7655 = vsel %vm7628, %v7594, %v6873
      %v7656 = vsel %vm7628, %v7595, %v6875
      %v7657 = vsel %vm7628, %v7596, %v6877
      %v7658 = vsel %vm7628, %v7597, %v6879
      %v7659 = vsel %vm7628, %v7598, %v6881
      %v7660 = vsel %vm7628, %v7599, %v6883
      %v7661 = vsel %vm7628, %v7600, %v6885
      %v7662 = vsel %vm7628, %v7601, %v6887
      %v7663 = vsel %vm7628, %v7602, %v6889
      %v7664 = vsel %vm7628, %v7603, %v6891
      %v7665 = vsel %vm7628, %v7604, %v6893
      %v7666 = vsel %vm7628, %v7605, %v6895
      %v7667 = vsel %vm7628, %v7606, %v6897
      %v7668 = vsel %vm7628, %v7607, %v6899
      %v7669 = vsel %vm7628, %v7608, %v6901
      %v7670 = vsel %vm7628, %v7609, %v6903
      %v7671 = vsel %vm7628, %v7610, %v6905
      %v7672 = vsel %vm7628, %v7611, %v6907
      %v7673 = vsel %vm7628, %v7612, %v6909
      %v7674 = vsel %vm7628, %v7613, %v6911
      %v7675 = vsel %vm7628, %v7614, %v6913
      %v7676 = vsel %vm7628, %v7615, %v6915
      %v7677 = vsel %vm7628, %v7616, %v6917
      %v7678 = vsel %vm7628, %v7617, %v6919
      %v7679 = vsel %vm7628, %v7618, %v6921
      %v7680 = vsel %vm7628, %v7619, %v6923
      %v7681 = vsel %vm7628, %v7620, %v6925
      %v7682 = vsel %vm7628, %v7621, %v6927
      %v7683 = vsel %vm7628, %v7622, %v6929
      %v7684 = vsel %vm7628, %v7623, %v6931
      %v7685 = vsel %vm7628, %v7624, %v6933
      %v7686 = vsel %vm7628, %v7625, %v6929
      %v7687 = vsel %vm7628, %v7626, %v6931
      %v7688 = vsel %vm7628, %v7627, %v6933
      %vm7689 = vcmask 457728
      %v7690 = vsel %vm7689, %v7629, %v6992
      %v7691 = vsel %vm7689, %v7630, %v6994
      %v7692 = vsel %vm7689, %v7631, %v6996
      %v7693 = vsel %vm7689, %v7632, %v6998
      %v7694 = vsel %vm7689, %v7633, %v7000
      %v7695 = vsel %vm7689, %v7634, %v7002
      %v7696 = vsel %vm7689, %v7635, %v7004
      %v7697 = vsel %vm7689, %v7636, %v7006
      %v7698 = vsel %vm7689, %v7637, %v7008
      %v7699 = vsel %vm7689, %v7638, %v7010
      %v7700 = vsel %vm7689, %v7639, %v7012
      %v7701 = vsel %vm7689, %v7640, %v7014
      %v7702 = vsel %vm7689, %v7641, %v7016
      %v7703 = vsel %vm7689, %v7642, %v7018
      %v7704 = vsel %vm7689, %v7643, %v7020
      %v7705 = vsel %vm7689, %v7644, %v7022
      %v7706 = vsel %vm7689, %v7645, %v7024
      %v7707 = vsel %vm7689, %v7646, %v7026
      %v7708 = vsel %vm7689, %v7647, %v7028
      %v7709 = vsel %vm7689, %v7648, %v7030
      %v7710 = vsel %vm7689, %v7649, %v7032
      %v7711 = vsel %vm7689, %v7650, %v7034
      %v7712 = vsel %vm7689, %v7651, %v7036
      %v7713 = vsel %vm7689, %v7652, %v7038
      %v7714 = vsel %vm7689, %v7653, %v7040
      %v7715 = vsel %vm7689, %v7654, %v7042
      %v7716 = vsel %vm7689, %v7655, %v7044
      %v7717 = vsel %vm7689, %v7656, %v7046
      %v7718 = vsel %vm7689, %v7657, %v7048
      %v7719 = vsel %vm7689, %v7658, %v7050
      %v7720 = vsel %vm7689, %v7659, %v7052
      %v7721 = vsel %vm7689, %v7660, %v7054
      %v7722 = vsel %vm7689, %v7661, %v7056
      %v7723 = vsel %vm7689, %v7662, %v7058
      %v7724 = vsel %vm7689, %v7663, %v7060
      %v7725 = vsel %vm7689, %v7664, %v7062
      %v7726 = vsel %vm7689, %v7665, %v7064
      %v7727 = vsel %vm7689, %v7666, %v7066
      %v7728 = vsel %vm7689, %v7667, %v7068
      %v7729 = vsel %vm7689, %v7668, %v7070
      %v7730 = vsel %vm7689, %v7669, %v7072
      %v7731 = vsel %vm7689, %v7670, %v7074
      %v7732 = vsel %vm7689, %v7671, %v7076
      %v7733 = vsel %vm7689, %v7672, %v7078
      %v7734 = vsel %vm7689, %v7673, %v7080
      %v7735 = vsel %vm7689, %v7674, %v7082
      %v7736 = vsel %vm7689, %v7675, %v7084
      %v7737 = vsel %vm7689, %v7676, %v7086
      %v7738 = vsel %vm7689, %v7677, %v7088
      %v7739 = vsel %vm7689, %v7678, %v7090
      %v7740 = vsel %vm7689, %v7679, %v7092
      %v7741 = vsel %vm7689, %v7680, %v7094
      %v7742 = vsel %vm7689, %v7681, %v7096
      %v7743 = vsel %vm7689, %v7682, %v7098
      %v7744 = vsel %vm7689, %v7683, %v7100
      %v7745 = vsel %vm7689, %v7684, %v7102
      %v7746 = vsel %vm7689, %v7685, %v7104
      %v7747 = vsel %vm7689, %v7686, %v7100
      %v7748 = vsel %vm7689, %v7687, %v7102
      %v7749 = vsel %vm7689, %v7688, %v7104
      %vm7750 = vcmask 523264
      %v7751 = vsel %vm7750, %v7690, %v7163
      %v7752 = vsel %vm7750, %v7691, %v7165
      %v7753 = vsel %vm7750, %v7692, %v7167
      %v7754 = vsel %vm7750, %v7693, %v7169
      %v7755 = vsel %vm7750, %v7694, %v7171
      %v7756 = vsel %vm7750, %v7695, %v7173
      %v7757 = vsel %vm7750, %v7696, %v7175
      %v7758 = vsel %vm7750, %v7697, %v7177
      %v7759 = vsel %vm7750, %v7698, %v7179
      %v7760 = vsel %vm7750, %v7699, %v7181
      %v7761 = vsel %vm7750, %v7700, %v7183
      %v7762 = vsel %vm7750, %v7701, %v7185
      %v7763 = vsel %vm7750, %v7702, %v7187
      %v7764 = vsel %vm7750, %v7703, %v7189
      %v7765 = vsel %vm7750, %v7704, %v7191
      %v7766 = vsel %vm7750, %v7705, %v7193
      %v7767 = vsel %vm7750, %v7706, %v7195
      %v7768 = vsel %vm7750, %v7707, %v7197
      %v7769 = vsel %vm7750, %v7708, %v7199
      %v7770 = vsel %vm7750, %v7709, %v7201
      %v7771 = vsel %vm7750, %v7710, %v7203
      %v7772 = vsel %vm7750, %v7711, %v7205
      %v7773 = vsel %vm7750, %v7712, %v7207
      %v7774 = vsel %vm7750, %v7713, %v7209
      %v7775 = vsel %vm7750, %v7714, %v7211
      %v7776 = vsel %vm7750, %v7715, %v7213
      %v7777 = vsel %vm7750, %v7716, %v7215
      %v7778 = vsel %vm7750, %v7717, %v7217
      %v7779 = vsel %vm7750, %v7718, %v7219
      %v7780 = vsel %vm7750, %v7719, %v7221
      %v7781 = vsel %vm7750, %v7720, %v7223
      %v7782 = vsel %vm7750, %v7721, %v7225
      %v7783 = vsel %vm7750, %v7722, %v7227
      %v7784 = vsel %vm7750, %v7723, %v7229
      %v7785 = vsel %vm7750, %v7724, %v7231
      %v7786 = vsel %vm7750, %v7725, %v7233
      %v7787 = vsel %vm7750, %v7726, %v7235
      %v7788 = vsel %vm7750, %v7727, %v7237
      %v7789 = vsel %vm7750, %v7728, %v7239
      %v7790 = vsel %vm7750, %v7729, %v7241
      %v7791 = vsel %vm7750, %v7730, %v7243
      %v7792 = vsel %vm7750, %v7731, %v7245
      %v7793 = vsel %vm7750, %v7732, %v7247
      %v7794 = vsel %vm7750, %v7733, %v7249
      %v7795 = vsel %vm7750, %v7734, %v7251
      %v7796 = vsel %vm7750, %v7735, %v7253
      %v7797 = vsel %vm7750, %v7736, %v7255
      %v7798 = vsel %vm7750, %v7737, %v7257
      %v7799 = vsel %vm7750, %v7738, %v7259
      %v7800 = vsel %vm7750, %v7739, %v7261
      %v7801 = vsel %vm7750, %v7740, %v7263
      %v7802 = vsel %vm7750, %v7741, %v7265
      %v7803 = vsel %vm7750, %v7742, %v7267
      %v7804 = vsel %vm7750, %v7743, %v7269
      %v7805 = vsel %vm7750, %v7744, %v7271
      %v7806 = vsel %vm7750, %v7745, %v7273
      %v7807 = vsel %vm7750, %v7746, %v7275
      %v7808 = vsel %vm7750, %v7747, %v7271
      %v7809 = vsel %vm7750, %v7748, %v7273
      %v7810 = vsel %vm7750, %v7749, %v7275
      %v7871 = vcombine.high %v7751, %v7751
      %v7872 = vcombine.high %v7752, %v7752
      %v7873 = vcombine.high %v7754, %v7754
      %v7874 = vcombine.high %v7755, %v7755
      %v7875 = vcombine.high %v7757, %v7757
      %v7876 = vcombine.high %v7758, %v7758
      %v7877 = vcombine.high %v7760, %v7760
      %v7878 = vcombine.high %v7761, %v7761
      %v7879 = vcombine.high %v7763, %v7763
      %v7880 = vcombine.high %v7764, %v7764
      %v7881 = vcombine.high %v7766, %v7766
      %v7882 = vcombine.high %v7767, %v7767
      %v7883 = vcombine.high %v7769, %v7769
      %v7884 = vcombine.high %v7770, %v7770
      %v7885 = vcombine.high %v7772, %v7772
      %v7886 = vcombine.high %v7773, %v7773
      %v7887 = vcombine.high %v7775, %v7775
      %v7888 = vcombine.high %v7776, %v7776
      %v7889 = vcombine.high %v7778, %v7778
      %v7890 = vcombine.high %v7779, %v7779
      %v7891 = vcombine.high %v7781, %v7781
      %v7892 = vcombine.high %v7782, %v7782
      %v7893 = vcombine.high %v7784, %v7784
      %v7894 = vcombine.high %v7785, %v7785
      %v7895 = vcombine.high %v7787, %v7787
      %v7896 = vcombine.high %v7788, %v7788
      %v7897 = vcombine.high %v7790, %v7790
      %v7898 = vcombine.high %v7791, %v7791
      %v7899 = vcombine.high %v7793, %v7793
      %v7900 = vcombine.high %v7794, %v7794
      %v7901 = vcombine.high %v7796, %v7796
      %v7902 = vcombine.high %v7797, %v7797
      %v7903 = vcombine.high %v7799, %v7799
      %v7904 = vcombine.high %v7800, %v7800
      %v7905 = vcombine.high %v7802, %v7802
      %v7906 = vcombine.high %v7803, %v7803
      %v7907 = vcombine.high %v7805, %v7805
      %v7908 = vcombine.high %v7806, %v7806
      %v7909 = vcombine.high %v7808, %v7808
      %v7910 = vcombine.high %v7809, %v7809
      %7912 = vset.pattern.permute.xlu0 0
      %7913 = vperm.xlu0 %7912, %v5749
      %v7914 = vpop.permute.xlu0 %7913
      %v7916 = vcombine.low %v7751, %v7871
      %v7917 = vcombine.low %v7752, %v7872
      %v7918 = vcombine.low %v7753, %v7754
      %v7919 = vcombine.low %v7873, %v7755
      %v7920 = vcombine.low %v7874, %v7756
      %v7921 = vcombine.low %v7757, %v7875
      %v7922 = vcombine.low %v7758, %v7876
      %v7923 = vcombine.low %v7759, %v7760
      %v7924 = vcombine.low %v7877, %v7761
      %v7925 = vcombine.low %v7878, %v7762
      %v7926 = vcombine.low %v7763, %v7879
      %v7927 = vcombine.low %v7764, %v7880
      %v7928 = vcombine.low %v7765, %v7766
      %v7929 = vcombine.low %v7881, %v7767
      %v7930 = vcombine.low %v7882, %v7768
      %v7931 = vcombine.low %v7769, %v7883
      %v7932 = vcombine.low %v7770, %v7884
      %v7933 = vcombine.low %v7771, %v7772
      %v7934 = vcombine.low %v7885, %v7773
      %v7935 = vcombine.low %v7886, %v7774
      %v7936 = vcombine.low %v7775, %v7887
      %v7937 = vcombine.low %v7776, %v7888
      %v7938 = vcombine.low %v7777, %v7778
      %v7939 = vcombine.low %v7889, %v7779
      %v7940 = vcombine.low %v7890, %v7780
      %v7941 = vcombine.low %v7781, %v7891
      %v7942 = vcombine.low %v7782, %v7892
      %v7943 = vcombine.low %v7783, %v7784
      %v7944 = vcombine.low %v7893, %v7785
      %v7945 = vcombine.low %v7894, %v7786
      %v7946 = vcombine.low %v7787, %v7895
      %v7947 = vcombine.low %v7788, %v7896
      %v7948 = vcombine.low %v7789, %v7790
      %v7949 = vcombine.low %v7897, %v7791
      %v7950 = vcombine.low %v7898, %v7792
      %v7951 = vcombine.low %v7793, %v7899
      %v7952 = vcombine.low %v7794, %v7900
      %v7953 = vcombine.low %v7795, %v7796
      %v7954 = vcombine.low %v7901, %v7797
      %v7955 = vcombine.low %v7902, %v7798
      %v7956 = vcombine.low %v7799, %v7903
      %v7957 = vcombine.low %v7800, %v7904
      %v7958 = vcombine.low %v7801, %v7802
      %v7959 = vcombine.low %v7905, %v7803
      %v7960 = vcombine.low %v7906, %v7804
      %v7961 = vcombine.low %v7805, %v7907
      %v7962 = vcombine.low %v7806, %v7908
      %v7963 = vcombine.low %v7807, %v7808
      %v7964 = vcombine.low %v7909, %v7809
      %v7965 = vcombine.low %v7910, %v7810
      %vm7966 = vcmask 588800
      %v7968 = vsel %vm7966, %v5748, 0
      %v7970 = vsel %vm7966, %v7916, 0
      %v7972 = vsel %vm7966, %v7917, 0
      %v7974 = vsel %vm7966, %v7918, 0
      %v7976 = vsel %vm7966, %v7919, 0
      %v7978 = vsel %vm7966, %v7920, 0
      %v7980 = vsel %vm7966, %v7921, 0
      %v7982 = vsel %vm7966, %v7922, 0
      %v7984 = vsel %vm7966, %v7923, 0
      %v7986 = vsel %vm7966, %v7924, 0
      %v7988 = vsel %vm7966, %v7925, 0
      %v7990 = vsel %vm7966, %v7926, 0
      %v7992 = vsel %vm7966, %v7927, 0
      %v7994 = vsel %vm7966, %v7928, 0
      %v7996 = vsel %vm7966, %v7929, 0
      %v7998 = vsel %vm7966, %v7930, 0
      %v8000 = vsel %vm7966, %v7931, 0
      %v8002 = vsel %vm7966, %v7932, 0
      %v8004 = vsel %vm7966, %v7933, 0
      %v8006 = vsel %vm7966, %v7934, 0
      %v8008 = vsel %vm7966, %v7935, 0
      %v8010 = vsel %vm7966, %v7936, 0
      %v8012 = vsel %vm7966, %v7937, 0
      %v8014 = vsel %vm7966, %v7938, 0
      %v8016 = vsel %vm7966, %v7939, 0
      %v8018 = vsel %vm7966, %v7940, 0
      %v8020 = vsel %vm7966, %v7941, 0
      %v8022 = vsel %vm7966, %v7942, 0
      %v8024 = vsel %vm7966, %v7943, 0
      %v8026 = vsel %vm7966, %v7944, 0
      %v8028 = vsel %vm7966, %v7945, 0
      %v8030 = vsel %vm7966, %v7946, 0
      %v8032 = vsel %vm7966, %v7947, 0
      %v8034 = vsel %vm7966, %v7948, 0
      %v8036 = vsel %vm7966, %v7949, 0
      %v8038 = vsel %vm7966, %v7950, 0
      %v8040 = vsel %vm7966, %v7951, 0
      %v8042 = vsel %vm7966, %v7952, 0
      %v8044 = vsel %vm7966, %v7953, 0
      %v8046 = vsel %vm7966, %v7954, 0
      %v8048 = vsel %vm7966, %v7955, 0
      %v8050 = vsel %vm7966, %v7956, 0
      %v8052 = vsel %vm7966, %v7957, 0
      %v8054 = vsel %vm7966, %v7958, 0
      %v8056 = vsel %vm7966, %v7959, 0
      %v8058 = vsel %vm7966, %v7960, 0
      %v8060 = vsel %vm7966, %v7961, 0
      %v8062 = vsel %vm7966, %v7962, 0
      %v8064 = vsel %vm7966, %v7963, 0
      %v8066 = vsel %vm7966, %v7964, 0
      %v8068 = vsel %vm7966, %v7965, 0
      %8070 = vmatprep.subr.mxu0 0.0
      %8071 = vmatpush1.xpose.msra.mxu0 %v7970
      %8072 = vmatprep.subr.mxu0 0.0
      %8073 = vmatpush1.xpose.msra.mxu0 %v7972
      %8074 = vmatprep.subr.mxu0 0.0
      %8075 = vmatpush1.xpose.msra.mxu0 %v7974
      %8076 = vmatprep.subr.mxu0 0.0
      %8077 = vmatpush1.xpose.msra.mxu0 %v7976
      %8078 = vmatprep.subr.mxu0 0.0
      %8079 = vmatpush1.xpose.msra.mxu0 %v7978
      %8080 = vmatprep.subr.mxu0 0.0
      %8081 = vmatpush1.xpose.msra.mxu0 %v7980
      %8082 = vmatprep.subr.mxu0 0.0
      %8083 = vmatpush1.xpose.msra.mxu0 %v7982
      %8084 = vmatprep.subr.mxu0 0.0
      %8085 = vmatpush1.xpose.msra.mxu0 %v7984
      %8086 = vmatprep.subr.mxu0 0.0
      %8087 = vmatpush1.xpose.msra.mxu0 %v7986
      %8088 = vmatprep.subr.mxu0 0.0
      %8089 = vmatpush1.xpose.msra.mxu0 %v7988
      %8090 = vmatprep.subr.mxu0 0.0
      %8091 = vmatpush1.xpose.msra.mxu0 %v7990
      %8092 = vmatprep.subr.mxu0 0.0
      %8093 = vmatpush1.xpose.msra.mxu0 %v7992
      %8094 = vmatprep.subr.mxu0 0.0
      %8095 = vmatpush1.xpose.msra.mxu0 %v7994
      %8096 = vmatprep.subr.mxu0 0.0
      %8097 = vmatpush1.xpose.msra.mxu0 %v7996
      %8098 = vmatprep.subr.mxu0 0.0
      %8099 = vmatpush1.xpose.msra.mxu0 %v7998
      %8100 = vmatprep.subr.mxu0 0.0
      %8101 = vmatpush1.xpose.msra.mxu0 %v8000
      %8102 = vmatprep.subr.mxu0 0.0
      %8103 = vmatpush1.xpose.msra.mxu0 %v8002
      %8104 = vmatprep.subr.mxu0 0.0
      %8105 = vmatpush1.xpose.msra.mxu0 %v8004
      %8106 = vmatprep.subr.mxu0 0.0
      %8107 = vmatpush1.xpose.msra.mxu0 %v8006
      %8108 = vmatprep.subr.mxu0 0.0
      %8109 = vmatpush1.xpose.msra.mxu0 %v8008
      %8110 = vmatprep.subr.mxu0 0.0
      %8111 = vmatpush1.xpose.msra.mxu0 %v8010
      %8112 = vmatprep.subr.mxu0 0.0
      %8113 = vmatpush1.xpose.msra.mxu0 %v8012
      %8114 = vmatprep.subr.mxu0 0.0
      %8115 = vmatpush1.xpose.msra.mxu0 %v8014
      %8116 = vmatprep.subr.mxu0 0.0
      %8117 = vmatpush1.xpose.msra.mxu0 %v8016
      %8118 = vmatprep.subr.mxu0 0.0
      %8119 = vmatpush1.xpose.msra.mxu0 %v8018
      %8120 = vmatprep.subr.mxu0 0.0
      %8121 = vmatpush1.xpose.msra.mxu0 %v8020
      %8122 = vmatprep.subr.mxu0 0.0
      %8123 = vmatpush1.xpose.msra.mxu0 %v8022
      %8124 = vmatprep.subr.mxu0 0.0
      %8125 = vmatpush1.xpose.msra.mxu0 %v8024
      %8126 = vmatprep.subr.mxu0 0.0
      %8127 = vmatpush1.xpose.msra.mxu0 %v8026
      %8128 = vmatprep.subr.mxu0 0.0
      %8129 = vmatpush1.xpose.msra.mxu0 %v8028
      %8130 = vmatprep.subr.mxu0 0.0
      %8131 = vmatpush1.xpose.msra.mxu0 %v8030
      %8132 = vmatprep.subr.mxu0 0.0
      %8133 = vmatpush1.xpose.msra.mxu0 %v8032
      %8134 = vmatprep.mubr.f32.mxu0 0.0
      %8135 = vmatmul.mubr.f32.gmra.mrb[0].mxu0 %v7968
      %v8136 = vpop.f32.mrb[0].mxu0
      %v8137 = vadd.f32 %v7914, %v8136
      %v8138 = vpop.f32.mrb[0].mxu0
      %v8139 = vadd.f32 %v7914, %v8138
      %8140 = vdwg.mxu0
      %8141 = vmatprep.subr.mxu0 0.0
      %8142 = vmatpush1.xpose.msra.mxu0 %v8034
      %8143 = vmatprep.subr.mxu0 0.0
      %8144 = vmatpush1.xpose.msra.mxu0 %v8036
      %8145 = vmatprep.subr.mxu0 0.0
      %8146 = vmatpush1.xpose.msra.mxu0 %v8038
      %8147 = vmatprep.subr.mxu0 0.0
      %8148 = vmatpush1.xpose.msra.mxu0 %v8040
      %8149 = vmatprep.subr.mxu0 0.0
      %8150 = vmatpush1.xpose.msra.mxu0 %v8042
      %8151 = vmatprep.subr.mxu0 0.0
      %8152 = vmatpush1.xpose.msra.mxu0 %v8044
      %8153 = vmatprep.subr.mxu0 0.0
      %8154 = vmatpush1.xpose.msra.mxu0 %v8046
      %8155 = vmatprep.subr.mxu0 0.0
      %8156 = vmatpush1.xpose.msra.mxu0 %v8048
      %8157 = vmatprep.subr.mxu0 0.0
      %8158 = vmatpush1.xpose.msra.mxu0 %v8050
      %8159 = vmatprep.subr.mxu0 0.0
      %8160 = vmatpush1.xpose.msra.mxu0 %v8052
      %8161 = vmatprep.subr.mxu0 0.0
      %8162 = vmatpush1.xpose.msra.mxu0 %v8054
      %8163 = vmatprep.subr.mxu0 0.0
      %8164 = vmatpush1.xpose.msra.mxu0 %v8056
      %8165 = vmatprep.subr.mxu0 0.0
      %8166 = vmatpush1.xpose.msra.mxu0 %v8058
      %8167 = vmatprep.subr.mxu0 0.0
      %8168 = vmatpush1.xpose.msra.mxu0 %v8060
      %8169 = vmatprep.subr.mxu0 0.0
      %8170 = vmatpush1.xpose.msra.mxu0 %v8062
      %8171 = vmatprep.subr.mxu0 0.0
      %8172 = vmatpush1.xpose.msra.mxu0 %v8064
      %8173 = vmatprep.subr.mxu0 0.0
      %8174 = vmatpush1.xpose.msra.mxu0 %v8066
      %8175 = vmatprep.subr.mxu0 0.0
      %8176 = vmatpush1.xpose.msra.mxu0 %v8068
      %8177 = vmatprep.subr.mxu0 0.0
      %8178 = vmatpush1.xpose.msra.mxu0 0.0
      %8179 = vmatprep.subr.mxu0 0.0
      %8180 = vmatpush1.xpose.msra.mxu0 0.0
      %8181 = vmatprep.subr.mxu0 0.0
      %8182 = vmatpush1.xpose.msra.mxu0 0.0
      %8183 = vmatprep.subr.mxu0 0.0
      %8184 = vmatpush1.xpose.msra.mxu0 0.0
      %8185 = vmatprep.subr.mxu0 0.0
      %8186 = vmatpush1.xpose.msra.mxu0 0.0
      %8187 = vmatprep.subr.mxu0 0.0
      %8188 = vmatpush1.xpose.msra.mxu0 0.0
      %8189 = vmatprep.subr.mxu0 0.0
      %8190 = vmatpush1.xpose.msra.mxu0 0.0
      %8191 = vmatprep.subr.mxu0 0.0
      %8192 = vmatpush1.xpose.msra.mxu0 0.0
      %8193 = vmatprep.subr.mxu0 0.0
      %8194 = vmatpush1.xpose.msra.mxu0 0.0
      %8195 = vmatprep.subr.mxu0 0.0
      %8196 = vmatpush1.xpose.msra.mxu0 0.0
      %8197 = vmatprep.subr.mxu0 0.0
      %8198 = vmatpush1.xpose.msra.mxu0 0.0
      %8199 = vmatprep.subr.mxu0 0.0
      %8200 = vmatpush1.xpose.msra.mxu0 0.0
      %8201 = vmatprep.subr.mxu0 0.0
      %8202 = vmatpush1.xpose.msra.mxu0 0.0
      %8203 = vmatprep.subr.mxu0 0.0
      %8204 = vmatpush1.xpose.msra.mxu0 0.0
      %8205 = vmatprep.mubr.f32.mxu0 0.0
      %8206 = vmatmul.mubr.f32.gmra.mrb[0].mxu0 %v7968
      %v8207 = vpop.f32.mrb[0].mxu0
      %v8208 = vadd.f32 %v7914, %v8207
      %v8209 = vpop.f32.mrb[0].mxu0
      %v8210 = vadd.f32 %v7914, %v8209
      %8211 = vdwg.mxu0
      %8212 = vst [vmem:[%s224] sm:$0xff] %v8137
      %8213 = vst [vmem:[%s224 + $0x8] sm:$0xff] %v8139
      %8214 = vst [vmem:[%s224 + $0x10] sm:$0xff] %v8208
      %8215 = vst.msk [vmem:[%s224 + $0x18] sm:$0xff] %vm2016, %v8210
      %p8216 = scmp.lt.s32.totalorder %s16, 1
      %s8217 = scalar_select %p8216, %s16, 1
      %s8218 = smul.addr %s8217, 4
      %s8219 = smul.addr %s8218, 8
      %s8220 = scalar_lea.vmem %s5, %s8219
      // Predicated region
      $region41: #{upsampling_block_pallas.1} parent=39 // pred_check
        %p8221 = pneg %p144
      $region42: #{upsampling_block_pallas.1} parent=39 // pred_check_branch
        %8223 = sbr.rel (%p8221) target = $region44
      $region43: #{upsampling_block_pallas.1} parent=39 // pred_region
        _
      $region44: #{upsampling_block_pallas.1} parent=39 // pred_fallthru
        _
    $region40: #{upsampling_block_pallas.1} parent=5 // pred_fallthru
      _
    %p8224 = scmp.le.s32.totalorder 2, %s11
    // Predicated region
    $region45: #{upsampling_block_pallas.1} parent=5 // pred_check
      %p8225 = pneg %p8224
    $region46: #{upsampling_block_pallas.1} parent=5 // pred_check_branch
      %8227 = sbr.rel (%p8225) target = $region48
    $region47: #{upsampling_block_pallas.1} parent=5 // pred_region
      %s8228 = ssub.s32 %s11, 2
      // Predicated region
      $region49: #{upsampling_block_pallas.1} parent=47 // pred_check
        %p8229 = pneg %p150
      $region50: #{upsampling_block_pallas.1} parent=47 // pred_check_branch
        %8231 = sbr.rel (%p8229) target = $region52
      $region51: #{upsampling_block_pallas.1} parent=47 // pred_region
        %p8232 = scmp.lt.s32.totalorder %s17, 1
        %s8233 = scalar_select %p8232, %s17, 1
        %s8234 = smul.addr %s8233, 4
        %s8235 = smul.addr %s8234, 8
        %s8236 = scalar_lea.vmem %s5, %s8235
      $region52: #{upsampling_block_pallas.1} parent=47 // pred_fallthru
        _
    $region48: #{upsampling_block_pallas.1} parent=5 // pred_fallthru
      _
  $region6: #{upsampling_block_pallas.1} parent=0 // loop_footer
    %s15 = sadd.s32 1, %s11
  $region7: #{upsampling_block_pallas.1} parent=0 // loop_footer_branch
    %10 = sbr.rel target = $region3
  $region8: #{upsampling_block_pallas.1} parent=0 // loop_exit
    _

</llo_original>
